<compile_context>
chip_gen: v7x
topology: tpu7x:2x2x1
jax: 0.10.0
libtpu: 0.0.40
codegen_flags: <defaults>
</compile_context>

<pallas_src>
import functools

import jax
import jax.numpy as jnp
from jax import lax
from jax.experimental import pallas as pl
from jax.experimental.pallas import tpu as pltpu

PAD_IDX = 1  # torchtext <pad> index (label_field.vocab.stoi[pad_token])


def _round_up(x, m):
    return (x + m - 1) // m * m


@functools.lru_cache(maxsize=1)
def _vmem_capacity_bytes():
    try:
        return int(pltpu.get_tpu_info().vmem_capacity_bytes)
    except Exception:
        return 64 * 1024 * 1024  # conservative fallback (v7x per-core VMEM)


def _vmem_limit_bytes():
    cap = _vmem_capacity_bytes()
    # 96 MiB on 128-MiB chips (v5e/v6e), 48 MiB on v7x.
    return min(cap * 3 // 4, cap - 8 * 1024 * 1024)


def _chunk_bytes(tc, Bp, Hp, n_dir):
    """Rough VMEM estimate for one time-chunk of the recurrent kernel."""
    x_b = n_dir * 2 * tc * Bp * Hp * 2          # bf16 x chunks, double-buffered
    out_b = n_dir * 2 * tc * Bp * Hp * 4        # f32 output chunks, double-buffered
    gate_b = n_dir * tc * Bp * 4 * Hp * 4       # f32 gate scratch
    w_b = n_dir * 2 * (Hp * 4 * Hp * 2) * 2     # w_ih + w_hh bf16 (x2 buffers)
    lin_b = (2 * 4 * Hp * Hp * 2) if n_dir == 2 else 0
    carry_b = 2 * n_dir * Bp * Hp * 4
    return x_b + out_b + gate_b + w_b + lin_b + carry_b


def _pick_time_chunk(T, Bp, Hp, n_dir):
    """Largest divisor of T (<=256) whose chunk fits in half of VMEM."""
    budget = _vmem_capacity_bytes() // 2
    best = 1
    for tc in range(1, min(T, 256) + 1):
        if T % tc == 0 and _chunk_bytes(tc, Bp, Hp, n_dir) <= budget:
            best = tc
    # TODO(synk): for prime T this degenerates to Tc=1; padding T with masked
    #             tail steps would keep chunks large.
    return best


# ----------------------------------------------------------------------------
# LSTM cell step. gates_x already contains x@W_ih^T + b_ih + b_hh (f32).
# Gate order matches PyTorch: i, f, g, o. Recurrent matmul uses bf16 operands,
# f32 accumulation; all elementwise math stays f32.
# ----------------------------------------------------------------------------
def _cell(gates_x, h_prev, c_prev, whh_bf16):
    gates = gates_x + jnp.dot(h_prev.astype(jnp.bfloat16), whh_bf16,
                              preferred_element_type=jnp.float32)
    Hp = h_prev.shape[-1]
    i_g = jax.nn.sigmoid(gates[:, 0 * Hp:1 * Hp])
    f_g = jax.nn.sigmoid(gates[:, 1 * Hp:2 * Hp])
    g_g = jnp.tanh(gates[:, 2 * Hp:3 * Hp])
    o_g = jax.nn.sigmoid(gates[:, 3 * Hp:4 * Hp])
    c_new = f_g * c_prev + i_g * g_g
    h_new = o_g * jnp.tanh(c_new)
    return h_new, c_new


# ----------------------------------------------------------------------------
# Fused bidirectional LSTM. One grid over time chunks; both directions per
# step (backward chunks via reversed index_maps). Input projection fused at
# the top of each chunk; h/c carried across chunks in VMEM scratch; final
# hidden/cell linear projections fused into the last chunk's epilogue.
# ----------------------------------------------------------------------------
def _bilstm_kernel(xf_ref, xb_ref, wihf_ref, wihb_ref, bf_ref, bb_ref,
                   whhf_ref, whhb_ref,
                   wlhf_ref, wlhb_ref, blh_ref, wlcf_ref, wlcb_ref, blc_ref,
                   outf_ref, outb_ref, hn_ref, cn_ref,
                   hf, cf, hb, cb, gxf_scr, gxb_scr, *, Tc, unroll):
    i = pl.program_id(0)

    @pl.when(i == 0)
    def _():
        hf[...] = jnp.zeros_like(hf)
        cf[...] = jnp.zeros_like(cf)
        hb[...] = jnp.zeros_like(hb)
        cb[...] = jnp.zeros_like(cb)

    _, Bp, Hp = xf_ref.shape
    G = 4 * Hp

    # Fused input projection for this chunk (bf16 MXU, f32 accumulation).
    xf = xf_ref[...].reshape(Tc * Bp, Hp)
    xb = xb_ref[...].reshape(Tc * Bp, Hp)
    gxf_scr[...] = (jnp.dot(xf, wihf_ref[...],
                            preferred_element_type=jnp.float32)
                    + bf_ref[...]).reshape(Tc, Bp, G)
    gxb_scr[...] = (jnp.dot(xb, wihb_ref[...],
                            preferred_element_type=jnp.float32)
                    + bb_ref[...]).reshape(Tc, Bp, G)

    whh_f = whhf_ref[...]
    whh_b = whhb_ref[...]

    def step(s, carry):
        hf_v, cf_v, hb_v, cb_v = carry
        # forward direction: local step s of this chunk
        hf_n, cf_n = _cell(gxf_scr[s], hf_v, cf_v, whh_f)
        outf_ref[s] = hf_n
        # backward direction: chunk order reversed by index_map, local order
        # reversed here -> processes original timesteps T-1 ... 0.
        sb = Tc - 1 - s
        hb_n, cb_n = _cell(gxb_scr[sb], hb_v, cb_v, whh_b)
        outb_ref[sb] = hb_n
        return hf_n, cf_n, hb_n, cb_n

    hf_v, cf_v, hb_v, cb_v = lax.fori_loop(
        0, Tc, step, (hf[...], cf[...], hb[...], cb[...]), unroll=unroll)

    # Persist carries once per chunk (not per timestep).
    hf[...] = hf_v
    cf[...] = cf_v
    hb[...] = hb_v
    cb[...] = cb_v

    # Final hidden/cell projections fused into the last chunk's epilogue.
    @pl.when(i == pl.num_programs(0) - 1)
    def _():
        hf_b = hf_v.astype(jnp.bfloat16)
        hb_b = hb_v.astype(jnp.bfloat16)
        cf_b = cf_v.astype(jnp.bfloat16)
        cb_b = cb_v.astype(jnp.bfloat16)
        hn_ref[...] = (jnp.dot(hf_b, wlhf_ref[...],
                               preferred_element_type=jnp.float32)
                       + jnp.dot(hb_b, wlhb_ref[...],
                                 preferred_element_type=jnp.float32)
                       + blh_ref[...])
        cn_ref[...] = (jnp.dot(cf_b, wlcf_ref[...],
                               preferred_element_type=jnp.float32)
                       + jnp.dot(cb_b, wlcb_ref[...],
                                 preferred_element_type=jnp.float32)
                       + blc_ref[...])


def bilstm(x_emb, wih_f, wih_b, b_f, b_b, whh_f, whh_b,
           wlh_f, wlh_b, blh, wlc_f, wlc_b, blc):
    T, Bp, Hp = x_emb.shape
    G = 4 * Hp
    Tc = _pick_time_chunk(T, Bp, Hp, n_dir=2)
    NC = T // Tc
    unroll = min(Tc, 8)

    def const(shape):
        return pl.BlockSpec(shape, lambda i: (0, 0))

    def fwd3(bs):
        return pl.BlockSpec(bs, lambda i: (i, 0, 0))

    def bwd3(bs):
        return pl.BlockSpec(bs, lambda i: (NC - 1 - i, 0, 0))

    return pl.pallas_call(
        functools.partial(_bilstm_kernel, Tc=Tc, unroll=unroll),
        out_shape=(jax.ShapeDtypeStruct((T, Bp, Hp), jnp.float32),
                   jax.ShapeDtypeStruct((T, Bp, Hp), jnp.float32),
                   jax.ShapeDtypeStruct((Bp, Hp), jnp.float32),
                   jax.ShapeDtypeStruct((Bp, Hp), jnp.float32)),
        grid_spec=pltpu.PrefetchScalarGridSpec(
            num_scalar_prefetch=0,
            grid=(NC,),
            in_specs=[
                fwd3((Tc, Bp, Hp)),          # x chunk, forward order (bf16)
                bwd3((Tc, Bp, Hp)),          # x chunk, reversed chunk order
                const(wih_f.shape), const(wih_b.shape),
                const(b_f.shape), const(b_b.shape),
                const(whh_f.shape), const(whh_b.shape),
                const(wlh_f.shape), const(wlh_b.shape), const(blh.shape),
                const(wlc_f.shape), const(wlc_b.shape), const(blc.shape),
            ],
            out_specs=(
                fwd3((Tc, Bp, Hp)),          # forward outputs
                bwd3((Tc, Bp, Hp)),          # backward outputs (reversed chunks)
                const((Bp, Hp)),             # projected hn
                const((Bp, Hp)),             # projected cn
            ),
            scratch_shapes=[pltpu.VMEM((Bp, Hp), jnp.float32)
                            for _ in range(4)]
                           + [pltpu.VMEM((Tc, Bp, G), jnp.float32)
                              for _ in range(2)],
        ),
        compiler_params=pltpu.CompilerParams(
            dimension_semantics=("arbitrary",),      # time recurrence: serial
            vmem_limit_bytes=_vmem_limit_bytes()),
    )(x_emb, x_emb, wih_f, wih_b, b_f, b_b, whh_f, whh_b,
      wlh_f, wlh_b, blh, wlc_f, wlc_b, blc)


# ----------------------------------------------------------------------------
# Single-direction LSTM (bidirectional=False path), same fused structure.
# ----------------------------------------------------------------------------
def _lstm_kernel(x_ref, wih_ref, b_ref, whh_ref,
                 out_ref, hn_ref, cn_ref,
                 h_scr, c_scr, gx_scr, *, Tc, unroll):
    i = pl.program_id(0)

    @pl.when(i == 0)
    def _():
        h_scr[...] = jnp.zeros_like(h_scr)
        c_scr[...] = jnp.zeros_like(c_scr)

    _, Bp, Hp = x_ref.shape
    G = 4 * Hp
    x = x_ref[...].reshape(Tc * Bp, Hp)
    gx_scr[...] = (jnp.dot(x, wih_ref[...],
                           preferred_element_type=jnp.float32)
                   + b_ref[...]).reshape(Tc, Bp, G)

    whh = whh_ref[...]

    def step(s, carry):
        h_v, c_v = carry
        h_n, c_n = _cell(gx_scr[s], h_v, c_v, whh)
        out_ref[s] = h_n
        return h_n, c_n

    h_v, c_v = lax.fori_loop(0, Tc, step, (h_scr[...], c_scr[...]),
                             unroll=unroll)
    h_scr[...] = h_v
    c_scr[...] = c_v

    @pl.when(i == pl.num_programs(0) - 1)
    def _():
        hn_ref[...] = h_v
        cn_ref[...] = c_v


def lstm_single(x_emb, wih, b, whh):
    T, Bp, Hp = x_emb.shape
    G = 4 * Hp
    Tc = _pick_time_chunk(T, Bp, Hp, n_dir=1)
    NC = T // Tc
    unroll = min(Tc, 8)

    def const(shape):
        return pl.BlockSpec(shape, lambda i: (0, 0))

    return pl.pallas_call(
        functools.partial(_lstm_kernel, Tc=Tc, unroll=unroll),
        out_shape=(jax.ShapeDtypeStruct((T, Bp, Hp), jnp.float32),
                   jax.ShapeDtypeStruct((Bp, Hp), jnp.float32),
                   jax.ShapeDtypeStruct((Bp, Hp), jnp.float32)),
        grid_spec=pltpu.PrefetchScalarGridSpec(
            num_scalar_prefetch=0,
            grid=(NC,),
            in_specs=[
                pl.BlockSpec((Tc, Bp, Hp), lambda i: (i, 0, 0)),
                const(wih.shape), const(b.shape), const(whh.shape),
            ],
            out_specs=(
                pl.BlockSpec((Tc, Bp, Hp), lambda i: (i, 0, 0)),
                const((Bp, Hp)),
                const((Bp, Hp)),
            ),
            scratch_shapes=[pltpu.VMEM((Bp, Hp), jnp.float32),
                            pltpu.VMEM((Bp, Hp), jnp.float32),
                            pltpu.VMEM((Tc, Bp, G), jnp.float32)],
        ),
        compiler_params=pltpu.CompilerParams(
            dimension_semantics=("arbitrary",),
            vmem_limit_bytes=_vmem_limit_bytes()),
    )(x_emb, wih, b, whh)


# ----------------------------------------------------------------------------
# Weight padding helpers: pad hidden size H -> Hp (multiple of 128) so gate
# slices and output stores are 128-lane dense. Padded rows/columns are zero,
# so padded h/c columns stay exactly 0 and never affect the real columns.
# ----------------------------------------------------------------------------
def _pad_gate_weight(w, H, Hp):
    """(H, 4H) -> (Hp, 4Hp), each gate block placed at column offset k*Hp."""
    out = jnp.zeros((Hp, 4 * Hp), w.dtype)
    for k in range(4):
        out = out.at[:H, k * Hp:k * Hp + H].set(w[:, k * H:(k + 1) * H])
    return out


def _pad_gate_bias(b, H, Hp):
    out = jnp.zeros((1, 4 * Hp), b.dtype)
    for k in range(4):
        out = out.at[:, k * Hp:k * Hp + H].set(b[:, k * H:(k + 1) * H])
    return out


def _pad_mat(w, rows, cols):
    r, c = w.shape
    return jnp.pad(w, ((0, rows - r), (0, cols - c)))


# ----------------------------------------------------------------------------
# Parameters + forward
# ----------------------------------------------------------------------------
def init_params(key, input_size, hidden_size, bidirectional):
    H = hidden_size
    k = 1.0 / jnp.sqrt(jnp.float32(H))
    keys = jax.random.split(key, 16)

    def u(kk, shape):
        return jax.random.uniform(kk, shape, jnp.float32, -k, k)

    params = {
        "embedding": jax.random.normal(keys[0], (input_size, H), jnp.float32),
        # stored transposed (PyTorch weight is (4H,H); we keep (H,4H)) so the
        # kernels compute x @ w directly.
        "w_ih_f": u(keys[1], (H, 4 * H)),
        "w_hh_f": u(keys[2], (H, 4 * H)),
        "b_f": u(keys[3], (1, 4 * H)) + u(keys[4], (1, 4 * H)),  # b_ih + b_hh
    }
    if bidirectional:
        params.update({
            "w_ih_b": u(keys[5], (H, 4 * H)),
            "w_hh_b": u(keys[6], (H, 4 * H)),
            "b_b": u(keys[7], (1, 4 * H)) + u(keys[8], (1, 4 * H)),
            "w_lin_h": u(keys[9], (2 * H, H)),    # linear_hidden.weight^T
            "b_lin_h": u(keys[10], (1, H)),
            "w_lin_c": u(keys[11], (2 * H, H)),   # linear_cell.weight^T
            "b_lin_c": u(keys[12], (1, H)),
        })
    return params


@functools.partial(jax.jit, static_argnames=("bidirectional",))
def lstm_encoder_forward(params, X, bidirectional=True):
    """X: (T, B) int32 tokens (seq-first, PyTorch nn.LSTM default layout)."""
    T, B = X.shape
    H = params["embedding"].shape[1]
    Hp = max(_round_up(H, 128), 128)              # lane-dense hidden size
    Bp = max(_round_up(B, 16), 16)                # bf16-sublane-dense batch
    Xp = jnp.pad(X, ((0, 0), (0, Bp - B)))        # pad rows with token 0

    # Embedding gather + dropout (eval mode -> identity) stay in XLA.
    emb_p = jnp.pad(params["embedding"], ((0, 0), (0, Hp - H)))
    x_emb = emb_p[Xp].astype(jnp.bfloat16)        # (T, Bp, Hp) bf16

    if bidirectional:
        wih_f = _pad_gate_weight(params["w_ih_f"], H, Hp).astype(jnp.bfloat16)
        wih_b = _pad_gate_weight(params["w_ih_b"], H, Hp).astype(jnp.bfloat16)
        whh_f = _pad_gate_weight(params["w_hh_f"], H, Hp).astype(jnp.bfloat16)
        whh_b = _pad_gate_weight(params["w_hh_b"], H, Hp).astype(jnp.bfloat16)
        b_f = _pad_gate_bias(params["b_f"], H, Hp)
        b_b = _pad_gate_bias(params["b_b"], H, Hp)
        # Split the final-state linear weights (avoids in-kernel concat).
        wlh_f = _pad_mat(params["w_lin_h"][:H], Hp, Hp).astype(jnp.bfloat16)
        wlh_b = _pad_mat(params["w_lin_h"][H:], Hp, Hp).astype(jnp.bfloat16)
        wlc_f = _pad_mat(params["w_lin_c"][:H], Hp, Hp).astype(jnp.bfloat16)
        wlc_b = _pad_mat(params["w_lin_c"][H:], Hp, Hp).astype(jnp.bfloat16)
        blh = jnp.pad(params["b_lin_h"], ((0, 0), (0, Hp - H)))
        blc = jnp.pad(params["b_lin_c"], ((0, 0), (0, Hp - H)))

        out_f, out_b, hn, cn = bilstm(
            x_emb, wih_f, wih_b, b_f, b_b, whh_f, whh_b,
            wlh_f, wlh_b, blh, wlc_f, wlc_b, blc)

        output = jnp.concatenate([out_f[:, :B, :H], out_b[:, :B, :H]], axis=-1)
        mask = (X == PAD_IDX)
        return output, hn[:B, :H], cn[:B, :H], mask

    # unidirectional: hn/cn returned unprojected (PyTorch shape (1, B, H)).
    wih = _pad_gate_weight(params["w_ih_f"], H, Hp).astype(jnp.bfloat16)
    whh = _pad_gate_weight(params["w_hh_f"], H, Hp).astype(jnp.bfloat16)
    b = _pad_gate_bias(params["b_f"], H, Hp)
    out, hn, cn = lstm_single(x_emb, wih, b, whh)
    return out[:, :B, :H], hn[None, :B, :H], cn[None, :B, :H], None


if __name__ == "__main__":
    # Small shapes consistent with the module: vocab=32, hidden=32, T=8, B=2.
    VOCAB, HIDDEN, T, B = 32, 32, 8, 2
    BIDIRECTIONAL = True

    key = jax.random.PRNGKey(0)
    pkey, xkey = jax.random.split(key)

    params = init_params(pkey, VOCAB, HIDDEN, BIDIRECTIONAL)
    X = jax.random.randint(xkey, (T, B), 0, VOCAB, dtype=jnp.int32)

    output, hn, cn, mask = lstm_encoder_forward(params, X,
                                                bidirectional=BIDIRECTIONAL)
    jax.block_until_ready((output, hn, cn, mask))

    assert output.shape == (T, B, 2 * HIDDEN)
    assert hn.shape == (B, HIDDEN)
    assert cn.shape == (B, HIDDEN)
    assert mask.shape == (T, B)
    print("KERNEL_OK")
</pallas_src>

<mosaic_0001>
module attributes {stable_mosaic.version = 11 : i64} {
  func.func @_bilstm_kernel(%arg0: i32, %arg1: memref<8x16x128xbf16, #tpu.memory_space<vmem>>, %arg2: memref<8x16x128xbf16, #tpu.memory_space<vmem>>, %arg3: memref<128x512xbf16, #tpu.memory_space<vmem>>, %arg4: memref<128x512xbf16, #tpu.memory_space<vmem>>, %arg5: memref<1x512xf32, #tpu.memory_space<vmem>>, %arg6: memref<1x512xf32, #tpu.memory_space<vmem>>, %arg7: memref<128x512xbf16, #tpu.memory_space<vmem>>, %arg8: memref<128x512xbf16, #tpu.memory_space<vmem>>, %arg9: memref<128x128xbf16, #tpu.memory_space<vmem>>, %arg10: memref<128x128xbf16, #tpu.memory_space<vmem>>, %arg11: memref<1x128xf32, #tpu.memory_space<vmem>>, %arg12: memref<128x128xbf16, #tpu.memory_space<vmem>>, %arg13: memref<128x128xbf16, #tpu.memory_space<vmem>>, %arg14: memref<1x128xf32, #tpu.memory_space<vmem>>, %arg15: memref<8x16x128xf32, #tpu.memory_space<vmem>>, %arg16: memref<8x16x128xf32, #tpu.memory_space<vmem>>, %arg17: memref<16x128xf32, #tpu.memory_space<vmem>>, %arg18: memref<16x128xf32, #tpu.memory_space<vmem>>, %arg19: memref<16x128xf32, #tpu.memory_space<vmem>>, %arg20: memref<16x128xf32, #tpu.memory_space<vmem>>, %arg21: memref<16x128xf32, #tpu.memory_space<vmem>>, %arg22: memref<16x128xf32, #tpu.memory_space<vmem>>, %arg23: memref<8x16x512xf32, #tpu.memory_space<vmem>>, %arg24: memref<8x16x512xf32, #tpu.memory_space<vmem>>) attributes {dimension_semantics = [#tpu.dimension_semantics<arbitrary>], iteration_bounds = array<i64: 1>, scalar_prefetch = 0 : i64, scratch_operands = 6 : i64, tpu.core_type = #tpu.core_type<tc>, window_params = [{transform_indices = @transform_0, window_bounds = array<i64: 8, 16, 128>}, {transform_indices = @transform_1, window_bounds = array<i64: 8, 16, 128>}, {pipeline_mode = #tpu.pipeline_mode<synchronous>, transform_indices = @transform_2, window_bounds = array<i64: 128, 512>}, {pipeline_mode = #tpu.pipeline_mode<synchronous>, transform_indices = @transform_3, window_bounds = array<i64: 128, 512>}, {pipeline_mode = #tpu.pipeline_mode<synchronous>, transform_indices = @transform_4, window_bounds = array<i64: 1, 512>}, {pipeline_mode = #tpu.pipeline_mode<synchronous>, transform_indices = @transform_5, window_bounds = array<i64: 1, 512>}, {pipeline_mode = #tpu.pipeline_mode<synchronous>, transform_indices = @transform_6, window_bounds = array<i64: 128, 512>}, {pipeline_mode = #tpu.pipeline_mode<synchronous>, transform_indices = @transform_7, window_bounds = array<i64: 128, 512>}, {pipeline_mode = #tpu.pipeline_mode<synchronous>, transform_indices = @transform_8, window_bounds = array<i64: 128, 128>}, {pipeline_mode = #tpu.pipeline_mode<synchronous>, transform_indices = @transform_9, window_bounds = array<i64: 128, 128>}, {pipeline_mode = #tpu.pipeline_mode<synchronous>, transform_indices = @transform_10, window_bounds = array<i64: 1, 128>}, {pipeline_mode = #tpu.pipeline_mode<synchronous>, transform_indices = @transform_11, window_bounds = array<i64: 128, 128>}, {pipeline_mode = #tpu.pipeline_mode<synchronous>, transform_indices = @transform_12, window_bounds = array<i64: 128, 128>}, {pipeline_mode = #tpu.pipeline_mode<synchronous>, transform_indices = @transform_13, window_bounds = array<i64: 1, 128>}, {transform_indices = @transform_14, window_bounds = array<i64: 8, 16, 128>}, {transform_indices = @transform_15, window_bounds = array<i64: 8, 16, 128>}, {pipeline_mode = #tpu.pipeline_mode<synchronous>, transform_indices = @transform_16, window_bounds = array<i64: 16, 128>}, {pipeline_mode = #tpu.pipeline_mode<synchronous>, transform_indices = @transform_17, window_bounds = array<i64: 16, 128>}]} {
    %c0_i32 = arith.constant 0 : i32
    %0 = arith.cmpi eq, %arg0, %c0_i32 : i32
    %1 = arith.extui %0 : i1 to i32
    %c0_i32_0 = arith.constant 0 : i32
    %2 = arith.cmpi ne, %1, %c0_i32_0 : i32
    scf.if %2 {
      %cst_180 = arith.constant 0.000000e+00 : f32
      %602 = vector.broadcast %cst_180 : f32 to vector<16x128xf32>
      %c0_181 = arith.constant 0 : index
      %c0_182 = arith.constant 0 : index
      %603 = vector.load %arg19[%c0_181, %c0_182] : memref<16x128xf32, #tpu.memory_space<vmem>>, vector<16x128xf32>
      tpu.vector_store %arg19[%c0_181, %c0_182], %602 {strides = array<i32>} : memref<16x128xf32, #tpu.memory_space<vmem>>, vector<16x128xf32>,
      %cst_183 = arith.constant 0.000000e+00 : f32
      %604 = vector.broadcast %cst_183 : f32 to vector<16x128xf32>
      %c0_184 = arith.constant 0 : index
      %c0_185 = arith.constant 0 : index
      %605 = vector.load %arg20[%c0_184, %c0_185] : memref<16x128xf32, #tpu.memory_space<vmem>>, vector<16x128xf32>
      tpu.vector_store %arg20[%c0_184, %c0_185], %604 {strides = array<i32>} : memref<16x128xf32, #tpu.memory_space<vmem>>, vector<16x128xf32>,
      %cst_186 = arith.constant 0.000000e+00 : f32
      %606 = vector.broadcast %cst_186 : f32 to vector<16x128xf32>
      %c0_187 = arith.constant 0 : index
      %c0_188 = arith.constant 0 : index
      %607 = vector.load %arg21[%c0_187, %c0_188] : memref<16x128xf32, #tpu.memory_space<vmem>>, vector<16x128xf32>
      tpu.vector_store %arg21[%c0_187, %c0_188], %606 {strides = array<i32>} : memref<16x128xf32, #tpu.memory_space<vmem>>, vector<16x128xf32>,
      %cst_189 = arith.constant 0.000000e+00 : f32
      %608 = vector.broadcast %cst_189 : f32 to vector<16x128xf32>
      %c0_190 = arith.constant 0 : index
      %c0_191 = arith.constant 0 : index
      %609 = vector.load %arg22[%c0_190, %c0_191] : memref<16x128xf32, #tpu.memory_space<vmem>>, vector<16x128xf32>
      tpu.vector_store %arg22[%c0_190, %c0_191], %608 {strides = array<i32>} : memref<16x128xf32, #tpu.memory_space<vmem>>, vector<16x128xf32>,
    } else {
    }
    %c0 = arith.constant 0 : index
    %c0_1 = arith.constant 0 : index
    %c0_2 = arith.constant 0 : index
    %3 = vector.load %arg1[%c0, %c0_1, %c0_2] : memref<8x16x128xbf16, #tpu.memory_space<vmem>>, vector<8x16x128xbf16>
    %4 = vector.shape_cast %3 : vector<8x16x128xbf16> to vector<128x128xbf16>
    %c0_3 = arith.constant 0 : index
    %c0_4 = arith.constant 0 : index
    %c0_5 = arith.constant 0 : index
    %5 = vector.load %arg2[%c0_3, %c0_4, %c0_5] : memref<8x16x128xbf16, #tpu.memory_space<vmem>>, vector<8x16x128xbf16>
    %6 = vector.shape_cast %5 : vector<8x16x128xbf16> to vector<128x128xbf16>
    %c0_6 = arith.constant 0 : index
    %c0_7 = arith.constant 0 : index
    %7 = vector.load %arg3[%c0_6, %c0_7] : memref<128x512xbf16, #tpu.memory_space<vmem>>, vector<128x512xbf16>
    %cst = arith.constant dense<0.000000e+00> : vector<128x512xf32>
    %8 = tpu.matmul %4, %7, %cst {dimension_numbers = #tpu.dot_dimension_numbers<[1], [0], [0], [1], [0, 0, 1, 1], [], []>} : vector<128x128xbf16>, vector<128x512xbf16>, vector<128x512xf32> -> vector<128x512xf32>
    %c0_8 = arith.constant 0 : index
    %c0_9 = arith.constant 0 : index
    %9 = vector.load %arg5[%c0_8, %c0_9] : memref<1x512xf32, #tpu.memory_space<vmem>>, vector<1x512xf32>
    %10 = vector.broadcast %9 : vector<1x512xf32> to vector<128x512xf32>
    %11 = arith.addf %8, %10 : vector<128x512xf32>
    %12 = vector.shape_cast %11 : vector<128x512xf32> to vector<8x16x512xf32>
    %c0_10 = arith.constant 0 : index
    %c0_11 = arith.constant 0 : index
    %c0_12 = arith.constant 0 : index
    %13 = vector.load %arg23[%c0_10, %c0_11, %c0_12] : memref<8x16x512xf32, #tpu.memory_space<vmem>>, vector<8x16x512xf32>
    tpu.vector_store %arg23[%c0_10, %c0_11, %c0_12], %12 {strides = array<i32>} : memref<8x16x512xf32, #tpu.memory_space<vmem>>, vector<8x16x512xf32>,
    %c0_13 = arith.constant 0 : index
    %c0_14 = arith.constant 0 : index
    %14 = vector.load %arg4[%c0_13, %c0_14] : memref<128x512xbf16, #tpu.memory_space<vmem>>, vector<128x512xbf16>
    %cst_15 = arith.constant dense<0.000000e+00> : vector<128x512xf32>
    %15 = tpu.matmul %6, %14, %cst_15 {dimension_numbers = #tpu.dot_dimension_numbers<[1], [0], [0], [1], [0, 0, 1, 1], [], []>} : vector<128x128xbf16>, vector<128x512xbf16>, vector<128x512xf32> -> vector<128x512xf32>
    %c0_16 = arith.constant 0 : index
    %c0_17 = arith.constant 0 : index
    %16 = vector.load %arg6[%c0_16, %c0_17] : memref<1x512xf32, #tpu.memory_space<vmem>>, vector<1x512xf32>
    %17 = vector.broadcast %16 : vector<1x512xf32> to vector<128x512xf32>
    %18 = arith.addf %15, %17 : vector<128x512xf32>
    %19 = vector.shape_cast %18 : vector<128x512xf32> to vector<8x16x512xf32>
    %c0_18 = arith.constant 0 : index
    %c0_19 = arith.constant 0 : index
    %c0_20 = arith.constant 0 : index
    %20 = vector.load %arg24[%c0_18, %c0_19, %c0_20] : memref<8x16x512xf32, #tpu.memory_space<vmem>>, vector<8x16x512xf32>
    tpu.vector_store %arg24[%c0_18, %c0_19, %c0_20], %19 {strides = array<i32>} : memref<8x16x512xf32, #tpu.memory_space<vmem>>, vector<8x16x512xf32>,
    %c0_21 = arith.constant 0 : index
    %c0_22 = arith.constant 0 : index
    %21 = vector.load %arg7[%c0_21, %c0_22] : memref<128x512xbf16, #tpu.memory_space<vmem>>, vector<128x512xbf16>
    %c0_23 = arith.constant 0 : index
    %c0_24 = arith.constant 0 : index
    %22 = vector.load %arg8[%c0_23, %c0_24] : memref<128x512xbf16, #tpu.memory_space<vmem>>, vector<128x512xbf16>
    %c0_25 = arith.constant 0 : index
    %c0_26 = arith.constant 0 : index
    %23 = vector.load %arg19[%c0_25, %c0_26] : memref<16x128xf32, #tpu.memory_space<vmem>>, vector<16x128xf32>
    %c0_27 = arith.constant 0 : index
    %c0_28 = arith.constant 0 : index
    %24 = vector.load %arg20[%c0_27, %c0_28] : memref<16x128xf32, #tpu.memory_space<vmem>>, vector<16x128xf32>
    %c0_29 = arith.constant 0 : index
    %c0_30 = arith.constant 0 : index
    %25 = vector.load %arg21[%c0_29, %c0_30] : memref<16x128xf32, #tpu.memory_space<vmem>>, vector<16x128xf32>
    %c0_31 = arith.constant 0 : index
    %c0_32 = arith.constant 0 : index
    %26 = vector.load %arg22[%c0_31, %c0_32] : memref<16x128xf32, #tpu.memory_space<vmem>>, vector<16x128xf32>
    %c0_i32_33 = arith.constant 0 : i32
    %27 = arith.index_cast %c0_i32_33 : i32 to index
    %c0_34 = arith.constant 0 : index
    %c0_35 = arith.constant 0 : index
    %28 = vector.load %arg23[%27, %c0_34, %c0_35] : memref<8x16x512xf32, #tpu.memory_space<vmem>>, vector<1x16x512xf32>
    %29 = vector.shape_cast %28 : vector<1x16x512xf32> to vector<16x512xf32>
    %30 = arith.truncf %23 : vector<16x128xf32> to vector<16x128xbf16>
    %cst_36 = arith.constant dense<0.000000e+00> : vector<16x512xf32>
    %31 = tpu.matmul %30, %21, %cst_36 {dimension_numbers = #tpu.dot_dimension_numbers<[1], [0], [0], [1], [0, 0, 1, 1], [], []>} : vector<16x128xbf16>, vector<128x512xbf16>, vector<16x512xf32> -> vector<16x512xf32>
    %32 = arith.addf %29, %31 : vector<16x512xf32>
    %33 = vector.extract_strided_slice %32 {offsets = [0, 0], sizes = [16, 128], strides = [1, 1]} : vector<16x512xf32> to vector<16x128xf32>
    %34 = arith.negf %33 : vector<16x128xf32>
    %35 = math.exp %34 : vector<16x128xf32>
    %cst_37 = arith.constant 1.000000e+00 : f32
    %36 = vector.broadcast %cst_37 : f32 to vector<16x128xf32>
    %37 = arith.addf %36, %35 : vector<16x128xf32>
    %38 = arith.divf %36, %37 : vector<16x128xf32>
    %39 = vector.extract_strided_slice %32 {offsets = [0, 128], sizes = [16, 128], strides = [1, 1]} : vector<16x512xf32> to vector<16x128xf32>
    %40 = arith.negf %39 : vector<16x128xf32>
    %41 = math.exp %40 : vector<16x128xf32>
    %cst_38 = arith.constant 1.000000e+00 : f32
    %42 = vector.broadcast %cst_38 : f32 to vector<16x128xf32>
    %43 = arith.addf %42, %41 : vector<16x128xf32>
    %44 = arith.divf %42, %43 : vector<16x128xf32>
    %45 = vector.extract_strided_slice %32 {offsets = [0, 256], sizes = [16, 128], strides = [1, 1]} : vector<16x512xf32> to vector<16x128xf32>
    %46 = math.tanh %45 : vector<16x128xf32>
    %47 = vector.extract_strided_slice %32 {offsets = [0, 384], sizes = [16, 128], strides = [1, 1]} : vector<16x512xf32> to vector<16x128xf32>
    %48 = arith.negf %47 : vector<16x128xf32>
    %49 = math.exp %48 : vector<16x128xf32>
    %cst_39 = arith.constant 1.000000e+00 : f32
    %50 = vector.broadcast %cst_39 : f32 to vector<16x128xf32>
    %51 = arith.addf %50, %49 : vector<16x128xf32>
    %52 = arith.divf %50, %51 : vector<16x128xf32>
    %53 = arith.mulf %44, %24 : vector<16x128xf32>
    %54 = arith.mulf %38, %46 : vector<16x128xf32>
    %55 = arith.addf %53, %54 : vector<16x128xf32>
    %56 = math.tanh %55 : vector<16x128xf32>
    %57 = arith.mulf %52, %56 : vector<16x128xf32>
    %58 = arith.index_cast %c0_i32_33 : i32 to index
    %c0_40 = arith.constant 0 : index
    %c0_41 = arith.constant 0 : index
    %59 = vector.load %arg15[%58, %c0_40, %c0_41] : memref<8x16x128xf32, #tpu.memory_space<vmem>>, vector<1x16x128xf32>
    %60 = vector.shape_cast %59 : vector<1x16x128xf32> to vector<16x128xf32>
    %61 = vector.shape_cast %57 : vector<16x128xf32> to vector<1x16x128xf32>
    tpu.vector_store %arg15[%58, %c0_40, %c0_41], %61 {strides = array<i32>} : memref<8x16x128xf32, #tpu.memory_space<vmem>>, vector<1x16x128xf32>,
    %c7_i32 = arith.constant 7 : i32
    %62 = arith.subi %c7_i32, %c0_i32_33 : i32
    %63 = arith.index_cast %62 : i32 to index
    %c0_42 = arith.constant 0 : index
    %c0_43 = arith.constant 0 : index
    %64 = vector.load %arg24[%63, %c0_42, %c0_43] : memref<8x16x512xf32, #tpu.memory_space<vmem>>, vector<1x16x512xf32>
    %65 = vector.shape_cast %64 : vector<1x16x512xf32> to vector<16x512xf32>
    %66 = arith.truncf %25 : vector<16x128xf32> to vector<16x128xbf16>
    %cst_44 = arith.constant dense<0.000000e+00> : vector<16x512xf32>
    %67 = tpu.matmul %66, %22, %cst_44 {dimension_numbers = #tpu.dot_dimension_numbers<[1], [0], [0], [1], [0, 0, 1, 1], [], []>} : vector<16x128xbf16>, vector<128x512xbf16>, vector<16x512xf32> -> vector<16x512xf32>
    %68 = arith.addf %65, %67 : vector<16x512xf32>
    %69 = vector.extract_strided_slice %68 {offsets = [0, 0], sizes = [16, 128], strides = [1, 1]} : vector<16x512xf32> to vector<16x128xf32>
    %70 = arith.negf %69 : vector<16x128xf32>
    %71 = math.exp %70 : vector<16x128xf32>
    %cst_45 = arith.constant 1.000000e+00 : f32
    %72 = vector.broadcast %cst_45 : f32 to vector<16x128xf32>
    %73 = arith.addf %72, %71 : vector<16x128xf32>
    %74 = arith.divf %72, %73 : vector<16x128xf32>
    %75 = vector.extract_strided_slice %68 {offsets = [0, 128], sizes = [16, 128], strides = [1, 1]} : vector<16x512xf32> to vector<16x128xf32>
    %76 = arith.negf %75 : vector<16x128xf32>
    %77 = math.exp %76 : vector<16x128xf32>
    %cst_46 = arith.constant 1.000000e+00 : f32
    %78 = vector.broadcast %cst_46 : f32 to vector<16x128xf32>
    %79 = arith.addf %78, %77 : vector<16x128xf32>
    %80 = arith.divf %78, %79 : vector<16x128xf32>
    %81 = vector.extract_strided_slice %68 {offsets = [0, 256], sizes = [16, 128], strides = [1, 1]} : vector<16x512xf32> to vector<16x128xf32>
    %82 = math.tanh %81 : vector<16x128xf32>
    %83 = vector.extract_strided_slice %68 {offsets = [0, 384], sizes = [16, 128], strides = [1, 1]} : vector<16x512xf32> to vector<16x128xf32>
    %84 = arith.negf %83 : vector<16x128xf32>
    %85 = math.exp %84 : vector<16x128xf32>
    %cst_47 = arith.constant 1.000000e+00 : f32
    %86 = vector.broadcast %cst_47 : f32 to vector<16x128xf32>
    %87 = arith.addf %86, %85 : vector<16x128xf32>
    %88 = arith.divf %86, %87 : vector<16x128xf32>
    %89 = arith.mulf %80, %26 : vector<16x128xf32>
    %90 = arith.mulf %74, %82 : vector<16x128xf32>
    %91 = arith.addf %89, %90 : vector<16x128xf32>
    %92 = math.tanh %91 : vector<16x128xf32>
    %93 = arith.mulf %88, %92 : vector<16x128xf32>
    %94 = arith.index_cast %62 : i32 to index
    %c0_48 = arith.constant 0 : index
    %c0_49 = arith.constant 0 : index
    %95 = vector.load %arg16[%94, %c0_48, %c0_49] : memref<8x16x128xf32, #tpu.memory_space<vmem>>, vector<1x16x128xf32>
    %96 = vector.shape_cast %95 : vector<1x16x128xf32> to vector<16x128xf32>
    %97 = vector.shape_cast %93 : vector<16x128xf32> to vector<1x16x128xf32>
    tpu.vector_store %arg16[%94, %c0_48, %c0_49], %97 {strides = array<i32>} : memref<8x16x128xf32, #tpu.memory_space<vmem>>, vector<1x16x128xf32>,
    %c1_i32 = arith.constant 1 : i32
    %98 = arith.index_cast %c1_i32 : i32 to index
    %c0_50 = arith.constant 0 : index
    %c0_51 = arith.constant 0 : index
    %99 = vector.load %arg23[%98, %c0_50, %c0_51] : memref<8x16x512xf32, #tpu.memory_space<vmem>>, vector<1x16x512xf32>
    %100 = vector.shape_cast %99 : vector<1x16x512xf32> to vector<16x512xf32>
    %101 = arith.truncf %57 : vector<16x128xf32> to vector<16x128xbf16>
    %cst_52 = arith.constant dense<0.000000e+00> : vector<16x512xf32>
    %102 = tpu.matmul %101, %21, %cst_52 {dimension_numbers = #tpu.dot_dimension_numbers<[1], [0], [0], [1], [0, 0, 1, 1], [], []>} : vector<16x128xbf16>, vector<128x512xbf16>, vector<16x512xf32> -> vector<16x512xf32>
    %103 = arith.addf %100, %102 : vector<16x512xf32>
    %104 = vector.extract_strided_slice %103 {offsets = [0, 0], sizes = [16, 128], strides = [1, 1]} : vector<16x512xf32> to vector<16x128xf32>
    %105 = arith.negf %104 : vector<16x128xf32>
    %106 = math.exp %105 : vector<16x128xf32>
    %cst_53 = arith.constant 1.000000e+00 : f32
    %107 = vector.broadcast %cst_53 : f32 to vector<16x128xf32>
    %108 = arith.addf %107, %106 : vector<16x128xf32>
    %109 = arith.divf %107, %108 : vector<16x128xf32>
    %110 = vector.extract_strided_slice %103 {offsets = [0, 128], sizes = [16, 128], strides = [1, 1]} : vector<16x512xf32> to vector<16x128xf32>
    %111 = arith.negf %110 : vector<16x128xf32>
    %112 = math.exp %111 : vector<16x128xf32>
    %cst_54 = arith.constant 1.000000e+00 : f32
    %113 = vector.broadcast %cst_54 : f32 to vector<16x128xf32>
    %114 = arith.addf %113, %112 : vector<16x128xf32>
    %115 = arith.divf %113, %114 : vector<16x128xf32>
    %116 = vector.extract_strided_slice %103 {offsets = [0, 256], sizes = [16, 128], strides = [1, 1]} : vector<16x512xf32> to vector<16x128xf32>
    %117 = math.tanh %116 : vector<16x128xf32>
    %118 = vector.extract_strided_slice %103 {offsets = [0, 384], sizes = [16, 128], strides = [1, 1]} : vector<16x512xf32> to vector<16x128xf32>
    %119 = arith.negf %118 : vector<16x128xf32>
    %120 = math.exp %119 : vector<16x128xf32>
    %cst_55 = arith.constant 1.000000e+00 : f32
    %121 = vector.broadcast %cst_55 : f32 to vector<16x128xf32>
    %122 = arith.addf %121, %120 : vector<16x128xf32>
    %123 = arith.divf %121, %122 : vector<16x128xf32>
    %124 = arith.mulf %115, %55 : vector<16x128xf32>
    %125 = arith.mulf %109, %117 : vector<16x128xf32>
    %126 = arith.addf %124, %125 : vector<16x128xf32>
    %127 = math.tanh %126 : vector<16x128xf32>
    %128 = arith.mulf %123, %127 : vector<16x128xf32>
    %129 = arith.index_cast %c1_i32 : i32 to index
    %c0_56 = arith.constant 0 : index
    %c0_57 = arith.constant 0 : index
    %130 = vector.load %arg15[%129, %c0_56, %c0_57] : memref<8x16x128xf32, #tpu.memory_space<vmem>>, vector<1x16x128xf32>
    %131 = vector.shape_cast %130 : vector<1x16x128xf32> to vector<16x128xf32>
    %132 = vector.shape_cast %128 : vector<16x128xf32> to vector<1x16x128xf32>
    tpu.vector_store %arg15[%129, %c0_56, %c0_57], %132 {strides = array<i32>} : memref<8x16x128xf32, #tpu.memory_space<vmem>>, vector<1x16x128xf32>,
    %c7_i32_58 = arith.constant 7 : i32
    %133 = arith.subi %c7_i32_58, %c1_i32 : i32
    %134 = arith.index_cast %133 : i32 to index
    %c0_59 = arith.constant 0 : index
    %c0_60 = arith.constant 0 : index
    %135 = vector.load %arg24[%134, %c0_59, %c0_60] : memref<8x16x512xf32, #tpu.memory_space<vmem>>, vector<1x16x512xf32>
    %136 = vector.shape_cast %135 : vector<1x16x512xf32> to vector<16x512xf32>
    %137 = arith.truncf %93 : vector<16x128xf32> to vector<16x128xbf16>
    %cst_61 = arith.constant dense<0.000000e+00> : vector<16x512xf32>
    %138 = tpu.matmul %137, %22, %cst_61 {dimension_numbers = #tpu.dot_dimension_numbers<[1], [0], [0], [1], [0, 0, 1, 1], [], []>} : vector<16x128xbf16>, vector<128x512xbf16>, vector<16x512xf32> -> vector<16x512xf32>
    %139 = arith.addf %136, %138 : vector<16x512xf32>
    %140 = vector.extract_strided_slice %139 {offsets = [0, 0], sizes = [16, 128], strides = [1, 1]} : vector<16x512xf32> to vector<16x128xf32>
    %141 = arith.negf %140 : vector<16x128xf32>
    %142 = math.exp %141 : vector<16x128xf32>
    %cst_62 = arith.constant 1.000000e+00 : f32
    %143 = vector.broadcast %cst_62 : f32 to vector<16x128xf32>
    %144 = arith.addf %143, %142 : vector<16x128xf32>
    %145 = arith.divf %143, %144 : vector<16x128xf32>
    %146 = vector.extract_strided_slice %139 {offsets = [0, 128], sizes = [16, 128], strides = [1, 1]} : vector<16x512xf32> to vector<16x128xf32>
    %147 = arith.negf %146 : vector<16x128xf32>
    %148 = math.exp %147 : vector<16x128xf32>
    %cst_63 = arith.constant 1.000000e+00 : f32
    %149 = vector.broadcast %cst_63 : f32 to vector<16x128xf32>
    %150 = arith.addf %149, %148 : vector<16x128xf32>
    %151 = arith.divf %149, %150 : vector<16x128xf32>
    %152 = vector.extract_strided_slice %139 {offsets = [0, 256], sizes = [16, 128], strides = [1, 1]} : vector<16x512xf32> to vector<16x128xf32>
    %153 = math.tanh %152 : vector<16x128xf32>
    %154 = vector.extract_strided_slice %139 {offsets = [0, 384], sizes = [16, 128], strides = [1, 1]} : vector<16x512xf32> to vector<16x128xf32>
    %155 = arith.negf %154 : vector<16x128xf32>
    %156 = math.exp %155 : vector<16x128xf32>
    %cst_64 = arith.constant 1.000000e+00 : f32
    %157 = vector.broadcast %cst_64 : f32 to vector<16x128xf32>
    %158 = arith.addf %157, %156 : vector<16x128xf32>
    %159 = arith.divf %157, %158 : vector<16x128xf32>
    %160 = arith.mulf %151, %91 : vector<16x128xf32>
    %161 = arith.mulf %145, %153 : vector<16x128xf32>
    %162 = arith.addf %160, %161 : vector<16x128xf32>
    %163 = math.tanh %162 : vector<16x128xf32>
    %164 = arith.mulf %159, %163 : vector<16x128xf32>
    %165 = arith.index_cast %133 : i32 to index
    %c0_65 = arith.constant 0 : index
    %c0_66 = arith.constant 0 : index
    %166 = vector.load %arg16[%165, %c0_65, %c0_66] : memref<8x16x128xf32, #tpu.memory_space<vmem>>, vector<1x16x128xf32>
    %167 = vector.shape_cast %166 : vector<1x16x128xf32> to vector<16x128xf32>
    %168 = vector.shape_cast %164 : vector<16x128xf32> to vector<1x16x128xf32>
    tpu.vector_store %arg16[%165, %c0_65, %c0_66], %168 {strides = array<i32>} : memref<8x16x128xf32, #tpu.memory_space<vmem>>, vector<1x16x128xf32>,
    %c2_i32 = arith.constant 2 : i32
    %169 = arith.index_cast %c2_i32 : i32 to index
    %c0_67 = arith.constant 0 : index
    %c0_68 = arith.constant 0 : index
    %170 = vector.load %arg23[%169, %c0_67, %c0_68] : memref<8x16x512xf32, #tpu.memory_space<vmem>>, vector<1x16x512xf32>
    %171 = vector.shape_cast %170 : vector<1x16x512xf32> to vector<16x512xf32>
    %172 = arith.truncf %128 : vector<16x128xf32> to vector<16x128xbf16>
    %cst_69 = arith.constant dense<0.000000e+00> : vector<16x512xf32>
    %173 = tpu.matmul %172, %21, %cst_69 {dimension_numbers = #tpu.dot_dimension_numbers<[1], [0], [0], [1], [0, 0, 1, 1], [], []>} : vector<16x128xbf16>, vector<128x512xbf16>, vector<16x512xf32> -> vector<16x512xf32>
    %174 = arith.addf %171, %173 : vector<16x512xf32>
    %175 = vector.extract_strided_slice %174 {offsets = [0, 0], sizes = [16, 128], strides = [1, 1]} : vector<16x512xf32> to vector<16x128xf32>
    %176 = arith.negf %175 : vector<16x128xf32>
    %177 = math.exp %176 : vector<16x128xf32>
    %cst_70 = arith.constant 1.000000e+00 : f32
    %178 = vector.broadcast %cst_70 : f32 to vector<16x128xf32>
    %179 = arith.addf %178, %177 : vector<16x128xf32>
    %180 = arith.divf %178, %179 : vector<16x128xf32>
    %181 = vector.extract_strided_slice %174 {offsets = [0, 128], sizes = [16, 128], strides = [1, 1]} : vector<16x512xf32> to vector<16x128xf32>
    %182 = arith.negf %181 : vector<16x128xf32>
    %183 = math.exp %182 : vector<16x128xf32>
    %cst_71 = arith.constant 1.000000e+00 : f32
    %184 = vector.broadcast %cst_71 : f32 to vector<16x128xf32>
    %185 = arith.addf %184, %183 : vector<16x128xf32>
    %186 = arith.divf %184, %185 : vector<16x128xf32>
    %187 = vector.extract_strided_slice %174 {offsets = [0, 256], sizes = [16, 128], strides = [1, 1]} : vector<16x512xf32> to vector<16x128xf32>
    %188 = math.tanh %187 : vector<16x128xf32>
    %189 = vector.extract_strided_slice %174 {offsets = [0, 384], sizes = [16, 128], strides = [1, 1]} : vector<16x512xf32> to vector<16x128xf32>
    %190 = arith.negf %189 : vector<16x128xf32>
    %191 = math.exp %190 : vector<16x128xf32>
    %cst_72 = arith.constant 1.000000e+00 : f32
    %192 = vector.broadcast %cst_72 : f32 to vector<16x128xf32>
    %193 = arith.addf %192, %191 : vector<16x128xf32>
    %194 = arith.divf %192, %193 : vector<16x128xf32>
    %195 = arith.mulf %186, %126 : vector<16x128xf32>
    %196 = arith.mulf %180, %188 : vector<16x128xf32>
    %197 = arith.addf %195, %196 : vector<16x128xf32>
    %198 = math.tanh %197 : vector<16x128xf32>
    %199 = arith.mulf %194, %198 : vector<16x128xf32>
    %200 = arith.index_cast %c2_i32 : i32 to index
    %c0_73 = arith.constant 0 : index
    %c0_74 = arith.constant 0 : index
    %201 = vector.load %arg15[%200, %c0_73, %c0_74] : memref<8x16x128xf32, #tpu.memory_space<vmem>>, vector<1x16x128xf32>
    %202 = vector.shape_cast %201 : vector<1x16x128xf32> to vector<16x128xf32>
    %203 = vector.shape_cast %199 : vector<16x128xf32> to vector<1x16x128xf32>
    tpu.vector_store %arg15[%200, %c0_73, %c0_74], %203 {strides = array<i32>} : memref<8x16x128xf32, #tpu.memory_space<vmem>>, vector<1x16x128xf32>,
    %c7_i32_75 = arith.constant 7 : i32
    %204 = arith.subi %c7_i32_75, %c2_i32 : i32
    %205 = arith.index_cast %204 : i32 to index
    %c0_76 = arith.constant 0 : index
    %c0_77 = arith.constant 0 : index
    %206 = vector.load %arg24[%205, %c0_76, %c0_77] : memref<8x16x512xf32, #tpu.memory_space<vmem>>, vector<1x16x512xf32>
    %207 = vector.shape_cast %206 : vector<1x16x512xf32> to vector<16x512xf32>
    %208 = arith.truncf %164 : vector<16x128xf32> to vector<16x128xbf16>
    %cst_78 = arith.constant dense<0.000000e+00> : vector<16x512xf32>
    %209 = tpu.matmul %208, %22, %cst_78 {dimension_numbers = #tpu.dot_dimension_numbers<[1], [0], [0], [1], [0, 0, 1, 1], [], []>} : vector<16x128xbf16>, vector<128x512xbf16>, vector<16x512xf32> -> vector<16x512xf32>
    %210 = arith.addf %207, %209 : vector<16x512xf32>
    %211 = vector.extract_strided_slice %210 {offsets = [0, 0], sizes = [16, 128], strides = [1, 1]} : vector<16x512xf32> to vector<16x128xf32>
    %212 = arith.negf %211 : vector<16x128xf32>
    %213 = math.exp %212 : vector<16x128xf32>
    %cst_79 = arith.constant 1.000000e+00 : f32
    %214 = vector.broadcast %cst_79 : f32 to vector<16x128xf32>
    %215 = arith.addf %214, %213 : vector<16x128xf32>
    %216 = arith.divf %214, %215 : vector<16x128xf32>
    %217 = vector.extract_strided_slice %210 {offsets = [0, 128], sizes = [16, 128], strides = [1, 1]} : vector<16x512xf32> to vector<16x128xf32>
    %218 = arith.negf %217 : vector<16x128xf32>
    %219 = math.exp %218 : vector<16x128xf32>
    %cst_80 = arith.constant 1.000000e+00 : f32
    %220 = vector.broadcast %cst_80 : f32 to vector<16x128xf32>
    %221 = arith.addf %220, %219 : vector<16x128xf32>
    %222 = arith.divf %220, %221 : vector<16x128xf32>
    %223 = vector.extract_strided_slice %210 {offsets = [0, 256], sizes = [16, 128], strides = [1, 1]} : vector<16x512xf32> to vector<16x128xf32>
    %224 = math.tanh %223 : vector<16x128xf32>
    %225 = vector.extract_strided_slice %210 {offsets = [0, 384], sizes = [16, 128], strides = [1, 1]} : vector<16x512xf32> to vector<16x128xf32>
    %226 = arith.negf %225 : vector<16x128xf32>
    %227 = math.exp %226 : vector<16x128xf32>
    %cst_81 = arith.constant 1.000000e+00 : f32
    %228 = vector.broadcast %cst_81 : f32 to vector<16x128xf32>
    %229 = arith.addf %228, %227 : vector<16x128xf32>
    %230 = arith.divf %228, %229 : vector<16x128xf32>
    %231 = arith.mulf %222, %162 : vector<16x128xf32>
    %232 = arith.mulf %216, %224 : vector<16x128xf32>
    %233 = arith.addf %231, %232 : vector<16x128xf32>
    %234 = math.tanh %233 : vector<16x128xf32>
    %235 = arith.mulf %230, %234 : vector<16x128xf32>
    %236 = arith.index_cast %204 : i32 to index
    %c0_82 = arith.constant 0 : index
    %c0_83 = arith.constant 0 : index
    %237 = vector.load %arg16[%236, %c0_82, %c0_83] : memref<8x16x128xf32, #tpu.memory_space<vmem>>, vector<1x16x128xf32>
    %238 = vector.shape_cast %237 : vector<1x16x128xf32> to vector<16x128xf32>
    %239 = vector.shape_cast %235 : vector<16x128xf32> to vector<1x16x128xf32>
    tpu.vector_store %arg16[%236, %c0_82, %c0_83], %239 {strides = array<i32>} : memref<8x16x128xf32, #tpu.memory_space<vmem>>, vector<1x16x128xf32>,
    %c3_i32 = arith.constant 3 : i32
    %240 = arith.index_cast %c3_i32 : i32 to index
    %c0_84 = arith.constant 0 : index
    %c0_85 = arith.constant 0 : index
    %241 = vector.load %arg23[%240, %c0_84, %c0_85] : memref<8x16x512xf32, #tpu.memory_space<vmem>>, vector<1x16x512xf32>
    %242 = vector.shape_cast %241 : vector<1x16x512xf32> to vector<16x512xf32>
    %243 = arith.truncf %199 : vector<16x128xf32> to vector<16x128xbf16>
    %cst_86 = arith.constant dense<0.000000e+00> : vector<16x512xf32>
    %244 = tpu.matmul %243, %21, %cst_86 {dimension_numbers = #tpu.dot_dimension_numbers<[1], [0], [0], [1], [0, 0, 1, 1], [], []>} : vector<16x128xbf16>, vector<128x512xbf16>, vector<16x512xf32> -> vector<16x512xf32>
    %245 = arith.addf %242, %244 : vector<16x512xf32>
    %246 = vector.extract_strided_slice %245 {offsets = [0, 0], sizes = [16, 128], strides = [1, 1]} : vector<16x512xf32> to vector<16x128xf32>
    %247 = arith.negf %246 : vector<16x128xf32>
    %248 = math.exp %247 : vector<16x128xf32>
    %cst_87 = arith.constant 1.000000e+00 : f32
    %249 = vector.broadcast %cst_87 : f32 to vector<16x128xf32>
    %250 = arith.addf %249, %248 : vector<16x128xf32>
    %251 = arith.divf %249, %250 : vector<16x128xf32>
    %252 = vector.extract_strided_slice %245 {offsets = [0, 128], sizes = [16, 128], strides = [1, 1]} : vector<16x512xf32> to vector<16x128xf32>
    %253 = arith.negf %252 : vector<16x128xf32>
    %254 = math.exp %253 : vector<16x128xf32>
    %cst_88 = arith.constant 1.000000e+00 : f32
    %255 = vector.broadcast %cst_88 : f32 to vector<16x128xf32>
    %256 = arith.addf %255, %254 : vector<16x128xf32>
    %257 = arith.divf %255, %256 : vector<16x128xf32>
    %258 = vector.extract_strided_slice %245 {offsets = [0, 256], sizes = [16, 128], strides = [1, 1]} : vector<16x512xf32> to vector<16x128xf32>
    %259 = math.tanh %258 : vector<16x128xf32>
    %260 = vector.extract_strided_slice %245 {offsets = [0, 384], sizes = [16, 128], strides = [1, 1]} : vector<16x512xf32> to vector<16x128xf32>
    %261 = arith.negf %260 : vector<16x128xf32>
    %262 = math.exp %261 : vector<16x128xf32>
    %cst_89 = arith.constant 1.000000e+00 : f32
    %263 = vector.broadcast %cst_89 : f32 to vector<16x128xf32>
    %264 = arith.addf %263, %262 : vector<16x128xf32>
    %265 = arith.divf %263, %264 : vector<16x128xf32>
    %266 = arith.mulf %257, %197 : vector<16x128xf32>
    %267 = arith.mulf %251, %259 : vector<16x128xf32>
    %268 = arith.addf %266, %267 : vector<16x128xf32>
    %269 = math.tanh %268 : vector<16x128xf32>
    %270 = arith.mulf %265, %269 : vector<16x128xf32>
    %271 = arith.index_cast %c3_i32 : i32 to index
    %c0_90 = arith.constant 0 : index
    %c0_91 = arith.constant 0 : index
    %272 = vector.load %arg15[%271, %c0_90, %c0_91] : memref<8x16x128xf32, #tpu.memory_space<vmem>>, vector<1x16x128xf32>
    %273 = vector.shape_cast %272 : vector<1x16x128xf32> to vector<16x128xf32>
    %274 = vector.shape_cast %270 : vector<16x128xf32> to vector<1x16x128xf32>
    tpu.vector_store %arg15[%271, %c0_90, %c0_91], %274 {strides = array<i32>} : memref<8x16x128xf32, #tpu.memory_space<vmem>>, vector<1x16x128xf32>,
    %c7_i32_92 = arith.constant 7 : i32
    %275 = arith.subi %c7_i32_92, %c3_i32 : i32
    %276 = arith.index_cast %275 : i32 to index
    %c0_93 = arith.constant 0 : index
    %c0_94 = arith.constant 0 : index
    %277 = vector.load %arg24[%276, %c0_93, %c0_94] : memref<8x16x512xf32, #tpu.memory_space<vmem>>, vector<1x16x512xf32>
    %278 = vector.shape_cast %277 : vector<1x16x512xf32> to vector<16x512xf32>
    %279 = arith.truncf %235 : vector<16x128xf32> to vector<16x128xbf16>
    %cst_95 = arith.constant dense<0.000000e+00> : vector<16x512xf32>
    %280 = tpu.matmul %279, %22, %cst_95 {dimension_numbers = #tpu.dot_dimension_numbers<[1], [0], [0], [1], [0, 0, 1, 1], [], []>} : vector<16x128xbf16>, vector<128x512xbf16>, vector<16x512xf32> -> vector<16x512xf32>
    %281 = arith.addf %278, %280 : vector<16x512xf32>
    %282 = vector.extract_strided_slice %281 {offsets = [0, 0], sizes = [16, 128], strides = [1, 1]} : vector<16x512xf32> to vector<16x128xf32>
    %283 = arith.negf %282 : vector<16x128xf32>
    %284 = math.exp %283 : vector<16x128xf32>
    %cst_96 = arith.constant 1.000000e+00 : f32
    %285 = vector.broadcast %cst_96 : f32 to vector<16x128xf32>
    %286 = arith.addf %285, %284 : vector<16x128xf32>
    %287 = arith.divf %285, %286 : vector<16x128xf32>
    %288 = vector.extract_strided_slice %281 {offsets = [0, 128], sizes = [16, 128], strides = [1, 1]} : vector<16x512xf32> to vector<16x128xf32>
    %289 = arith.negf %288 : vector<16x128xf32>
    %290 = math.exp %289 : vector<16x128xf32>
    %cst_97 = arith.constant 1.000000e+00 : f32
    %291 = vector.broadcast %cst_97 : f32 to vector<16x128xf32>
    %292 = arith.addf %291, %290 : vector<16x128xf32>
    %293 = arith.divf %291, %292 : vector<16x128xf32>
    %294 = vector.extract_strided_slice %281 {offsets = [0, 256], sizes = [16, 128], strides = [1, 1]} : vector<16x512xf32> to vector<16x128xf32>
    %295 = math.tanh %294 : vector<16x128xf32>
    %296 = vector.extract_strided_slice %281 {offsets = [0, 384], sizes = [16, 128], strides = [1, 1]} : vector<16x512xf32> to vector<16x128xf32>
    %297 = arith.negf %296 : vector<16x128xf32>
    %298 = math.exp %297 : vector<16x128xf32>
    %cst_98 = arith.constant 1.000000e+00 : f32
    %299 = vector.broadcast %cst_98 : f32 to vector<16x128xf32>
    %300 = arith.addf %299, %298 : vector<16x128xf32>
    %301 = arith.divf %299, %300 : vector<16x128xf32>
    %302 = arith.mulf %293, %233 : vector<16x128xf32>
    %303 = arith.mulf %287, %295 : vector<16x128xf32>
    %304 = arith.addf %302, %303 : vector<16x128xf32>
    %305 = math.tanh %304 : vector<16x128xf32>
    %306 = arith.mulf %301, %305 : vector<16x128xf32>
    %307 = arith.index_cast %275 : i32 to index
    %c0_99 = arith.constant 0 : index
    %c0_100 = arith.constant 0 : index
    %308 = vector.load %arg16[%307, %c0_99, %c0_100] : memref<8x16x128xf32, #tpu.memory_space<vmem>>, vector<1x16x128xf32>
    %309 = vector.shape_cast %308 : vector<1x16x128xf32> to vector<16x128xf32>
    %310 = vector.shape_cast %306 : vector<16x128xf32> to vector<1x16x128xf32>
    tpu.vector_store %arg16[%307, %c0_99, %c0_100], %310 {strides = array<i32>} : memref<8x16x128xf32, #tpu.memory_space<vmem>>, vector<1x16x128xf32>,
    %c4_i32 = arith.constant 4 : i32
    %311 = arith.index_cast %c4_i32 : i32 to index
    %c0_101 = arith.constant 0 : index
    %c0_102 = arith.constant 0 : index
    %312 = vector.load %arg23[%311, %c0_101, %c0_102] : memref<8x16x512xf32, #tpu.memory_space<vmem>>, vector<1x16x512xf32>
    %313 = vector.shape_cast %312 : vector<1x16x512xf32> to vector<16x512xf32>
    %314 = arith.truncf %270 : vector<16x128xf32> to vector<16x128xbf16>
    %cst_103 = arith.constant dense<0.000000e+00> : vector<16x512xf32>
    %315 = tpu.matmul %314, %21, %cst_103 {dimension_numbers = #tpu.dot_dimension_numbers<[1], [0], [0], [1], [0, 0, 1, 1], [], []>} : vector<16x128xbf16>, vector<128x512xbf16>, vector<16x512xf32> -> vector<16x512xf32>
    %316 = arith.addf %313, %315 : vector<16x512xf32>
    %317 = vector.extract_strided_slice %316 {offsets = [0, 0], sizes = [16, 128], strides = [1, 1]} : vector<16x512xf32> to vector<16x128xf32>
    %318 = arith.negf %317 : vector<16x128xf32>
    %319 = math.exp %318 : vector<16x128xf32>
    %cst_104 = arith.constant 1.000000e+00 : f32
    %320 = vector.broadcast %cst_104 : f32 to vector<16x128xf32>
    %321 = arith.addf %320, %319 : vector<16x128xf32>
    %322 = arith.divf %320, %321 : vector<16x128xf32>
    %323 = vector.extract_strided_slice %316 {offsets = [0, 128], sizes = [16, 128], strides = [1, 1]} : vector<16x512xf32> to vector<16x128xf32>
    %324 = arith.negf %323 : vector<16x128xf32>
    %325 = math.exp %324 : vector<16x128xf32>
    %cst_105 = arith.constant 1.000000e+00 : f32
    %326 = vector.broadcast %cst_105 : f32 to vector<16x128xf32>
    %327 = arith.addf %326, %325 : vector<16x128xf32>
    %328 = arith.divf %326, %327 : vector<16x128xf32>
    %329 = vector.extract_strided_slice %316 {offsets = [0, 256], sizes = [16, 128], strides = [1, 1]} : vector<16x512xf32> to vector<16x128xf32>
    %330 = math.tanh %329 : vector<16x128xf32>
    %331 = vector.extract_strided_slice %316 {offsets = [0, 384], sizes = [16, 128], strides = [1, 1]} : vector<16x512xf32> to vector<16x128xf32>
    %332 = arith.negf %331 : vector<16x128xf32>
    %333 = math.exp %332 : vector<16x128xf32>
    %cst_106 = arith.constant 1.000000e+00 : f32
    %334 = vector.broadcast %cst_106 : f32 to vector<16x128xf32>
    %335 = arith.addf %334, %333 : vector<16x128xf32>
    %336 = arith.divf %334, %335 : vector<16x128xf32>
    %337 = arith.mulf %328, %268 : vector<16x128xf32>
    %338 = arith.mulf %322, %330 : vector<16x128xf32>
    %339 = arith.addf %337, %338 : vector<16x128xf32>
    %340 = math.tanh %339 : vector<16x128xf32>
    %341 = arith.mulf %336, %340 : vector<16x128xf32>
    %342 = arith.index_cast %c4_i32 : i32 to index
    %c0_107 = arith.constant 0 : index
    %c0_108 = arith.constant 0 : index
    %343 = vector.load %arg15[%342, %c0_107, %c0_108] : memref<8x16x128xf32, #tpu.memory_space<vmem>>, vector<1x16x128xf32>
    %344 = vector.shape_cast %343 : vector<1x16x128xf32> to vector<16x128xf32>
    %345 = vector.shape_cast %341 : vector<16x128xf32> to vector<1x16x128xf32>
    tpu.vector_store %arg15[%342, %c0_107, %c0_108], %345 {strides = array<i32>} : memref<8x16x128xf32, #tpu.memory_space<vmem>>, vector<1x16x128xf32>,
    %c7_i32_109 = arith.constant 7 : i32
    %346 = arith.subi %c7_i32_109, %c4_i32 : i32
    %347 = arith.index_cast %346 : i32 to index
    %c0_110 = arith.constant 0 : index
    %c0_111 = arith.constant 0 : index
    %348 = vector.load %arg24[%347, %c0_110, %c0_111] : memref<8x16x512xf32, #tpu.memory_space<vmem>>, vector<1x16x512xf32>
    %349 = vector.shape_cast %348 : vector<1x16x512xf32> to vector<16x512xf32>
    %350 = arith.truncf %306 : vector<16x128xf32> to vector<16x128xbf16>
    %cst_112 = arith.constant dense<0.000000e+00> : vector<16x512xf32>
    %351 = tpu.matmul %350, %22, %cst_112 {dimension_numbers = #tpu.dot_dimension_numbers<[1], [0], [0], [1], [0, 0, 1, 1], [], []>} : vector<16x128xbf16>, vector<128x512xbf16>, vector<16x512xf32> -> vector<16x512xf32>
    %352 = arith.addf %349, %351 : vector<16x512xf32>
    %353 = vector.extract_strided_slice %352 {offsets = [0, 0], sizes = [16, 128], strides = [1, 1]} : vector<16x512xf32> to vector<16x128xf32>
    %354 = arith.negf %353 : vector<16x128xf32>
    %355 = math.exp %354 : vector<16x128xf32>
    %cst_113 = arith.constant 1.000000e+00 : f32
    %356 = vector.broadcast %cst_113 : f32 to vector<16x128xf32>
    %357 = arith.addf %356, %355 : vector<16x128xf32>
    %358 = arith.divf %356, %357 : vector<16x128xf32>
    %359 = vector.extract_strided_slice %352 {offsets = [0, 128], sizes = [16, 128], strides = [1, 1]} : vector<16x512xf32> to vector<16x128xf32>
    %360 = arith.negf %359 : vector<16x128xf32>
    %361 = math.exp %360 : vector<16x128xf32>
    %cst_114 = arith.constant 1.000000e+00 : f32
    %362 = vector.broadcast %cst_114 : f32 to vector<16x128xf32>
    %363 = arith.addf %362, %361 : vector<16x128xf32>
    %364 = arith.divf %362, %363 : vector<16x128xf32>
    %365 = vector.extract_strided_slice %352 {offsets = [0, 256], sizes = [16, 128], strides = [1, 1]} : vector<16x512xf32> to vector<16x128xf32>
    %366 = math.tanh %365 : vector<16x128xf32>
    %367 = vector.extract_strided_slice %352 {offsets = [0, 384], sizes = [16, 128], strides = [1, 1]} : vector<16x512xf32> to vector<16x128xf32>
    %368 = arith.negf %367 : vector<16x128xf32>
    %369 = math.exp %368 : vector<16x128xf32>
    %cst_115 = arith.constant 1.000000e+00 : f32
    %370 = vector.broadcast %cst_115 : f32 to vector<16x128xf32>
    %371 = arith.addf %370, %369 : vector<16x128xf32>
    %372 = arith.divf %370, %371 : vector<16x128xf32>
    %373 = arith.mulf %364, %304 : vector<16x128xf32>
    %374 = arith.mulf %358, %366 : vector<16x128xf32>
    %375 = arith.addf %373, %374 : vector<16x128xf32>
    %376 = math.tanh %375 : vector<16x128xf32>
    %377 = arith.mulf %372, %376 : vector<16x128xf32>
    %378 = arith.index_cast %346 : i32 to index
    %c0_116 = arith.constant 0 : index
    %c0_117 = arith.constant 0 : index
    %379 = vector.load %arg16[%378, %c0_116, %c0_117] : memref<8x16x128xf32, #tpu.memory_space<vmem>>, vector<1x16x128xf32>
    %380 = vector.shape_cast %379 : vector<1x16x128xf32> to vector<16x128xf32>
    %381 = vector.shape_cast %377 : vector<16x128xf32> to vector<1x16x128xf32>
    tpu.vector_store %arg16[%378, %c0_116, %c0_117], %381 {strides = array<i32>} : memref<8x16x128xf32, #tpu.memory_space<vmem>>, vector<1x16x128xf32>,
    %c5_i32 = arith.constant 5 : i32
    %382 = arith.index_cast %c5_i32 : i32 to index
    %c0_118 = arith.constant 0 : index
    %c0_119 = arith.constant 0 : index
    %383 = vector.load %arg23[%382, %c0_118, %c0_119] : memref<8x16x512xf32, #tpu.memory_space<vmem>>, vector<1x16x512xf32>
    %384 = vector.shape_cast %383 : vector<1x16x512xf32> to vector<16x512xf32>
    %385 = arith.truncf %341 : vector<16x128xf32> to vector<16x128xbf16>
    %cst_120 = arith.constant dense<0.000000e+00> : vector<16x512xf32>
    %386 = tpu.matmul %385, %21, %cst_120 {dimension_numbers = #tpu.dot_dimension_numbers<[1], [0], [0], [1], [0, 0, 1, 1], [], []>} : vector<16x128xbf16>, vector<128x512xbf16>, vector<16x512xf32> -> vector<16x512xf32>
    %387 = arith.addf %384, %386 : vector<16x512xf32>
    %388 = vector.extract_strided_slice %387 {offsets = [0, 0], sizes = [16, 128], strides = [1, 1]} : vector<16x512xf32> to vector<16x128xf32>
    %389 = arith.negf %388 : vector<16x128xf32>
    %390 = math.exp %389 : vector<16x128xf32>
    %cst_121 = arith.constant 1.000000e+00 : f32
    %391 = vector.broadcast %cst_121 : f32 to vector<16x128xf32>
    %392 = arith.addf %391, %390 : vector<16x128xf32>
    %393 = arith.divf %391, %392 : vector<16x128xf32>
    %394 = vector.extract_strided_slice %387 {offsets = [0, 128], sizes = [16, 128], strides = [1, 1]} : vector<16x512xf32> to vector<16x128xf32>
    %395 = arith.negf %394 : vector<16x128xf32>
    %396 = math.exp %395 : vector<16x128xf32>
    %cst_122 = arith.constant 1.000000e+00 : f32
    %397 = vector.broadcast %cst_122 : f32 to vector<16x128xf32>
    %398 = arith.addf %397, %396 : vector<16x128xf32>
    %399 = arith.divf %397, %398 : vector<16x128xf32>
    %400 = vector.extract_strided_slice %387 {offsets = [0, 256], sizes = [16, 128], strides = [1, 1]} : vector<16x512xf32> to vector<16x128xf32>
    %401 = math.tanh %400 : vector<16x128xf32>
    %402 = vector.extract_strided_slice %387 {offsets = [0, 384], sizes = [16, 128], strides = [1, 1]} : vector<16x512xf32> to vector<16x128xf32>
    %403 = arith.negf %402 : vector<16x128xf32>
    %404 = math.exp %403 : vector<16x128xf32>
    %cst_123 = arith.constant 1.000000e+00 : f32
    %405 = vector.broadcast %cst_123 : f32 to vector<16x128xf32>
    %406 = arith.addf %405, %404 : vector<16x128xf32>
    %407 = arith.divf %405, %406 : vector<16x128xf32>
    %408 = arith.mulf %399, %339 : vector<16x128xf32>
    %409 = arith.mulf %393, %401 : vector<16x128xf32>
    %410 = arith.addf %408, %409 : vector<16x128xf32>
    %411 = math.tanh %410 : vector<16x128xf32>
    %412 = arith.mulf %407, %411 : vector<16x128xf32>
    %413 = arith.index_cast %c5_i32 : i32 to index
    %c0_124 = arith.constant 0 : index
    %c0_125 = arith.constant 0 : index
    %414 = vector.load %arg15[%413, %c0_124, %c0_125] : memref<8x16x128xf32, #tpu.memory_space<vmem>>, vector<1x16x128xf32>
    %415 = vector.shape_cast %414 : vector<1x16x128xf32> to vector<16x128xf32>
    %416 = vector.shape_cast %412 : vector<16x128xf32> to vector<1x16x128xf32>
    tpu.vector_store %arg15[%413, %c0_124, %c0_125], %416 {strides = array<i32>} : memref<8x16x128xf32, #tpu.memory_space<vmem>>, vector<1x16x128xf32>,
    %c7_i32_126 = arith.constant 7 : i32
    %417 = arith.subi %c7_i32_126, %c5_i32 : i32
    %418 = arith.index_cast %417 : i32 to index
    %c0_127 = arith.constant 0 : index
    %c0_128 = arith.constant 0 : index
    %419 = vector.load %arg24[%418, %c0_127, %c0_128] : memref<8x16x512xf32, #tpu.memory_space<vmem>>, vector<1x16x512xf32>
    %420 = vector.shape_cast %419 : vector<1x16x512xf32> to vector<16x512xf32>
    %421 = arith.truncf %377 : vector<16x128xf32> to vector<16x128xbf16>
    %cst_129 = arith.constant dense<0.000000e+00> : vector<16x512xf32>
    %422 = tpu.matmul %421, %22, %cst_129 {dimension_numbers = #tpu.dot_dimension_numbers<[1], [0], [0], [1], [0, 0, 1, 1], [], []>} : vector<16x128xbf16>, vector<128x512xbf16>, vector<16x512xf32> -> vector<16x512xf32>
    %423 = arith.addf %420, %422 : vector<16x512xf32>
    %424 = vector.extract_strided_slice %423 {offsets = [0, 0], sizes = [16, 128], strides = [1, 1]} : vector<16x512xf32> to vector<16x128xf32>
    %425 = arith.negf %424 : vector<16x128xf32>
    %426 = math.exp %425 : vector<16x128xf32>
    %cst_130 = arith.constant 1.000000e+00 : f32
    %427 = vector.broadcast %cst_130 : f32 to vector<16x128xf32>
    %428 = arith.addf %427, %426 : vector<16x128xf32>
    %429 = arith.divf %427, %428 : vector<16x128xf32>
    %430 = vector.extract_strided_slice %423 {offsets = [0, 128], sizes = [16, 128], strides = [1, 1]} : vector<16x512xf32> to vector<16x128xf32>
    %431 = arith.negf %430 : vector<16x128xf32>
    %432 = math.exp %431 : vector<16x128xf32>
    %cst_131 = arith.constant 1.000000e+00 : f32
    %433 = vector.broadcast %cst_131 : f32 to vector<16x128xf32>
    %434 = arith.addf %433, %432 : vector<16x128xf32>
    %435 = arith.divf %433, %434 : vector<16x128xf32>
    %436 = vector.extract_strided_slice %423 {offsets = [0, 256], sizes = [16, 128], strides = [1, 1]} : vector<16x512xf32> to vector<16x128xf32>
    %437 = math.tanh %436 : vector<16x128xf32>
    %438 = vector.extract_strided_slice %423 {offsets = [0, 384], sizes = [16, 128], strides = [1, 1]} : vector<16x512xf32> to vector<16x128xf32>
    %439 = arith.negf %438 : vector<16x128xf32>
    %440 = math.exp %439 : vector<16x128xf32>
    %cst_132 = arith.constant 1.000000e+00 : f32
    %441 = vector.broadcast %cst_132 : f32 to vector<16x128xf32>
    %442 = arith.addf %441, %440 : vector<16x128xf32>
    %443 = arith.divf %441, %442 : vector<16x128xf32>
    %444 = arith.mulf %435, %375 : vector<16x128xf32>
    %445 = arith.mulf %429, %437 : vector<16x128xf32>
    %446 = arith.addf %444, %445 : vector<16x128xf32>
    %447 = math.tanh %446 : vector<16x128xf32>
    %448 = arith.mulf %443, %447 : vector<16x128xf32>
    %449 = arith.index_cast %417 : i32 to index
    %c0_133 = arith.constant 0 : index
    %c0_134 = arith.constant 0 : index
    %450 = vector.load %arg16[%449, %c0_133, %c0_134] : memref<8x16x128xf32, #tpu.memory_space<vmem>>, vector<1x16x128xf32>
    %451 = vector.shape_cast %450 : vector<1x16x128xf32> to vector<16x128xf32>
    %452 = vector.shape_cast %448 : vector<16x128xf32> to vector<1x16x128xf32>
    tpu.vector_store %arg16[%449, %c0_133, %c0_134], %452 {strides = array<i32>} : memref<8x16x128xf32, #tpu.memory_space<vmem>>, vector<1x16x128xf32>,
    %c6_i32 = arith.constant 6 : i32
    %453 = arith.index_cast %c6_i32 : i32 to index
    %c0_135 = arith.constant 0 : index
    %c0_136 = arith.constant 0 : index
    %454 = vector.load %arg23[%453, %c0_135, %c0_136] : memref<8x16x512xf32, #tpu.memory_space<vmem>>, vector<1x16x512xf32>
    %455 = vector.shape_cast %454 : vector<1x16x512xf32> to vector<16x512xf32>
    %456 = arith.truncf %412 : vector<16x128xf32> to vector<16x128xbf16>
    %cst_137 = arith.constant dense<0.000000e+00> : vector<16x512xf32>
    %457 = tpu.matmul %456, %21, %cst_137 {dimension_numbers = #tpu.dot_dimension_numbers<[1], [0], [0], [1], [0, 0, 1, 1], [], []>} : vector<16x128xbf16>, vector<128x512xbf16>, vector<16x512xf32> -> vector<16x512xf32>
    %458 = arith.addf %455, %457 : vector<16x512xf32>
    %459 = vector.extract_strided_slice %458 {offsets = [0, 0], sizes = [16, 128], strides = [1, 1]} : vector<16x512xf32> to vector<16x128xf32>
    %460 = arith.negf %459 : vector<16x128xf32>
    %461 = math.exp %460 : vector<16x128xf32>
    %cst_138 = arith.constant 1.000000e+00 : f32
    %462 = vector.broadcast %cst_138 : f32 to vector<16x128xf32>
    %463 = arith.addf %462, %461 : vector<16x128xf32>
    %464 = arith.divf %462, %463 : vector<16x128xf32>
    %465 = vector.extract_strided_slice %458 {offsets = [0, 128], sizes = [16, 128], strides = [1, 1]} : vector<16x512xf32> to vector<16x128xf32>
    %466 = arith.negf %465 : vector<16x128xf32>
    %467 = math.exp %466 : vector<16x128xf32>
    %cst_139 = arith.constant 1.000000e+00 : f32
    %468 = vector.broadcast %cst_139 : f32 to vector<16x128xf32>
    %469 = arith.addf %468, %467 : vector<16x128xf32>
    %470 = arith.divf %468, %469 : vector<16x128xf32>
    %471 = vector.extract_strided_slice %458 {offsets = [0, 256], sizes = [16, 128], strides = [1, 1]} : vector<16x512xf32> to vector<16x128xf32>
    %472 = math.tanh %471 : vector<16x128xf32>
    %473 = vector.extract_strided_slice %458 {offsets = [0, 384], sizes = [16, 128], strides = [1, 1]} : vector<16x512xf32> to vector<16x128xf32>
    %474 = arith.negf %473 : vector<16x128xf32>
    %475 = math.exp %474 : vector<16x128xf32>
    %cst_140 = arith.constant 1.000000e+00 : f32
    %476 = vector.broadcast %cst_140 : f32 to vector<16x128xf32>
    %477 = arith.addf %476, %475 : vector<16x128xf32>
    %478 = arith.divf %476, %477 : vector<16x128xf32>
    %479 = arith.mulf %470, %410 : vector<16x128xf32>
    %480 = arith.mulf %464, %472 : vector<16x128xf32>
    %481 = arith.addf %479, %480 : vector<16x128xf32>
    %482 = math.tanh %481 : vector<16x128xf32>
    %483 = arith.mulf %478, %482 : vector<16x128xf32>
    %484 = arith.index_cast %c6_i32 : i32 to index
    %c0_141 = arith.constant 0 : index
    %c0_142 = arith.constant 0 : index
    %485 = vector.load %arg15[%484, %c0_141, %c0_142] : memref<8x16x128xf32, #tpu.memory_space<vmem>>, vector<1x16x128xf32>
    %486 = vector.shape_cast %485 : vector<1x16x128xf32> to vector<16x128xf32>
    %487 = vector.shape_cast %483 : vector<16x128xf32> to vector<1x16x128xf32>
    tpu.vector_store %arg15[%484, %c0_141, %c0_142], %487 {strides = array<i32>} : memref<8x16x128xf32, #tpu.memory_space<vmem>>, vector<1x16x128xf32>,
    %c7_i32_143 = arith.constant 7 : i32
    %488 = arith.subi %c7_i32_143, %c6_i32 : i32
    %489 = arith.index_cast %488 : i32 to index
    %c0_144 = arith.constant 0 : index
    %c0_145 = arith.constant 0 : index
    %490 = vector.load %arg24[%489, %c0_144, %c0_145] : memref<8x16x512xf32, #tpu.memory_space<vmem>>, vector<1x16x512xf32>
    %491 = vector.shape_cast %490 : vector<1x16x512xf32> to vector<16x512xf32>
    %492 = arith.truncf %448 : vector<16x128xf32> to vector<16x128xbf16>
    %cst_146 = arith.constant dense<0.000000e+00> : vector<16x512xf32>
    %493 = tpu.matmul %492, %22, %cst_146 {dimension_numbers = #tpu.dot_dimension_numbers<[1], [0], [0], [1], [0, 0, 1, 1], [], []>} : vector<16x128xbf16>, vector<128x512xbf16>, vector<16x512xf32> -> vector<16x512xf32>
    %494 = arith.addf %491, %493 : vector<16x512xf32>
    %495 = vector.extract_strided_slice %494 {offsets = [0, 0], sizes = [16, 128], strides = [1, 1]} : vector<16x512xf32> to vector<16x128xf32>
    %496 = arith.negf %495 : vector<16x128xf32>
    %497 = math.exp %496 : vector<16x128xf32>
    %cst_147 = arith.constant 1.000000e+00 : f32
    %498 = vector.broadcast %cst_147 : f32 to vector<16x128xf32>
    %499 = arith.addf %498, %497 : vector<16x128xf32>
    %500 = arith.divf %498, %499 : vector<16x128xf32>
    %501 = vector.extract_strided_slice %494 {offsets = [0, 128], sizes = [16, 128], strides = [1, 1]} : vector<16x512xf32> to vector<16x128xf32>
    %502 = arith.negf %501 : vector<16x128xf32>
    %503 = math.exp %502 : vector<16x128xf32>
    %cst_148 = arith.constant 1.000000e+00 : f32
    %504 = vector.broadcast %cst_148 : f32 to vector<16x128xf32>
    %505 = arith.addf %504, %503 : vector<16x128xf32>
    %506 = arith.divf %504, %505 : vector<16x128xf32>
    %507 = vector.extract_strided_slice %494 {offsets = [0, 256], sizes = [16, 128], strides = [1, 1]} : vector<16x512xf32> to vector<16x128xf32>
    %508 = math.tanh %507 : vector<16x128xf32>
    %509 = vector.extract_strided_slice %494 {offsets = [0, 384], sizes = [16, 128], strides = [1, 1]} : vector<16x512xf32> to vector<16x128xf32>
    %510 = arith.negf %509 : vector<16x128xf32>
    %511 = math.exp %510 : vector<16x128xf32>
    %cst_149 = arith.constant 1.000000e+00 : f32
    %512 = vector.broadcast %cst_149 : f32 to vector<16x128xf32>
    %513 = arith.addf %512, %511 : vector<16x128xf32>
    %514 = arith.divf %512, %513 : vector<16x128xf32>
    %515 = arith.mulf %506, %446 : vector<16x128xf32>
    %516 = arith.mulf %500, %508 : vector<16x128xf32>
    %517 = arith.addf %515, %516 : vector<16x128xf32>
    %518 = math.tanh %517 : vector<16x128xf32>
    %519 = arith.mulf %514, %518 : vector<16x128xf32>
    %520 = arith.index_cast %488 : i32 to index
    %c0_150 = arith.constant 0 : index
    %c0_151 = arith.constant 0 : index
    %521 = vector.load %arg16[%520, %c0_150, %c0_151] : memref<8x16x128xf32, #tpu.memory_space<vmem>>, vector<1x16x128xf32>
    %522 = vector.shape_cast %521 : vector<1x16x128xf32> to vector<16x128xf32>
    %523 = vector.shape_cast %519 : vector<16x128xf32> to vector<1x16x128xf32>
    tpu.vector_store %arg16[%520, %c0_150, %c0_151], %523 {strides = array<i32>} : memref<8x16x128xf32, #tpu.memory_space<vmem>>, vector<1x16x128xf32>,
    %c7_i32_152 = arith.constant 7 : i32
    %524 = arith.index_cast %c7_i32_152 : i32 to index
    %c0_153 = arith.constant 0 : index
    %c0_154 = arith.constant 0 : index
    %525 = vector.load %arg23[%524, %c0_153, %c0_154] : memref<8x16x512xf32, #tpu.memory_space<vmem>>, vector<1x16x512xf32>
    %526 = vector.shape_cast %525 : vector<1x16x512xf32> to vector<16x512xf32>
    %527 = arith.truncf %483 : vector<16x128xf32> to vector<16x128xbf16>
    %cst_155 = arith.constant dense<0.000000e+00> : vector<16x512xf32>
    %528 = tpu.matmul %527, %21, %cst_155 {dimension_numbers = #tpu.dot_dimension_numbers<[1], [0], [0], [1], [0, 0, 1, 1], [], []>} : vector<16x128xbf16>, vector<128x512xbf16>, vector<16x512xf32> -> vector<16x512xf32>
    %529 = arith.addf %526, %528 : vector<16x512xf32>
    %530 = vector.extract_strided_slice %529 {offsets = [0, 0], sizes = [16, 128], strides = [1, 1]} : vector<16x512xf32> to vector<16x128xf32>
    %531 = arith.negf %530 : vector<16x128xf32>
    %532 = math.exp %531 : vector<16x128xf32>
    %cst_156 = arith.constant 1.000000e+00 : f32
    %533 = vector.broadcast %cst_156 : f32 to vector<16x128xf32>
    %534 = arith.addf %533, %532 : vector<16x128xf32>
    %535 = arith.divf %533, %534 : vector<16x128xf32>
    %536 = vector.extract_strided_slice %529 {offsets = [0, 128], sizes = [16, 128], strides = [1, 1]} : vector<16x512xf32> to vector<16x128xf32>
    %537 = arith.negf %536 : vector<16x128xf32>
    %538 = math.exp %537 : vector<16x128xf32>
    %cst_157 = arith.constant 1.000000e+00 : f32
    %539 = vector.broadcast %cst_157 : f32 to vector<16x128xf32>
    %540 = arith.addf %539, %538 : vector<16x128xf32>
    %541 = arith.divf %539, %540 : vector<16x128xf32>
    %542 = vector.extract_strided_slice %529 {offsets = [0, 256], sizes = [16, 128], strides = [1, 1]} : vector<16x512xf32> to vector<16x128xf32>
    %543 = math.tanh %542 : vector<16x128xf32>
    %544 = vector.extract_strided_slice %529 {offsets = [0, 384], sizes = [16, 128], strides = [1, 1]} : vector<16x512xf32> to vector<16x128xf32>
    %545 = arith.negf %544 : vector<16x128xf32>
    %546 = math.exp %545 : vector<16x128xf32>
    %cst_158 = arith.constant 1.000000e+00 : f32
    %547 = vector.broadcast %cst_158 : f32 to vector<16x128xf32>
    %548 = arith.addf %547, %546 : vector<16x128xf32>
    %549 = arith.divf %547, %548 : vector<16x128xf32>
    %550 = arith.mulf %541, %481 : vector<16x128xf32>
    %551 = arith.mulf %535, %543 : vector<16x128xf32>
    %552 = arith.addf %550, %551 : vector<16x128xf32>
    %553 = math.tanh %552 : vector<16x128xf32>
    %554 = arith.mulf %549, %553 : vector<16x128xf32>
    %555 = arith.index_cast %c7_i32_152 : i32 to index
    %c0_159 = arith.constant 0 : index
    %c0_160 = arith.constant 0 : index
    %556 = vector.load %arg15[%555, %c0_159, %c0_160] : memref<8x16x128xf32, #tpu.memory_space<vmem>>, vector<1x16x128xf32>
    %557 = vector.shape_cast %556 : vector<1x16x128xf32> to vector<16x128xf32>
    %558 = vector.shape_cast %554 : vector<16x128xf32> to vector<1x16x128xf32>
    tpu.vector_store %arg15[%555, %c0_159, %c0_160], %558 {strides = array<i32>} : memref<8x16x128xf32, #tpu.memory_space<vmem>>, vector<1x16x128xf32>,
    %c7_i32_161 = arith.constant 7 : i32
    %559 = arith.subi %c7_i32_161, %c7_i32_152 : i32
    %560 = arith.index_cast %559 : i32 to index
    %c0_162 = arith.constant 0 : index
    %c0_163 = arith.constant 0 : index
    %561 = vector.load %arg24[%560, %c0_162, %c0_163] : memref<8x16x512xf32, #tpu.memory_space<vmem>>, vector<1x16x512xf32>
    %562 = vector.shape_cast %561 : vector<1x16x512xf32> to vector<16x512xf32>
    %563 = arith.truncf %519 : vector<16x128xf32> to vector<16x128xbf16>
    %cst_164 = arith.constant dense<0.000000e+00> : vector<16x512xf32>
    %564 = tpu.matmul %563, %22, %cst_164 {dimension_numbers = #tpu.dot_dimension_numbers<[1], [0], [0], [1], [0, 0, 1, 1], [], []>} : vector<16x128xbf16>, vector<128x512xbf16>, vector<16x512xf32> -> vector<16x512xf32>
    %565 = arith.addf %562, %564 : vector<16x512xf32>
    %566 = vector.extract_strided_slice %565 {offsets = [0, 0], sizes = [16, 128], strides = [1, 1]} : vector<16x512xf32> to vector<16x128xf32>
    %567 = arith.negf %566 : vector<16x128xf32>
    %568 = math.exp %567 : vector<16x128xf32>
    %cst_165 = arith.constant 1.000000e+00 : f32
    %569 = vector.broadcast %cst_165 : f32 to vector<16x128xf32>
    %570 = arith.addf %569, %568 : vector<16x128xf32>
    %571 = arith.divf %569, %570 : vector<16x128xf32>
    %572 = vector.extract_strided_slice %565 {offsets = [0, 128], sizes = [16, 128], strides = [1, 1]} : vector<16x512xf32> to vector<16x128xf32>
    %573 = arith.negf %572 : vector<16x128xf32>
    %574 = math.exp %573 : vector<16x128xf32>
    %cst_166 = arith.constant 1.000000e+00 : f32
    %575 = vector.broadcast %cst_166 : f32 to vector<16x128xf32>
    %576 = arith.addf %575, %574 : vector<16x128xf32>
    %577 = arith.divf %575, %576 : vector<16x128xf32>
    %578 = vector.extract_strided_slice %565 {offsets = [0, 256], sizes = [16, 128], strides = [1, 1]} : vector<16x512xf32> to vector<16x128xf32>
    %579 = math.tanh %578 : vector<16x128xf32>
    %580 = vector.extract_strided_slice %565 {offsets = [0, 384], sizes = [16, 128], strides = [1, 1]} : vector<16x512xf32> to vector<16x128xf32>
    %581 = arith.negf %580 : vector<16x128xf32>
    %582 = math.exp %581 : vector<16x128xf32>
    %cst_167 = arith.constant 1.000000e+00 : f32
    %583 = vector.broadcast %cst_167 : f32 to vector<16x128xf32>
    %584 = arith.addf %583, %582 : vector<16x128xf32>
    %585 = arith.divf %583, %584 : vector<16x128xf32>
    %586 = arith.mulf %577, %517 : vector<16x128xf32>
    %587 = arith.mulf %571, %579 : vector<16x128xf32>
    %588 = arith.addf %586, %587 : vector<16x128xf32>
    %589 = math.tanh %588 : vector<16x128xf32>
    %590 = arith.mulf %585, %589 : vector<16x128xf32>
    %591 = arith.index_cast %559 : i32 to index
    %c0_168 = arith.constant 0 : index
    %c0_169 = arith.constant 0 : index
    %592 = vector.load %arg16[%591, %c0_168, %c0_169] : memref<8x16x128xf32, #tpu.memory_space<vmem>>, vector<1x16x128xf32>
    %593 = vector.shape_cast %592 : vector<1x16x128xf32> to vector<16x128xf32>
    %594 = vector.shape_cast %590 : vector<16x128xf32> to vector<1x16x128xf32>
    tpu.vector_store %arg16[%591, %c0_168, %c0_169], %594 {strides = array<i32>} : memref<8x16x128xf32, #tpu.memory_space<vmem>>, vector<1x16x128xf32>,
    %c8_i32 = arith.constant 8 : i32
    %c0_170 = arith.constant 0 : index
    %c0_171 = arith.constant 0 : index
    %595 = vector.load %arg19[%c0_170, %c0_171] : memref<16x128xf32, #tpu.memory_space<vmem>>, vector<16x128xf32>
    tpu.vector_store %arg19[%c0_170, %c0_171], %554 {strides = array<i32>} : memref<16x128xf32, #tpu.memory_space<vmem>>, vector<16x128xf32>,
    %c0_172 = arith.constant 0 : index
    %c0_173 = arith.constant 0 : index
    %596 = vector.load %arg20[%c0_172, %c0_173] : memref<16x128xf32, #tpu.memory_space<vmem>>, vector<16x128xf32>
    tpu.vector_store %arg20[%c0_172, %c0_173], %552 {strides = array<i32>} : memref<16x128xf32, #tpu.memory_space<vmem>>, vector<16x128xf32>,
    %c0_174 = arith.constant 0 : index
    %c0_175 = arith.constant 0 : index
    %597 = vector.load %arg21[%c0_174, %c0_175] : memref<16x128xf32, #tpu.memory_space<vmem>>, vector<16x128xf32>
    tpu.vector_store %arg21[%c0_174, %c0_175], %590 {strides = array<i32>} : memref<16x128xf32, #tpu.memory_space<vmem>>, vector<16x128xf32>,
    %c0_176 = arith.constant 0 : index
    %c0_177 = arith.constant 0 : index
    %598 = vector.load %arg22[%c0_176, %c0_177] : memref<16x128xf32, #tpu.memory_space<vmem>>, vector<16x128xf32>
    tpu.vector_store %arg22[%c0_176, %c0_177], %588 {strides = array<i32>} : memref<16x128xf32, #tpu.memory_space<vmem>>, vector<16x128xf32>,
    %c0_i32_178 = arith.constant 0 : i32
    %599 = arith.cmpi eq, %arg0, %c0_i32_178 : i32
    %600 = arith.extui %599 : i1 to i32
    %c0_i32_179 = arith.constant 0 : i32
    %601 = arith.cmpi ne, %600, %c0_i32_179 : i32
    scf.if %601 {
      %602 = arith.truncf %554 : vector<16x128xf32> to vector<16x128xbf16>
      %603 = arith.truncf %590 : vector<16x128xf32> to vector<16x128xbf16>
      %604 = arith.truncf %552 : vector<16x128xf32> to vector<16x128xbf16>
      %605 = arith.truncf %588 : vector<16x128xf32> to vector<16x128xbf16>
      %c0_180 = arith.constant 0 : index
      %c0_181 = arith.constant 0 : index
      %606 = vector.load %arg9[%c0_180, %c0_181] : memref<128x128xbf16, #tpu.memory_space<vmem>>, vector<128x128xbf16>
      %cst_182 = arith.constant dense<0.000000e+00> : vector<16x128xf32>
      %607 = tpu.matmul %602, %606, %cst_182 {dimension_numbers = #tpu.dot_dimension_numbers<[1], [0], [0], [1], [0, 0, 1, 1], [], []>} : vector<16x128xbf16>, vector<128x128xbf16>, vector<16x128xf32> -> vector<16x128xf32>
      %c0_183 = arith.constant 0 : index
      %c0_184 = arith.constant 0 : index
      %608 = vector.load %arg10[%c0_183, %c0_184] : memref<128x128xbf16, #tpu.memory_space<vmem>>, vector<128x128xbf16>
      %cst_185 = arith.constant dense<0.000000e+00> : vector<16x128xf32>
      %609 = tpu.matmul %603, %608, %cst_185 {dimension_numbers = #tpu.dot_dimension_numbers<[1], [0], [0], [1], [0, 0, 1, 1], [], []>} : vector<16x128xbf16>, vector<128x128xbf16>, vector<16x128xf32> -> vector<16x128xf32>
      %610 = arith.addf %607, %609 : vector<16x128xf32>
      %c0_186 = arith.constant 0 : index
      %c0_187 = arith.constant 0 : index
      %611 = vector.load %arg11[%c0_186, %c0_187] : memref<1x128xf32, #tpu.memory_space<vmem>>, vector<1x128xf32>
      %612 = vector.broadcast %611 : vector<1x128xf32> to vector<16x128xf32>
      %613 = arith.addf %610, %612 : vector<16x128xf32>
      %c0_188 = arith.constant 0 : index
      %c0_189 = arith.constant 0 : index
      %614 = vector.load %arg17[%c0_188, %c0_189] : memref<16x128xf32, #tpu.memory_space<vmem>>, vector<16x128xf32>
      tpu.vector_store %arg17[%c0_188, %c0_189], %613 {strides = array<i32>} : memref<16x128xf32, #tpu.memory_space<vmem>>, vector<16x128xf32>,
      %c0_190 = arith.constant 0 : index
      %c0_191 = arith.constant 0 : index
      %615 = vector.load %arg12[%c0_190, %c0_191] : memref<128x128xbf16, #tpu.memory_space<vmem>>, vector<128x128xbf16>
      %cst_192 = arith.constant dense<0.000000e+00> : vector<16x128xf32>
      %616 = tpu.matmul %604, %615, %cst_192 {dimension_numbers = #tpu.dot_dimension_numbers<[1], [0], [0], [1], [0, 0, 1, 1], [], []>} : vector<16x128xbf16>, vector<128x128xbf16>, vector<16x128xf32> -> vector<16x128xf32>
      %c0_193 = arith.constant 0 : index
      %c0_194 = arith.constant 0 : index
      %617 = vector.load %arg13[%c0_193, %c0_194] : memref<128x128xbf16, #tpu.memory_space<vmem>>, vector<128x128xbf16>
      %cst_195 = arith.constant dense<0.000000e+00> : vector<16x128xf32>
      %618 = tpu.matmul %605, %617, %cst_195 {dimension_numbers = #tpu.dot_dimension_numbers<[1], [0], [0], [1], [0, 0, 1, 1], [], []>} : vector<16x128xbf16>, vector<128x128xbf16>, vector<16x128xf32> -> vector<16x128xf32>
      %619 = arith.addf %616, %618 : vector<16x128xf32>
      %c0_196 = arith.constant 0 : index
      %c0_197 = arith.constant 0 : index
      %620 = vector.load %arg14[%c0_196, %c0_197] : memref<1x128xf32, #tpu.memory_space<vmem>>, vector<1x128xf32>
      %621 = vector.broadcast %620 : vector<1x128xf32> to vector<16x128xf32>
      %622 = arith.addf %619, %621 : vector<16x128xf32>
      %c0_198 = arith.constant 0 : index
      %c0_199 = arith.constant 0 : index
      %623 = vector.load %arg18[%c0_198, %c0_199] : memref<16x128xf32, #tpu.memory_space<vmem>>, vector<16x128xf32>
      tpu.vector_store %arg18[%c0_198, %c0_199], %622 {strides = array<i32>} : memref<16x128xf32, #tpu.memory_space<vmem>>, vector<16x128xf32>,
    } else {
    }
    return
  }
  func.func @transform_0(%arg0: i32) -> (i32, i32, i32) {
    %c0_i32 = arith.constant 0 : i32
    %c0_i32_0 = arith.constant 0 : i32
    %c0_i32_1 = arith.constant 0 : i32
    return %arg0, %c0_i32, %c0_i32_0 : i32, i32, i32
  }
  func.func @transform_1(%arg0: i32) -> (i32, i32, i32) {
    %c0_i32 = arith.constant 0 : i32
    %0 = arith.subi %c0_i32, %arg0 : i32
    %c0_i32_0 = arith.constant 0 : i32
    %c0_i32_1 = arith.constant 0 : i32
    %c0_i32_2 = arith.constant 0 : i32
    return %0, %c0_i32_0, %c0_i32_1 : i32, i32, i32
  }
  func.func @transform_2(%arg0: i32) -> (i32, i32) {
    %c0_i32 = arith.constant 0 : i32
    %c0_i32_0 = arith.constant 0 : i32
    %c0_i32_1 = arith.constant 0 : i32
    return %c0_i32, %c0_i32_0 : i32, i32
  }
  func.func @transform_3(%arg0: i32) -> (i32, i32) {
    %c0_i32 = arith.constant 0 : i32
    %c0_i32_0 = arith.constant 0 : i32
    %c0_i32_1 = arith.constant 0 : i32
    return %c0_i32, %c0_i32_0 : i32, i32
  }
  func.func @transform_4(%arg0: i32) -> (i32, i32) {
    %c0_i32 = arith.constant 0 : i32
    %c0_i32_0 = arith.constant 0 : i32
    %c0_i32_1 = arith.constant 0 : i32
    return %c0_i32, %c0_i32_0 : i32, i32
  }
  func.func @transform_5(%arg0: i32) -> (i32, i32) {
    %c0_i32 = arith.constant 0 : i32
    %c0_i32_0 = arith.constant 0 : i32
    %c0_i32_1 = arith.constant 0 : i32
    return %c0_i32, %c0_i32_0 : i32, i32
  }
  func.func @transform_6(%arg0: i32) -> (i32, i32) {
    %c0_i32 = arith.constant 0 : i32
    %c0_i32_0 = arith.constant 0 : i32
    %c0_i32_1 = arith.constant 0 : i32
    return %c0_i32, %c0_i32_0 : i32, i32
  }
  func.func @transform_7(%arg0: i32) -> (i32, i32) {
    %c0_i32 = arith.constant 0 : i32
    %c0_i32_0 = arith.constant 0 : i32
    %c0_i32_1 = arith.constant 0 : i32
    return %c0_i32, %c0_i32_0 : i32, i32
  }
  func.func @transform_8(%arg0: i32) -> (i32, i32) {
    %c0_i32 = arith.constant 0 : i32
    %c0_i32_0 = arith.constant 0 : i32
    %c0_i32_1 = arith.constant 0 : i32
    return %c0_i32, %c0_i32_0 : i32, i32
  }
  func.func @transform_9(%arg0: i32) -> (i32, i32) {
    %c0_i32 = arith.constant 0 : i32
    %c0_i32_0 = arith.constant 0 : i32
    %c0_i32_1 = arith.constant 0 : i32
    return %c0_i32, %c0_i32_0 : i32, i32
  }
  func.func @transform_10(%arg0: i32) -> (i32, i32) {
    %c0_i32 = arith.constant 0 : i32
    %c0_i32_0 = arith.constant 0 : i32
    %c0_i32_1 = arith.constant 0 : i32
    return %c0_i32, %c0_i32_0 : i32, i32
  }
  func.func @transform_11(%arg0: i32) -> (i32, i32) {
    %c0_i32 = arith.constant 0 : i32
    %c0_i32_0 = arith.constant 0 : i32
    %c0_i32_1 = arith.constant 0 : i32
    return %c0_i32, %c0_i32_0 : i32, i32
  }
  func.func @transform_12(%arg0: i32) -> (i32, i32) {
    %c0_i32 = arith.constant 0 : i32
    %c0_i32_0 = arith.constant 0 : i32
    %c0_i32_1 = arith.constant 0 : i32
    return %c0_i32, %c0_i32_0 : i32, i32
  }
  func.func @transform_13(%arg0: i32) -> (i32, i32) {
    %c0_i32 = arith.constant 0 : i32
    %c0_i32_0 = arith.constant 0 : i32
    %c0_i32_1 = arith.constant 0 : i32
    return %c0_i32, %c0_i32_0 : i32, i32
  }
  func.func @transform_14(%arg0: i32) -> (i32, i32, i32) {
    %c0_i32 = arith.constant 0 : i32
    %c0_i32_0 = arith.constant 0 : i32
    %c0_i32_1 = arith.constant 0 : i32
    return %arg0, %c0_i32, %c0_i32_0 : i32, i32, i32
  }
  func.func @transform_15(%arg0: i32) -> (i32, i32, i32) {
    %c0_i32 = arith.constant 0 : i32
    %0 = arith.subi %c0_i32, %arg0 : i32
    %c0_i32_0 = arith.constant 0 : i32
    %c0_i32_1 = arith.constant 0 : i32
    %c0_i32_2 = arith.constant 0 : i32
    return %0, %c0_i32_0, %c0_i32_1 : i32, i32, i32
  }
  func.func @transform_16(%arg0: i32) -> (i32, i32) {
    %c0_i32 = arith.constant 0 : i32
    %c0_i32_0 = arith.constant 0 : i32
    %c0_i32_1 = arith.constant 0 : i32
    return %c0_i32, %c0_i32_0 : i32, i32
  }
  func.func @transform_17(%arg0: i32) -> (i32, i32) {
    %c0_i32 = arith.constant 0 : i32
    %c0_i32_0 = arith.constant 0 : i32
    %c0_i32_1 = arith.constant 0 : i32
    return %c0_i32, %c0_i32_0 : i32, i32
  }
}

</mosaic_0001>

<llo_original>
// kernel: lstm_encoder_forward.1
$region0: #{lstm_encoder_forward.1}
  #allocation0 [shape = 'u32[]', space=smem, size = 0x4, offset = 0x4, fixed_abs, tag = 'smem constant byte address 0x4 - core index']
  #allocation1 [shape = 'u32[144,128]{1,0:T(1,128)}', space=vmem, size = 0x12000, scoped, tag = 'internal scratch']
  #allocation2 [shape = 'f32[16,128]{1,0:T(8,128)}', space=vmem, size = 0x2000, scoped, tag = 'scratch operand']
  #allocation3 [shape = 'f32[16,128]{1,0:T(8,128)}', space=vmem, size = 0x2000, scoped, tag = 'scratch operand']
  #allocation4 [shape = 'f32[16,128]{1,0:T(8,128)}', space=vmem, size = 0x2000, scoped, tag = 'scratch operand']
  #allocation5 [shape = 'f32[16,128]{1,0:T(8,128)}', space=vmem, size = 0x2000, scoped, tag = 'scratch operand']
  #allocation6 [shape = 'f32[8,16,512]{2,1,0:T(8,128)}', space=vmem, size = 0x40000, scoped, tag = 'scratch operand']
  #allocation7 [shape = 'f32[8,16,512]{2,1,0:T(8,128)}', space=vmem, size = 0x40000, scoped, tag = 'scratch operand']
  %s0 = inlined_call_operand.vmem [shape: bf16[8,16,128], index: 0, kind: input, shape index: {}, may-alias: {0,1}]
  %s1 = inlined_call_operand.vmem [shape: bf16[8,16,128], index: 1, kind: input, shape index: {}, may-alias: {0,1}]
  %s2 = inlined_call_operand.vmem [shape: bf16[128,512], index: 2, kind: input, shape index: {}]
  %s3 = inlined_call_operand.vmem [shape: bf16[128,512], index: 3, kind: input, shape index: {}]
  %s4 = inlined_call_operand.vmem [shape: f32[1,512], index: 4, kind: input, shape index: {}]
  %s5 = inlined_call_operand.vmem [shape: f32[1,512], index: 5, kind: input, shape index: {}]
  %s6 = inlined_call_operand.vmem [shape: bf16[128,512], index: 6, kind: input, shape index: {}]
  %s7 = inlined_call_operand.vmem [shape: bf16[128,512], index: 7, kind: input, shape index: {}]
  %s8 = inlined_call_operand.vmem [shape: bf16[128,128], index: 8, kind: input, shape index: {}]
  %s9 = inlined_call_operand.vmem [shape: bf16[128,128], index: 9, kind: input, shape index: {}]
  %s10 = inlined_call_operand.vmem [shape: f32[1,128], index: 10, kind: input, shape index: {}]
  %s11 = inlined_call_operand.vmem [shape: bf16[128,128], index: 11, kind: input, shape index: {}]
  %s12 = inlined_call_operand.vmem [shape: bf16[128,128], index: 12, kind: input, shape index: {}]
  %s13 = inlined_call_operand.vmem [shape: f32[1,128], index: 13, kind: input, shape index: {}]
  %s14 = inlined_call_operand.vmem [shape: f32[8,16,128], index: 14, kind: output, shape index: {0}]
  %s15 = inlined_call_operand.vmem [shape: f32[8,16,128], index: 15, kind: output, shape index: {1}]
  %s16 = inlined_call_operand.vmem [shape: f32[16,128], index: 16, kind: output, shape index: {2}]
  %s17 = inlined_call_operand.vmem [shape: f32[16,128], index: 17, kind: output, shape index: {3}]
  %18 = xla_tuple %s14, %s15, %s16, %s17
  %s19 = sld [smem:[#allocation0]]
  $region98: #{lstm_encoder_forward.1} parent=0
    _
  %s21 = ssub.s32 1, %s19
  %s22 = scalar_select 0, %s21, %s19
  // Predicated region
  $region2: #{lstm_encoder_forward.1} parent=0 // pred_check
    _
  $region3: #{lstm_encoder_forward.1} parent=0 // pred_check_branch
    %24 = sbr.rel (0) target = $region5
  $region4: #{lstm_encoder_forward.1} parent=0 // pred_region
    _
  $region5: #{lstm_encoder_forward.1} parent=0 // pred_fallthru
    _
  // Predicated region
  $region6: #{lstm_encoder_forward.1} parent=0 // pred_check
    _
  $region7: #{lstm_encoder_forward.1} parent=0 // pred_check_branch
    %26 = sbr.rel (0) target = $region9
  $region8: #{lstm_encoder_forward.1} parent=0 // pred_region
    %s27 = ssub.s32 0, 0
    %s28 = smul.u32 8, %s27
    %p29 = scmp.lt.s32.totalorder %s28, 7
    %s30 = scalar_select %p29, %s28, 7
    %s31 = smul.addr %s30, 2
    %s32 = smul.addr %s31, 4
    %s33 = scalar_lea.vmem %s1, %s32
    %s34 = ssub.s32 0, 0
    %s35 = smul.u32 8, %s34
  $region9: #{lstm_encoder_forward.1} parent=0 // pred_fallthru
    _
  // Predicated region
  $region10: #{lstm_encoder_forward.1} parent=0 // pred_check
    _
  $region11: #{lstm_encoder_forward.1} parent=0 // pred_check_branch
    %37 = sbr.rel (0) target = $region13
  $region12: #{lstm_encoder_forward.1} parent=0 // pred_region
    _
  $region13: #{lstm_encoder_forward.1} parent=0 // pred_fallthru
    _
  // Predicated region
  $region14: #{lstm_encoder_forward.1} parent=0 // pred_check
    _
  $region15: #{lstm_encoder_forward.1} parent=0 // pred_check_branch
    %39 = sbr.rel (0) target = $region17
  $region16: #{lstm_encoder_forward.1} parent=0 // pred_region
    _
  $region17: #{lstm_encoder_forward.1} parent=0 // pred_fallthru
    _
  // Predicated region
  $region18: #{lstm_encoder_forward.1} parent=0 // pred_check
    _
  $region19: #{lstm_encoder_forward.1} parent=0 // pred_check_branch
    %41 = sbr.rel (0) target = $region21
  $region20: #{lstm_encoder_forward.1} parent=0 // pred_region
    _
  $region21: #{lstm_encoder_forward.1} parent=0 // pred_fallthru
    _
  // Predicated region
  $region22: #{lstm_encoder_forward.1} parent=0 // pred_check
    _
  $region23: #{lstm_encoder_forward.1} parent=0 // pred_check_branch
    %43 = sbr.rel (0) target = $region25
  $region24: #{lstm_encoder_forward.1} parent=0 // pred_region
    _
  $region25: #{lstm_encoder_forward.1} parent=0 // pred_fallthru
    _
  // Predicated region
  $region26: #{lstm_encoder_forward.1} parent=0 // pred_check
    _
  $region27: #{lstm_encoder_forward.1} parent=0 // pred_check_branch
    %45 = sbr.rel (0) target = $region29
  $region28: #{lstm_encoder_forward.1} parent=0 // pred_region
    _
  $region29: #{lstm_encoder_forward.1} parent=0 // pred_fallthru
    _
  // Predicated region
  $region30: #{lstm_encoder_forward.1} parent=0 // pred_check
    _
  $region31: #{lstm_encoder_forward.1} parent=0 // pred_check_branch
    %47 = sbr.rel (0) target = $region33
  $region32: #{lstm_encoder_forward.1} parent=0 // pred_region
    _
  $region33: #{lstm_encoder_forward.1} parent=0 // pred_fallthru
    _
  // Predicated region
  $region34: #{lstm_encoder_forward.1} parent=0 // pred_check
    _
  $region35: #{lstm_encoder_forward.1} parent=0 // pred_check_branch
    %49 = sbr.rel (0) target = $region37
  $region36: #{lstm_encoder_forward.1} parent=0 // pred_region
    _
  $region37: #{lstm_encoder_forward.1} parent=0 // pred_fallthru
    _
  // Predicated region
  $region38: #{lstm_encoder_forward.1} parent=0 // pred_check
    _
  $region39: #{lstm_encoder_forward.1} parent=0 // pred_check_branch
    %51 = sbr.rel (0) target = $region41
  $region40: #{lstm_encoder_forward.1} parent=0 // pred_region
    _
  $region41: #{lstm_encoder_forward.1} parent=0 // pred_fallthru
    _
  // Predicated region
  $region42: #{lstm_encoder_forward.1} parent=0 // pred_check
    _
  $region43: #{lstm_encoder_forward.1} parent=0 // pred_check_branch
    %53 = sbr.rel (0) target = $region45
  $region44: #{lstm_encoder_forward.1} parent=0 // pred_region
    _
  $region45: #{lstm_encoder_forward.1} parent=0 // pred_fallthru
    _
  // Predicated region
  $region46: #{lstm_encoder_forward.1} parent=0 // pred_check
    _
  $region47: #{lstm_encoder_forward.1} parent=0 // pred_check_branch
    %55 = sbr.rel (0) target = $region49
  $region48: #{lstm_encoder_forward.1} parent=0 // pred_region
    _
  $region49: #{lstm_encoder_forward.1} parent=0 // pred_fallthru
    _
  // Predicated region
  $region50: #{lstm_encoder_forward.1} parent=0 // pred_check
    _
  $region51: #{lstm_encoder_forward.1} parent=0 // pred_check_branch
    %57 = sbr.rel (0) target = $region53
  $region52: #{lstm_encoder_forward.1} parent=0 // pred_region
    _
  $region53: #{lstm_encoder_forward.1} parent=0 // pred_fallthru
    _
  // Predicated region
  $region54: #{lstm_encoder_forward.1} parent=0 // pred_check
    _
  $region55: #{lstm_encoder_forward.1} parent=0 // pred_check_branch
    %59 = sbr.rel (0) target = $region57
  $region56: #{lstm_encoder_forward.1} parent=0 // pred_region
    _
  $region57: #{lstm_encoder_forward.1} parent=0 // pred_fallthru
    _
  %s60 = ssub.s32 0, 0
  %s61 = smul.u32 8, %s60
  %p62 = scmp.lt.s32.totalorder %s61, 7
  %s63 = scalar_select %p62, %s61, 7
  %s64 = smul.addr %s63, 2
  %s65 = smul.addr %s64, 4
  %s66 = scalar_lea.vmem %s1, %s65
  %s67 = ssub.s32 0, 0
  %s68 = smul.u32 8, %s67
  %p69 = scmp.lt.s32.totalorder %s68, 7
  %s70 = scalar_select %p69, %s68, 7
  %s71 = smul.addr %s70, 2
  %s72 = smul.addr %s71, 8
  %s73 = scalar_lea.vmem %s15, %s72
  %s74 = ssub.s32 0, 0
  %s75 = smul.u32 8, %s74
  %p76 = scmp.lt.s32.totalorder %s75, 7
  %s77 = scalar_select %p76, %s75, 7
  %s78 = smul.addr %s77, 2
  %s79 = smul.addr %s78, 4
  %s80 = scalar_lea.vmem %s1, %s79
  %s81 = ssub.s32 0, 0
  %s82 = smul.u32 8, %s81
  %s83 = ssub.s32 0, 0
  %s84 = smul.u32 8, %s83
  %p85 = scmp.lt.s32.totalorder %s84, 7
  %s86 = scalar_select %p85, %s84, 7
  %s87 = smul.addr %s86, 2
  %s88 = smul.addr %s87, 8
  %s89 = scalar_lea.vmem %s15, %s88
  %s90 = ssub.s32 0, 0
  %s91 = smul.u32 8, %s90
  %p93 = scmp.eq.s32.totalorder 0, 0
  // Predicated region
  $region58: #{lstm_encoder_forward.1} parent=0 // pred_check
    %p94 = pneg %p93
  $region59: #{lstm_encoder_forward.1} parent=0 // pred_check_branch
    %96 = sbr.rel (%p94) target = $region61
  $region60: #{lstm_encoder_forward.1} parent=0 // pred_region
    %97 = vst [vmem:[#allocation2] sm:$0xff] 0.0
    %98 = vst [vmem:[#allocation2 + $0x8] sm:$0xff] 0.0
    %99 = vst [vmem:[#allocation3] sm:$0xff] 0.0
    %100 = vst [vmem:[#allocation3 + $0x8] sm:$0xff] 0.0
    %101 = vst [vmem:[#allocation4] sm:$0xff] 0.0
    %102 = vst [vmem:[#allocation4 + $0x8] sm:$0xff] 0.0
    %103 = vst [vmem:[#allocation5] sm:$0xff] 0.0
    %104 = vst [vmem:[#allocation5 + $0x8] sm:$0xff] 0.0
  $region61: #{lstm_encoder_forward.1} parent=0 // pred_fallthru
    _
  %v105 = vld [vmem:[%s0] sm:$0xf]
  %v106 = vld [vmem:[%s0 + $0x4] sm:$0xf]
  %v107 = vld [vmem:[%s0 + $0x8] sm:$0xf]
  %v108 = vld [vmem:[%s0 + $0xc] sm:$0xf]
  %v109 = vld [vmem:[%s0 + $0x10] sm:$0xf]
  %v110 = vld [vmem:[%s0 + $0x14] sm:$0xf]
  %v111 = vld [vmem:[%s0 + $0x18] sm:$0xf]
  %v112 = vld [vmem:[%s0 + $0x1c] sm:$0xf]
  %v113 = vld [vmem:[%s0 + $0x20] sm:$0xf]
  %v114 = vld [vmem:[%s0 + $0x24] sm:$0xf]
  %v115 = vld [vmem:[%s0 + $0x28] sm:$0xf]
  %v116 = vld [vmem:[%s0 + $0x2c] sm:$0xf]
  %v117 = vld [vmem:[%s0 + $0x30] sm:$0xf]
  %v118 = vld [vmem:[%s0 + $0x34] sm:$0xf]
  %v119 = vld [vmem:[%s0 + $0x38] sm:$0xf]
  %v120 = vld [vmem:[%s0 + $0x3c] sm:$0xf]
  %v121 = vld [vmem:[%s80] sm:$0xf]
  %v122 = vld [vmem:[%s80 + $0x4] sm:$0xf]
  %v123 = vld [vmem:[%s80 + $0x8] sm:$0xf]
  %v124 = vld [vmem:[%s80 + $0xc] sm:$0xf]
  %v125 = vld [vmem:[%s80 + $0x10] sm:$0xf]
  %v126 = vld [vmem:[%s80 + $0x14] sm:$0xf]
  %v127 = vld [vmem:[%s80 + $0x18] sm:$0xf]
  %v128 = vld [vmem:[%s80 + $0x1c] sm:$0xf]
  %v129 = vld [vmem:[%s80 + $0x20] sm:$0xf]
  %v130 = vld [vmem:[%s80 + $0x24] sm:$0xf]
  %v131 = vld [vmem:[%s80 + $0x28] sm:$0xf]
  %v132 = vld [vmem:[%s80 + $0x2c] sm:$0xf]
  %v133 = vld [vmem:[%s80 + $0x30] sm:$0xf]
  %v134 = vld [vmem:[%s80 + $0x34] sm:$0xf]
  %v135 = vld [vmem:[%s80 + $0x38] sm:$0xf]
  %v136 = vld [vmem:[%s80 + $0x3c] sm:$0xf]
  %v137 = vld [vmem:[%s2] sm:$0xff]
  %v138 = vld [vmem:[%s2 + $0x8] sm:$0xff]
  %v139 = vld [vmem:[%s2 + $0x10] sm:$0xff]
  %v140 = vld [vmem:[%s2 + $0x18] sm:$0xff]
  %v141 = vld [vmem:[%s2 + $0x20] sm:$0xff]
  %v142 = vld [vmem:[%s2 + $0x28] sm:$0xff]
  %v143 = vld [vmem:[%s2 + $0x30] sm:$0xff]
  %v144 = vld [vmem:[%s2 + $0x38] sm:$0xff]
  %v145 = vld [vmem:[%s2 + $0x40] sm:$0xff]
  %v146 = vld [vmem:[%s2 + $0x48] sm:$0xff]
  %v147 = vld [vmem:[%s2 + $0x50] sm:$0xff]
  %v148 = vld [vmem:[%s2 + $0x58] sm:$0xff]
  %v149 = vld [vmem:[%s2 + $0x60] sm:$0xff]
  %v150 = vld [vmem:[%s2 + $0x68] sm:$0xff]
  %v151 = vld [vmem:[%s2 + $0x70] sm:$0xff]
  %v152 = vld [vmem:[%s2 + $0x78] sm:$0xff]
  %v153 = vld [vmem:[%s2 + $0x80] sm:$0xff]
  %v154 = vld [vmem:[%s2 + $0x88] sm:$0xff]
  %v155 = vld [vmem:[%s2 + $0x90] sm:$0xff]
  %v156 = vld [vmem:[%s2 + $0x98] sm:$0xff]
  %v157 = vld [vmem:[%s2 + $0xa0] sm:$0xff]
  %v158 = vld [vmem:[%s2 + $0xa8] sm:$0xff]
  %v159 = vld [vmem:[%s2 + $0xb0] sm:$0xff]
  %v160 = vld [vmem:[%s2 + $0xb8] sm:$0xff]
  %v161 = vld [vmem:[%s2 + $0xc0] sm:$0xff]
  %v162 = vld [vmem:[%s2 + $0xc8] sm:$0xff]
  %v163 = vld [vmem:[%s2 + $0xd0] sm:$0xff]
  %v164 = vld [vmem:[%s2 + $0xd8] sm:$0xff]
  %v165 = vld [vmem:[%s2 + $0xe0] sm:$0xff]
  %v166 = vld [vmem:[%s2 + $0xe8] sm:$0xff]
  %v167 = vld [vmem:[%s2 + $0xf0] sm:$0xff]
  %v168 = vld [vmem:[%s2 + $0xf8] sm:$0xff]
  %v169 = vld [vmem:[%s4] sm:$0xf]
  %v171 = vlaneseq
  %v172 = vshrl.u32 %v171, 7
  %v173 = vsub.s32 0, %v172
  %v174 = vrot.slane %v169, %v173
  %v175 = vlaneseq
  %v176 = vshrl.u32 %v175, 7
  %v177 = vsub.s32 1, %v176
  %v178 = vrot.slane %v169, %v177
  %v179 = vlaneseq
  %v180 = vshrl.u32 %v179, 7
  %v181 = vsub.s32 2, %v180
  %v182 = vrot.slane %v169, %v181
  %v183 = vlaneseq
  %v184 = vshrl.u32 %v183, 7
  %v185 = vsub.s32 3, %v184
  %v186 = vrot.slane %v169, %v185
  %v207 = vunpack.c.l.b16 %v105
  %v208 = vunpack.c.l.b16 %v106
  %v209 = vunpack.c.l.b16 %v107
  %v210 = vunpack.c.l.b16 %v108
  %v211 = vunpack.c.l.b16 %v109
  %v212 = vunpack.c.l.b16 %v110
  %v213 = vunpack.c.l.b16 %v111
  %v214 = vunpack.c.l.b16 %v112
  %v215 = vunpack.c.l.b16 %v113
  %v216 = vunpack.c.l.b16 %v114
  %v217 = vunpack.c.l.b16 %v115
  %v218 = vunpack.c.l.b16 %v116
  %v219 = vunpack.c.l.b16 %v117
  %v220 = vunpack.c.l.b16 %v118
  %v221 = vunpack.c.l.b16 %v119
  %v222 = vunpack.c.l.b16 %v120
  %v223 = vpack.c.b16 %v208, %v207
  %v224 = vpack.c.b16 %v210, %v209
  %v225 = vpack.c.b16 %v212, %v211
  %v226 = vpack.c.b16 %v214, %v213
  %v227 = vpack.c.b16 %v216, %v215
  %v228 = vpack.c.b16 %v218, %v217
  %v229 = vpack.c.b16 %v220, %v219
  %v230 = vpack.c.b16 %v222, %v221
  %v271 = vunpack.c.l.b16 %v137
  %v272 = vunpack.c.h.b16 %v137
  %v273 = vunpack.c.l.b16 %v138
  %v274 = vunpack.c.h.b16 %v138
  %v275 = vunpack.c.l.b16 %v139
  %v276 = vunpack.c.h.b16 %v139
  %v277 = vunpack.c.l.b16 %v140
  %v278 = vunpack.c.h.b16 %v140
  %v279 = vunpack.c.l.b16 %v141
  %v280 = vunpack.c.h.b16 %v141
  %v281 = vunpack.c.l.b16 %v142
  %v282 = vunpack.c.h.b16 %v142
  %v283 = vunpack.c.l.b16 %v143
  %v284 = vunpack.c.h.b16 %v143
  %v285 = vunpack.c.l.b16 %v144
  %v286 = vunpack.c.h.b16 %v144
  %v287 = vunpack.c.l.b16 %v145
  %v288 = vunpack.c.h.b16 %v145
  %v289 = vunpack.c.l.b16 %v146
  %v290 = vunpack.c.h.b16 %v146
  %v291 = vunpack.c.l.b16 %v147
  %v292 = vunpack.c.h.b16 %v147
  %v293 = vunpack.c.l.b16 %v148
  %v294 = vunpack.c.h.b16 %v148
  %v295 = vunpack.c.l.b16 %v149
  %v296 = vunpack.c.h.b16 %v149
  %v297 = vunpack.c.l.b16 %v150
  %v298 = vunpack.c.h.b16 %v150
  %v299 = vunpack.c.l.b16 %v151
  %v300 = vunpack.c.h.b16 %v151
  %v301 = vunpack.c.l.b16 %v152
  %v302 = vunpack.c.h.b16 %v152
  %v303 = vunpack.c.l.b16 %v153
  %v304 = vunpack.c.h.b16 %v153
  %v305 = vunpack.c.l.b16 %v154
  %v306 = vunpack.c.h.b16 %v154
  %v307 = vunpack.c.l.b16 %v155
  %v308 = vunpack.c.h.b16 %v155
  %v309 = vunpack.c.l.b16 %v156
  %v310 = vunpack.c.h.b16 %v156
  %v311 = vunpack.c.l.b16 %v157
  %v312 = vunpack.c.h.b16 %v157
  %v313 = vunpack.c.l.b16 %v158
  %v314 = vunpack.c.h.b16 %v158
  %v315 = vunpack.c.l.b16 %v159
  %v316 = vunpack.c.h.b16 %v159
  %v317 = vunpack.c.l.b16 %v160
  %v318 = vunpack.c.h.b16 %v160
  %v319 = vunpack.c.l.b16 %v161
  %v320 = vunpack.c.h.b16 %v161
  %v321 = vunpack.c.l.b16 %v162
  %v322 = vunpack.c.h.b16 %v162
  %v323 = vunpack.c.l.b16 %v163
  %v324 = vunpack.c.h.b16 %v163
  %v325 = vunpack.c.l.b16 %v164
  %v326 = vunpack.c.h.b16 %v164
  %v327 = vunpack.c.l.b16 %v165
  %v328 = vunpack.c.h.b16 %v165
  %v329 = vunpack.c.l.b16 %v166
  %v330 = vunpack.c.h.b16 %v166
  %v331 = vunpack.c.l.b16 %v167
  %v332 = vunpack.c.h.b16 %v167
  %v333 = vunpack.c.l.b16 %v168
  %v334 = vunpack.c.h.b16 %v168
  %v335 = vpack.c.b16 %v275, %v271
  %v336 = vpack.c.b16 %v276, %v272
  %v337 = vpack.c.b16 %v277, %v273
  %v338 = vpack.c.b16 %v278, %v274
  %v339 = vpack.c.b16 %v283, %v279
  %v340 = vpack.c.b16 %v284, %v280
  %v341 = vpack.c.b16 %v285, %v281
  %v342 = vpack.c.b16 %v286, %v282
  %v343 = vpack.c.b16 %v291, %v287
  %v344 = vpack.c.b16 %v292, %v288
  %v345 = vpack.c.b16 %v293, %v289
  %v346 = vpack.c.b16 %v294, %v290
  %v347 = vpack.c.b16 %v299, %v295
  %v348 = vpack.c.b16 %v300, %v296
  %v349 = vpack.c.b16 %v301, %v297
  %v350 = vpack.c.b16 %v302, %v298
  %v351 = vpack.c.b16 %v307, %v303
  %v352 = vpack.c.b16 %v308, %v304
  %v353 = vpack.c.b16 %v309, %v305
  %v354 = vpack.c.b16 %v310, %v306
  %v355 = vpack.c.b16 %v315, %v311
  %v356 = vpack.c.b16 %v316, %v312
  %v357 = vpack.c.b16 %v317, %v313
  %v358 = vpack.c.b16 %v318, %v314
  %v359 = vpack.c.b16 %v323, %v319
  %v360 = vpack.c.b16 %v324, %v320
  %v361 = vpack.c.b16 %v325, %v321
  %v362 = vpack.c.b16 %v326, %v322
  %v363 = vpack.c.b16 %v331, %v327
  %v364 = vpack.c.b16 %v332, %v328
  %v365 = vpack.c.b16 %v333, %v329
  %v366 = vpack.c.b16 %v334, %v330
  %399 = vmatprep.subr.bf16.mxu0 %v336
  %400 = vmatpush1.bf16.msra.mxu0 %v335
  %401 = vmatprep.subr.bf16.mxu0 %v340
  %402 = vmatpush1.bf16.msra.mxu0 %v339
  %403 = vmatprep.subr.bf16.mxu0 %v344
  %404 = vmatpush1.bf16.msra.mxu0 %v343
  %405 = vmatprep.subr.bf16.mxu0 %v348
  %406 = vmatpush1.bf16.msra.mxu0 %v347
  %407 = vmatprep.subr.bf16.mxu0 %v352
  %408 = vmatpush1.bf16.msra.mxu0 %v351
  %409 = vmatprep.subr.bf16.mxu0 %v356
  %410 = vmatpush1.bf16.msra.mxu0 %v355
  %411 = vmatprep.subr.bf16.mxu0 %v360
  %412 = vmatpush1.bf16.msra.mxu0 %v359
  %413 = vmatprep.subr.bf16.mxu0 %v364
  %414 = vmatpush1.bf16.msra.mxu0 %v363
  %415 = vmatprep.subr.bf16.mxu0 0
  %416 = vmatpush1.bf16.msra.mxu0 0
  %417 = vmatprep.subr.bf16.mxu0 0
  %418 = vmatpush1.bf16.msra.mxu0 0
  %419 = vmatprep.subr.bf16.mxu0 0
  %420 = vmatpush1.bf16.msra.mxu0 0
  %421 = vmatprep.subr.bf16.mxu0 0
  %422 = vmatpush1.bf16.msra.mxu0 0
  %423 = vmatprep.subr.bf16.mxu0 0
  %424 = vmatpush1.bf16.msra.mxu0 0
  %425 = vmatprep.subr.bf16.mxu0 0
  %426 = vmatpush1.bf16.msra.mxu0 0
  %427 = vmatprep.subr.bf16.mxu0 0
  %428 = vmatpush1.bf16.msra.mxu0 0
  %429 = vmatprep.subr.bf16.mxu0 0
  %430 = vmatpush1.bf16.msra.mxu0 0
  %431 = vmatprep.mubr.bf16.mxu0 0
  %432 = vmatmul.mubr.bf16.gmra.mrb[0].mxu0 %v223
  %v433 = vpop.f32.mrb[0].mxu0
  %v434 = vadd.f32 %v174, %v433
  %v435 = vpop.f32.mrb[0].mxu0
  %v436 = vadd.f32 %v178, %v435
  %v437 = vpop.f32.mrb[0].mxu0
  %v438 = vadd.f32 %v174, %v437
  %v439 = vpop.f32.mrb[0].mxu0
  %v440 = vadd.f32 %v178, %v439
  %441 = vmatprep.mubr.bf16.mxu0 0
  %442 = vmatmul.mubr.bf16.gmra.mrb[0].mxu0 %v224
  %v443 = vpop.f32.mrb[0].mxu0
  %v444 = vadd.f32 %v174, %v443
  %v445 = vpop.f32.mrb[0].mxu0
  %v446 = vadd.f32 %v178, %v445
  %v447 = vpop.f32.mrb[0].mxu0
  %v448 = vadd.f32 %v174, %v447
  %v449 = vpop.f32.mrb[0].mxu0
  %v450 = vadd.f32 %v178, %v449
  %451 = vmatprep.mubr.bf16.mxu0 0
  %452 = vmatmul.mubr.bf16.gmra.mrb[0].mxu0 %v225
  %v453 = vpop.f32.mrb[0].mxu0
  %v454 = vadd.f32 %v174, %v453
  %v455 = vpop.f32.mrb[0].mxu0
  %v456 = vadd.f32 %v178, %v455
  %v457 = vpop.f32.mrb[0].mxu0
  %v458 = vadd.f32 %v174, %v457
  %v459 = vpop.f32.mrb[0].mxu0
  %v460 = vadd.f32 %v178, %v459
  %461 = vmatprep.mubr.bf16.mxu0 0
  %462 = vmatmul.mubr.bf16.gmra.mrb[0].mxu0 %v226
  %v463 = vpop.f32.mrb[0].mxu0
  %v464 = vadd.f32 %v174, %v463
  %v465 = vpop.f32.mrb[0].mxu0
  %v466 = vadd.f32 %v178, %v465
  %v467 = vpop.f32.mrb[0].mxu0
  %v468 = vadd.f32 %v174, %v467
  %v469 = vpop.f32.mrb[0].mxu0
  %v470 = vadd.f32 %v178, %v469
  %471 = vmatprep.mubr.bf16.mxu0 0
  %472 = vmatmul.mubr.bf16.gmra.mrb[0].mxu0 %v227
  %v473 = vpop.f32.mrb[0].mxu0
  %v474 = vadd.f32 %v174, %v473
  %v475 = vpop.f32.mrb[0].mxu0
  %v476 = vadd.f32 %v178, %v475
  %v477 = vpop.f32.mrb[0].mxu0
  %v478 = vadd.f32 %v174, %v477
  %v479 = vpop.f32.mrb[0].mxu0
  %v480 = vadd.f32 %v178, %v479
  %481 = vmatprep.mubr.bf16.mxu0 0
  %482 = vmatmul.mubr.bf16.gmra.mrb[0].mxu0 %v228
  %v483 = vpop.f32.mrb[0].mxu0
  %v484 = vadd.f32 %v174, %v483
  %v485 = vpop.f32.mrb[0].mxu0
  %v486 = vadd.f32 %v178, %v485
  %v487 = vpop.f32.mrb[0].mxu0
  %v488 = vadd.f32 %v174, %v487
  %v489 = vpop.f32.mrb[0].mxu0
  %v490 = vadd.f32 %v178, %v489
  %491 = vmatprep.mubr.bf16.mxu0 0
  %492 = vmatmul.mubr.bf16.gmra.mrb[0].mxu0 %v229
  %v493 = vpop.f32.mrb[0].mxu0
  %v494 = vadd.f32 %v174, %v493
  %v495 = vpop.f32.mrb[0].mxu0
  %v496 = vadd.f32 %v178, %v495
  %v497 = vpop.f32.mrb[0].mxu0
  %v498 = vadd.f32 %v174, %v497
  %v499 = vpop.f32.mrb[0].mxu0
  %v500 = vadd.f32 %v178, %v499
  %501 = vmatprep.mubr.bf16.mxu0 0
  %502 = vmatmul.mubr.bf16.gmra.mrb[0].mxu0 %v230
  %v503 = vpop.f32.mrb[0].mxu0
  %v504 = vadd.f32 %v174, %v503
  %v505 = vpop.f32.mrb[0].mxu0
  %v506 = vadd.f32 %v178, %v505
  %v507 = vpop.f32.mrb[0].mxu0
  %v508 = vadd.f32 %v174, %v507
  %v509 = vpop.f32.mrb[0].mxu0
  %v510 = vadd.f32 %v178, %v509
  %511 = vdwg.mxu0
  %512 = vmatprep.subr.bf16.mxu0 %v338
  %513 = vmatpush1.bf16.msra.mxu0 %v337
  %514 = vmatprep.subr.bf16.mxu0 %v342
  %515 = vmatpush1.bf16.msra.mxu0 %v341
  %516 = vmatprep.subr.bf16.mxu0 %v346
  %517 = vmatpush1.bf16.msra.mxu0 %v345
  %518 = vmatprep.subr.bf16.mxu0 %v350
  %519 = vmatpush1.bf16.msra.mxu0 %v349
  %520 = vmatprep.subr.bf16.mxu0 %v354
  %521 = vmatpush1.bf16.msra.mxu0 %v353
  %522 = vmatprep.subr.bf16.mxu0 %v358
  %523 = vmatpush1.bf16.msra.mxu0 %v357
  %524 = vmatprep.subr.bf16.mxu0 %v362
  %525 = vmatpush1.bf16.msra.mxu0 %v361
  %526 = vmatprep.subr.bf16.mxu0 %v366
  %527 = vmatpush1.bf16.msra.mxu0 %v365
  %528 = vmatprep.subr.bf16.mxu0 0
  %529 = vmatpush1.bf16.msra.mxu0 0
  %530 = vmatprep.subr.bf16.mxu0 0
  %531 = vmatpush1.bf16.msra.mxu0 0
  %532 = vmatprep.subr.bf16.mxu0 0
  %533 = vmatpush1.bf16.msra.mxu0 0
  %534 = vmatprep.subr.bf16.mxu0 0
  %535 = vmatpush1.bf16.msra.mxu0 0
  %536 = vmatprep.subr.bf16.mxu0 0
  %537 = vmatpush1.bf16.msra.mxu0 0
  %538 = vmatprep.subr.bf16.mxu0 0
  %539 = vmatpush1.bf16.msra.mxu0 0
  %540 = vmatprep.subr.bf16.mxu0 0
  %541 = vmatpush1.bf16.msra.mxu0 0
  %542 = vmatprep.subr.bf16.mxu0 0
  %543 = vmatpush1.bf16.msra.mxu0 0
  %544 = vmatprep.mubr.bf16.mxu0 0
  %545 = vmatmul.mubr.bf16.gmra.mrb[0].mxu0 %v223
  %v546 = vpop.f32.mrb[0].mxu0
  %v547 = vadd.f32 %v182, %v546
  %v548 = vpop.f32.mrb[0].mxu0
  %v549 = vadd.f32 %v186, %v548
  %v550 = vpop.f32.mrb[0].mxu0
  %v551 = vadd.f32 %v182, %v550
  %v552 = vpop.f32.mrb[0].mxu0
  %v553 = vadd.f32 %v186, %v552
  %554 = vmatprep.mubr.bf16.mxu0 0
  %555 = vmatmul.mubr.bf16.gmra.mrb[0].mxu0 %v224
  %v556 = vpop.f32.mrb[0].mxu0
  %v557 = vadd.f32 %v182, %v556
  %v558 = vpop.f32.mrb[0].mxu0
  %v559 = vadd.f32 %v186, %v558
  %v560 = vpop.f32.mrb[0].mxu0
  %v561 = vadd.f32 %v182, %v560
  %v562 = vpop.f32.mrb[0].mxu0
  %v563 = vadd.f32 %v186, %v562
  %564 = vmatprep.mubr.bf16.mxu0 0
  %565 = vmatmul.mubr.bf16.gmra.mrb[0].mxu0 %v225
  %v566 = vpop.f32.mrb[0].mxu0
  %v567 = vadd.f32 %v182, %v566
  %v568 = vpop.f32.mrb[0].mxu0
  %v569 = vadd.f32 %v186, %v568
  %v570 = vpop.f32.mrb[0].mxu0
  %v571 = vadd.f32 %v182, %v570
  %v572 = vpop.f32.mrb[0].mxu0
  %v573 = vadd.f32 %v186, %v572
  %574 = vmatprep.mubr.bf16.mxu0 0
  %575 = vmatmul.mubr.bf16.gmra.mrb[0].mxu0 %v226
  %v576 = vpop.f32.mrb[0].mxu0
  %v577 = vadd.f32 %v182, %v576
  %v578 = vpop.f32.mrb[0].mxu0
  %v579 = vadd.f32 %v186, %v578
  %v580 = vpop.f32.mrb[0].mxu0
  %v581 = vadd.f32 %v182, %v580
  %v582 = vpop.f32.mrb[0].mxu0
  %v583 = vadd.f32 %v186, %v582
  %584 = vmatprep.mubr.bf16.mxu0 0
  %585 = vmatmul.mubr.bf16.gmra.mrb[0].mxu0 %v227
  %v586 = vpop.f32.mrb[0].mxu0
  %v587 = vadd.f32 %v182, %v586
  %v588 = vpop.f32.mrb[0].mxu0
  %v589 = vadd.f32 %v186, %v588
  %v590 = vpop.f32.mrb[0].mxu0
  %v591 = vadd.f32 %v182, %v590
  %v592 = vpop.f32.mrb[0].mxu0
  %v593 = vadd.f32 %v186, %v592
  %594 = vmatprep.mubr.bf16.mxu0 0
  %595 = vmatmul.mubr.bf16.gmra.mrb[0].mxu0 %v228
  %v596 = vpop.f32.mrb[0].mxu0
  %v597 = vadd.f32 %v182, %v596
  %v598 = vpop.f32.mrb[0].mxu0
  %v599 = vadd.f32 %v186, %v598
  %v600 = vpop.f32.mrb[0].mxu0
  %v601 = vadd.f32 %v182, %v600
  %v602 = vpop.f32.mrb[0].mxu0
  %v603 = vadd.f32 %v186, %v602
  %604 = vmatprep.mubr.bf16.mxu0 0
  %605 = vmatmul.mubr.bf16.gmra.mrb[0].mxu0 %v229
  %v606 = vpop.f32.mrb[0].mxu0
  %v607 = vadd.f32 %v182, %v606
  %v608 = vpop.f32.mrb[0].mxu0
  %v609 = vadd.f32 %v186, %v608
  %v610 = vpop.f32.mrb[0].mxu0
  %v611 = vadd.f32 %v182, %v610
  %v612 = vpop.f32.mrb[0].mxu0
  %v613 = vadd.f32 %v186, %v612
  %614 = vmatprep.mubr.bf16.mxu0 0
  %615 = vmatmul.mubr.bf16.gmra.mrb[0].mxu0 %v230
  %v616 = vpop.f32.mrb[0].mxu0
  %v617 = vadd.f32 %v182, %v616
  %v618 = vpop.f32.mrb[0].mxu0
  %v619 = vadd.f32 %v186, %v618
  %v620 = vpop.f32.mrb[0].mxu0
  %v621 = vadd.f32 %v182, %v620
  %v622 = vpop.f32.mrb[0].mxu0
  %v623 = vadd.f32 %v186, %v622
  %624 = vdwg.mxu0
  %625 = vst [vmem:[#allocation6] sm:$0xff] %v434
  %626 = vst [vmem:[#allocation6 + $0x8] sm:$0xff] %v436
  %627 = vst [vmem:[#allocation6 + $0x10] sm:$0xff] %v547
  %628 = vst [vmem:[#allocation6 + $0x18] sm:$0xff] %v549
  %629 = vst [vmem:[#allocation6 + $0x20] sm:$0xff] %v438
  %630 = vst [vmem:[#allocation6 + $0x28] sm:$0xff] %v440
  %631 = vst [vmem:[#allocation6 + $0x30] sm:$0xff] %v551
  %632 = vst [vmem:[#allocation6 + $0x38] sm:$0xff] %v553
  %633 = vst [vmem:[#allocation6 + $0x40] sm:$0xff] %v444
  %634 = vst [vmem:[#allocation6 + $0x48] sm:$0xff] %v446
  %635 = vst [vmem:[#allocation6 + $0x50] sm:$0xff] %v557
  %636 = vst [vmem:[#allocation6 + $0x58] sm:$0xff] %v559
  %637 = vst [vmem:[#allocation6 + $0x60] sm:$0xff] %v448
  %638 = vst [vmem:[#allocation6 + $0x68] sm:$0xff] %v450
  %639 = vst [vmem:[#allocation6 + $0x70] sm:$0xff] %v561
  %640 = vst [vmem:[#allocation6 + $0x78] sm:$0xff] %v563
  %641 = vst [vmem:[#allocation6 + $0x80] sm:$0xff] %v454
  %642 = vst [vmem:[#allocation6 + $0x88] sm:$0xff] %v456
  %643 = vst [vmem:[#allocation6 + $0x90] sm:$0xff] %v567
  %644 = vst [vmem:[#allocation6 + $0x98] sm:$0xff] %v569
  %645 = vst [vmem:[#allocation6 + $0xa0] sm:$0xff] %v458
  %646 = vst [vmem:[#allocation6 + $0xa8] sm:$0xff] %v460
  %647 = vst [vmem:[#allocation6 + $0xb0] sm:$0xff] %v571
  %648 = vst [vmem:[#allocation6 + $0xb8] sm:$0xff] %v573
  %649 = vst [vmem:[#allocation6 + $0xc0] sm:$0xff] %v464
  %650 = vst [vmem:[#allocation6 + $0xc8] sm:$0xff] %v466
  %651 = vst [vmem:[#allocation6 + $0xd0] sm:$0xff] %v577
  %652 = vst [vmem:[#allocation6 + $0xd8] sm:$0xff] %v579
  %653 = vst [vmem:[#allocation6 + $0xe0] sm:$0xff] %v468
  %654 = vst [vmem:[#allocation6 + $0xe8] sm:$0xff] %v470
  %655 = vst [vmem:[#allocation6 + $0xf0] sm:$0xff] %v581
  %656 = vst [vmem:[#allocation6 + $0xf8] sm:$0xff] %v583
  %657 = vst [vmem:[#allocation6 + $0x100] sm:$0xff] %v474
  %658 = vst [vmem:[#allocation6 + $0x108] sm:$0xff] %v476
  %659 = vst [vmem:[#allocation6 + $0x110] sm:$0xff] %v587
  %660 = vst [vmem:[#allocation6 + $0x118] sm:$0xff] %v589
  %661 = vst [vmem:[#allocation6 + $0x120] sm:$0xff] %v478
  %662 = vst [vmem:[#allocation6 + $0x128] sm:$0xff] %v480
  %663 = vst [vmem:[#allocation6 + $0x130] sm:$0xff] %v591
  %664 = vst [vmem:[#allocation6 + $0x138] sm:$0xff] %v593
  %665 = vst [vmem:[#allocation6 + $0x140] sm:$0xff] %v484
  %666 = vst [vmem:[#allocation6 + $0x148] sm:$0xff] %v486
  %667 = vst [vmem:[#allocation6 + $0x150] sm:$0xff] %v597
  %668 = vst [vmem:[#allocation6 + $0x158] sm:$0xff] %v599
  %669 = vst [vmem:[#allocation6 + $0x160] sm:$0xff] %v488
  %670 = vst [vmem:[#allocation6 + $0x168] sm:$0xff] %v490
  %671 = vst [vmem:[#allocation6 + $0x170] sm:$0xff] %v601
  %672 = vst [vmem:[#allocation6 + $0x178] sm:$0xff] %v603
  %673 = vst [vmem:[#allocation6 + $0x180] sm:$0xff] %v494
  %674 = vst [vmem:[#allocation6 + $0x188] sm:$0xff] %v496
  %675 = vst [vmem:[#allocation6 + $0x190] sm:$0xff] %v607
  %676 = vst [vmem:[#allocation6 + $0x198] sm:$0xff] %v609
  %677 = vst [vmem:[#allocation6 + $0x1a0] sm:$0xff] %v498
  %678 = vst [vmem:[#allocation6 + $0x1a8] sm:$0xff] %v500
  %679 = vst [vmem:[#allocation6 + $0x1b0] sm:$0xff] %v611
  %680 = vst [vmem:[#allocation6 + $0x1b8] sm:$0xff] %v613
  %681 = vst [vmem:[#allocation6 + $0x1c0] sm:$0xff] %v504
  %682 = vst [vmem:[#allocation6 + $0x1c8] sm:$0xff] %v506
  %683 = vst [vmem:[#allocation6 + $0x1d0] sm:$0xff] %v617
  %684 = vst [vmem:[#allocation6 + $0x1d8] sm:$0xff] %v619
  %685 = vst [vmem:[#allocation6 + $0x1e0] sm:$0xff] %v508
  %686 = vst [vmem:[#allocation6 + $0x1e8] sm:$0xff] %v510
  %687 = vst [vmem:[#allocation6 + $0x1f0] sm:$0xff] %v621
  %688 = vst [vmem:[#allocation6 + $0x1f8] sm:$0xff] %v623
  %v689 = vld [vmem:[%s3] sm:$0xff]
  %v690 = vld [vmem:[%s3 + $0x8] sm:$0xff]
  %v691 = vld [vmem:[%s3 + $0x10] sm:$0xff]
  %v692 = vld [vmem:[%s3 + $0x18] sm:$0xff]
  %v693 = vld [vmem:[%s3 + $0x20] sm:$0xff]
  %v694 = vld [vmem:[%s3 + $0x28] sm:$0xff]
  %v695 = vld [vmem:[%s3 + $0x30] sm:$0xff]
  %v696 = vld [vmem:[%s3 + $0x38] sm:$0xff]
  %v697 = vld [vmem:[%s3 + $0x40] sm:$0xff]
  %v698 = vld [vmem:[%s3 + $0x48] sm:$0xff]
  %v699 = vld [vmem:[%s3 + $0x50] sm:$0xff]
  %v700 = vld [vmem:[%s3 + $0x58] sm:$0xff]
  %v701 = vld [vmem:[%s3 + $0x60] sm:$0xff]
  %v702 = vld [vmem:[%s3 + $0x68] sm:$0xff]
  %v703 = vld [vmem:[%s3 + $0x70] sm:$0xff]
  %v704 = vld [vmem:[%s3 + $0x78] sm:$0xff]
  %v705 = vld [vmem:[%s3 + $0x80] sm:$0xff]
  %v706 = vld [vmem:[%s3 + $0x88] sm:$0xff]
  %v707 = vld [vmem:[%s3 + $0x90] sm:$0xff]
  %v708 = vld [vmem:[%s3 + $0x98] sm:$0xff]
  %v709 = vld [vmem:[%s3 + $0xa0] sm:$0xff]
  %v710 = vld [vmem:[%s3 + $0xa8] sm:$0xff]
  %v711 = vld [vmem:[%s3 + $0xb0] sm:$0xff]
  %v712 = vld [vmem:[%s3 + $0xb8] sm:$0xff]
  %v713 = vld [vmem:[%s3 + $0xc0] sm:$0xff]
  %v714 = vld [vmem:[%s3 + $0xc8] sm:$0xff]
  %v715 = vld [vmem:[%s3 + $0xd0] sm:$0xff]
  %v716 = vld [vmem:[%s3 + $0xd8] sm:$0xff]
  %v717 = vld [vmem:[%s3 + $0xe0] sm:$0xff]
  %v718 = vld [vmem:[%s3 + $0xe8] sm:$0xff]
  %v719 = vld [vmem:[%s3 + $0xf0] sm:$0xff]
  %v720 = vld [vmem:[%s3 + $0xf8] sm:$0xff]
  %v721 = vld [vmem:[%s5] sm:$0xf]
  %v723 = vlaneseq
  %v724 = vshrl.u32 %v723, 7
  %v725 = vsub.s32 0, %v724
  %v726 = vrot.slane %v721, %v725
  %v727 = vlaneseq
  %v728 = vshrl.u32 %v727, 7
  %v729 = vsub.s32 1, %v728
  %v730 = vrot.slane %v721, %v729
  %v731 = vlaneseq
  %v732 = vshrl.u32 %v731, 7
  %v733 = vsub.s32 2, %v732
  %v734 = vrot.slane %v721, %v733
  %v735 = vlaneseq
  %v736 = vshrl.u32 %v735, 7
  %v737 = vsub.s32 3, %v736
  %v738 = vrot.slane %v721, %v737
  %v759 = vunpack.c.l.b16 %v121
  %v760 = vunpack.c.l.b16 %v122
  %v761 = vunpack.c.l.b16 %v123
  %v762 = vunpack.c.l.b16 %v124
  %v763 = vunpack.c.l.b16 %v125
  %v764 = vunpack.c.l.b16 %v126
  %v765 = vunpack.c.l.b16 %v127
  %v766 = vunpack.c.l.b16 %v128
  %v767 = vunpack.c.l.b16 %v129
  %v768 = vunpack.c.l.b16 %v130
  %v769 = vunpack.c.l.b16 %v131
  %v770 = vunpack.c.l.b16 %v132
  %v771 = vunpack.c.l.b16 %v133
  %v772 = vunpack.c.l.b16 %v134
  %v773 = vunpack.c.l.b16 %v135
  %v774 = vunpack.c.l.b16 %v136
  %v775 = vpack.c.b16 %v760, %v759
  %v776 = vpack.c.b16 %v762, %v761
  %v777 = vpack.c.b16 %v764, %v763
  %v778 = vpack.c.b16 %v766, %v765
  %v779 = vpack.c.b16 %v768, %v767
  %v780 = vpack.c.b16 %v770, %v769
  %v781 = vpack.c.b16 %v772, %v771
  %v782 = vpack.c.b16 %v774, %v773
  %v823 = vunpack.c.l.b16 %v689
  %v824 = vunpack.c.h.b16 %v689
  %v825 = vunpack.c.l.b16 %v690
  %v826 = vunpack.c.h.b16 %v690
  %v827 = vunpack.c.l.b16 %v691
  %v828 = vunpack.c.h.b16 %v691
  %v829 = vunpack.c.l.b16 %v692
  %v830 = vunpack.c.h.b16 %v692
  %v831 = vunpack.c.l.b16 %v693
  %v832 = vunpack.c.h.b16 %v693
  %v833 = vunpack.c.l.b16 %v694
  %v834 = vunpack.c.h.b16 %v694
  %v835 = vunpack.c.l.b16 %v695
  %v836 = vunpack.c.h.b16 %v695
  %v837 = vunpack.c.l.b16 %v696
  %v838 = vunpack.c.h.b16 %v696
  %v839 = vunpack.c.l.b16 %v697
  %v840 = vunpack.c.h.b16 %v697
  %v841 = vunpack.c.l.b16 %v698
  %v842 = vunpack.c.h.b16 %v698
  %v843 = vunpack.c.l.b16 %v699
  %v844 = vunpack.c.h.b16 %v699
  %v845 = vunpack.c.l.b16 %v700
  %v846 = vunpack.c.h.b16 %v700
  %v847 = vunpack.c.l.b16 %v701
  %v848 = vunpack.c.h.b16 %v701
  %v849 = vunpack.c.l.b16 %v702
  %v850 = vunpack.c.h.b16 %v702
  %v851 = vunpack.c.l.b16 %v703
  %v852 = vunpack.c.h.b16 %v703
  %v853 = vunpack.c.l.b16 %v704
  %v854 = vunpack.c.h.b16 %v704
  %v855 = vunpack.c.l.b16 %v705
  %v856 = vunpack.c.h.b16 %v705
  %v857 = vunpack.c.l.b16 %v706
  %v858 = vunpack.c.h.b16 %v706
  %v859 = vunpack.c.l.b16 %v707
  %v860 = vunpack.c.h.b16 %v707
  %v861 = vunpack.c.l.b16 %v708
  %v862 = vunpack.c.h.b16 %v708
  %v863 = vunpack.c.l.b16 %v709
  %v864 = vunpack.c.h.b16 %v709
  %v865 = vunpack.c.l.b16 %v710
  %v866 = vunpack.c.h.b16 %v710
  %v867 = vunpack.c.l.b16 %v711
  %v868 = vunpack.c.h.b16 %v711
  %v869 = vunpack.c.l.b16 %v712
  %v870 = vunpack.c.h.b16 %v712
  %v871 = vunpack.c.l.b16 %v713
  %v872 = vunpack.c.h.b16 %v713
  %v873 = vunpack.c.l.b16 %v714
  %v874 = vunpack.c.h.b16 %v714
  %v875 = vunpack.c.l.b16 %v715
  %v876 = vunpack.c.h.b16 %v715
  %v877 = vunpack.c.l.b16 %v716
  %v878 = vunpack.c.h.b16 %v716
  %v879 = vunpack.c.l.b16 %v717
  %v880 = vunpack.c.h.b16 %v717
  %v881 = vunpack.c.l.b16 %v718
  %v882 = vunpack.c.h.b16 %v718
  %v883 = vunpack.c.l.b16 %v719
  %v884 = vunpack.c.h.b16 %v719
  %v885 = vunpack.c.l.b16 %v720
  %v886 = vunpack.c.h.b16 %v720
  %v887 = vpack.c.b16 %v827, %v823
  %v888 = vpack.c.b16 %v828, %v824
  %v889 = vpack.c.b16 %v829, %v825
  %v890 = vpack.c.b16 %v830, %v826
  %v891 = vpack.c.b16 %v835, %v831
  %v892 = vpack.c.b16 %v836, %v832
  %v893 = vpack.c.b16 %v837, %v833
  %v894 = vpack.c.b16 %v838, %v834
  %v895 = vpack.c.b16 %v843, %v839
  %v896 = vpack.c.b16 %v844, %v840
  %v897 = vpack.c.b16 %v845, %v841
  %v898 = vpack.c.b16 %v846, %v842
  %v899 = vpack.c.b16 %v851, %v847
  %v900 = vpack.c.b16 %v852, %v848
  %v901 = vpack.c.b16 %v853, %v849
  %v902 = vpack.c.b16 %v854, %v850
  %v903 = vpack.c.b16 %v859, %v855
  %v904 = vpack.c.b16 %v860, %v856
  %v905 = vpack.c.b16 %v861, %v857
  %v906 = vpack.c.b16 %v862, %v858
  %v907 = vpack.c.b16 %v867, %v863
  %v908 = vpack.c.b16 %v868, %v864
  %v909 = vpack.c.b16 %v869, %v865
  %v910 = vpack.c.b16 %v870, %v866
  %v911 = vpack.c.b16 %v875, %v871
  %v912 = vpack.c.b16 %v876, %v872
  %v913 = vpack.c.b16 %v877, %v873
  %v914 = vpack.c.b16 %v878, %v874
  %v915 = vpack.c.b16 %v883, %v879
  %v916 = vpack.c.b16 %v884, %v880
  %v917 = vpack.c.b16 %v885, %v881
  %v918 = vpack.c.b16 %v886, %v882
  %951 = vmatprep.subr.bf16.mxu0 %v888
  %952 = vmatpush1.bf16.msra.mxu0 %v887
  %953 = vmatprep.subr.bf16.mxu0 %v892
  %954 = vmatpush1.bf16.msra.mxu0 %v891
  %955 = vmatprep.subr.bf16.mxu0 %v896
  %956 = vmatpush1.bf16.msra.mxu0 %v895
  %957 = vmatprep.subr.bf16.mxu0 %v900
  %958 = vmatpush1.bf16.msra.mxu0 %v899
  %959 = vmatprep.subr.bf16.mxu0 %v904
  %960 = vmatpush1.bf16.msra.mxu0 %v903
  %961 = vmatprep.subr.bf16.mxu0 %v908
  %962 = vmatpush1.bf16.msra.mxu0 %v907
  %963 = vmatprep.subr.bf16.mxu0 %v912
  %964 = vmatpush1.bf16.msra.mxu0 %v911
  %965 = vmatprep.subr.bf16.mxu0 %v916
  %966 = vmatpush1.bf16.msra.mxu0 %v915
  %967 = vmatprep.subr.bf16.mxu0 0
  %968 = vmatpush1.bf16.msra.mxu0 0
  %969 = vmatprep.subr.bf16.mxu0 0
  %970 = vmatpush1.bf16.msra.mxu0 0
  %971 = vmatprep.subr.bf16.mxu0 0
  %972 = vmatpush1.bf16.msra.mxu0 0
  %973 = vmatprep.subr.bf16.mxu0 0
  %974 = vmatpush1.bf16.msra.mxu0 0
  %975 = vmatprep.subr.bf16.mxu0 0
  %976 = vmatpush1.bf16.msra.mxu0 0
  %977 = vmatprep.subr.bf16.mxu0 0
  %978 = vmatpush1.bf16.msra.mxu0 0
  %979 = vmatprep.subr.bf16.mxu0 0
  %980 = vmatpush1.bf16.msra.mxu0 0
  %981 = vmatprep.subr.bf16.mxu0 0
  %982 = vmatpush1.bf16.msra.mxu0 0
  %983 = vmatprep.mubr.bf16.mxu0 0
  %984 = vmatmul.mubr.bf16.gmra.mrb[0].mxu0 %v775
  %v985 = vpop.f32.mrb[0].mxu0
  %v986 = vadd.f32 %v726, %v985
  %v987 = vpop.f32.mrb[0].mxu0
  %v988 = vadd.f32 %v730, %v987
  %v989 = vpop.f32.mrb[0].mxu0
  %v990 = vadd.f32 %v726, %v989
  %v991 = vpop.f32.mrb[0].mxu0
  %v992 = vadd.f32 %v730, %v991
  %993 = vmatprep.mubr.bf16.mxu0 0
  %994 = vmatmul.mubr.bf16.gmra.mrb[0].mxu0 %v776
  %v995 = vpop.f32.mrb[0].mxu0
  %v996 = vadd.f32 %v726, %v995
  %v997 = vpop.f32.mrb[0].mxu0
  %v998 = vadd.f32 %v730, %v997
  %v999 = vpop.f32.mrb[0].mxu0
  %v1000 = vadd.f32 %v726, %v999
  %v1001 = vpop.f32.mrb[0].mxu0
  %v1002 = vadd.f32 %v730, %v1001
  %1003 = vmatprep.mubr.bf16.mxu0 0
  %1004 = vmatmul.mubr.bf16.gmra.mrb[0].mxu0 %v777
  %v1005 = vpop.f32.mrb[0].mxu0
  %v1006 = vadd.f32 %v726, %v1005
  %v1007 = vpop.f32.mrb[0].mxu0
  %v1008 = vadd.f32 %v730, %v1007
  %v1009 = vpop.f32.mrb[0].mxu0
  %v1010 = vadd.f32 %v726, %v1009
  %v1011 = vpop.f32.mrb[0].mxu0
  %v1012 = vadd.f32 %v730, %v1011
  %1013 = vmatprep.mubr.bf16.mxu0 0
  %1014 = vmatmul.mubr.bf16.gmra.mrb[0].mxu0 %v778
  %v1015 = vpop.f32.mrb[0].mxu0
  %v1016 = vadd.f32 %v726, %v1015
  %v1017 = vpop.f32.mrb[0].mxu0
  %v1018 = vadd.f32 %v730, %v1017
  %v1019 = vpop.f32.mrb[0].mxu0
  %v1020 = vadd.f32 %v726, %v1019
  %v1021 = vpop.f32.mrb[0].mxu0
  %v1022 = vadd.f32 %v730, %v1021
  %1023 = vmatprep.mubr.bf16.mxu0 0
  %1024 = vmatmul.mubr.bf16.gmra.mrb[0].mxu0 %v779
  %v1025 = vpop.f32.mrb[0].mxu0
  %v1026 = vadd.f32 %v726, %v1025
  %v1027 = vpop.f32.mrb[0].mxu0
  %v1028 = vadd.f32 %v730, %v1027
  %v1029 = vpop.f32.mrb[0].mxu0
  %v1030 = vadd.f32 %v726, %v1029
  %v1031 = vpop.f32.mrb[0].mxu0
  %v1032 = vadd.f32 %v730, %v1031
  %1033 = vmatprep.mubr.bf16.mxu0 0
  %1034 = vmatmul.mubr.bf16.gmra.mrb[0].mxu0 %v780
  %v1035 = vpop.f32.mrb[0].mxu0
  %v1036 = vadd.f32 %v726, %v1035
  %v1037 = vpop.f32.mrb[0].mxu0
  %v1038 = vadd.f32 %v730, %v1037
  %v1039 = vpop.f32.mrb[0].mxu0
  %v1040 = vadd.f32 %v726, %v1039
  %v1041 = vpop.f32.mrb[0].mxu0
  %v1042 = vadd.f32 %v730, %v1041
  %1043 = vmatprep.mubr.bf16.mxu0 0
  %1044 = vmatmul.mubr.bf16.gmra.mrb[0].mxu0 %v781
  %v1045 = vpop.f32.mrb[0].mxu0
  %v1046 = vadd.f32 %v726, %v1045
  %v1047 = vpop.f32.mrb[0].mxu0
  %v1048 = vadd.f32 %v730, %v1047
  %v1049 = vpop.f32.mrb[0].mxu0
  %v1050 = vadd.f32 %v726, %v1049
  %v1051 = vpop.f32.mrb[0].mxu0
  %v1052 = vadd.f32 %v730, %v1051
  %1053 = vmatprep.mubr.bf16.mxu0 0
  %1054 = vmatmul.mubr.bf16.gmra.mrb[0].mxu0 %v782
  %v1055 = vpop.f32.mrb[0].mxu0
  %v1056 = vadd.f32 %v726, %v1055
  %v1057 = vpop.f32.mrb[0].mxu0
  %v1058 = vadd.f32 %v730, %v1057
  %v1059 = vpop.f32.mrb[0].mxu0
  %v1060 = vadd.f32 %v726, %v1059
  %v1061 = vpop.f32.mrb[0].mxu0
  %v1062 = vadd.f32 %v730, %v1061
  %1063 = vdwg.mxu0
  %1064 = vmatprep.subr.bf16.mxu0 %v890
  %1065 = vmatpush1.bf16.msra.mxu0 %v889
  %1066 = vmatprep.subr.bf16.mxu0 %v894
  %1067 = vmatpush1.bf16.msra.mxu0 %v893
  %1068 = vmatprep.subr.bf16.mxu0 %v898
  %1069 = vmatpush1.bf16.msra.mxu0 %v897
  %1070 = vmatprep.subr.bf16.mxu0 %v902
  %1071 = vmatpush1.bf16.msra.mxu0 %v901
  %1072 = vmatprep.subr.bf16.mxu0 %v906
  %1073 = vmatpush1.bf16.msra.mxu0 %v905
  %1074 = vmatprep.subr.bf16.mxu0 %v910
  %1075 = vmatpush1.bf16.msra.mxu0 %v909
  %1076 = vmatprep.subr.bf16.mxu0 %v914
  %1077 = vmatpush1.bf16.msra.mxu0 %v913
  %1078 = vmatprep.subr.bf16.mxu0 %v918
  %1079 = vmatpush1.bf16.msra.mxu0 %v917
  %1080 = vmatprep.subr.bf16.mxu0 0
  %1081 = vmatpush1.bf16.msra.mxu0 0
  %1082 = vmatprep.subr.bf16.mxu0 0
  %1083 = vmatpush1.bf16.msra.mxu0 0
  %1084 = vmatprep.subr.bf16.mxu0 0
  %1085 = vmatpush1.bf16.msra.mxu0 0
  %1086 = vmatprep.subr.bf16.mxu0 0
  %1087 = vmatpush1.bf16.msra.mxu0 0
  %1088 = vmatprep.subr.bf16.mxu0 0
  %1089 = vmatpush1.bf16.msra.mxu0 0
  %1090 = vmatprep.subr.bf16.mxu0 0
  %1091 = vmatpush1.bf16.msra.mxu0 0
  %1092 = vmatprep.subr.bf16.mxu0 0
  %1093 = vmatpush1.bf16.msra.mxu0 0
  %1094 = vmatprep.subr.bf16.mxu0 0
  %1095 = vmatpush1.bf16.msra.mxu0 0
  %1096 = vmatprep.mubr.bf16.mxu0 0
  %1097 = vmatmul.mubr.bf16.gmra.mrb[0].mxu0 %v775
  %v1098 = vpop.f32.mrb[0].mxu0
  %v1099 = vadd.f32 %v734, %v1098
  %v1100 = vpop.f32.mrb[0].mxu0
  %v1101 = vadd.f32 %v738, %v1100
  %v1102 = vpop.f32.mrb[0].mxu0
  %v1103 = vadd.f32 %v734, %v1102
  %v1104 = vpop.f32.mrb[0].mxu0
  %v1105 = vadd.f32 %v738, %v1104
  %1106 = vmatprep.mubr.bf16.mxu0 0
  %1107 = vmatmul.mubr.bf16.gmra.mrb[0].mxu0 %v776
  %v1108 = vpop.f32.mrb[0].mxu0
  %v1109 = vadd.f32 %v734, %v1108
  %v1110 = vpop.f32.mrb[0].mxu0
  %v1111 = vadd.f32 %v738, %v1110
  %v1112 = vpop.f32.mrb[0].mxu0
  %v1113 = vadd.f32 %v734, %v1112
  %v1114 = vpop.f32.mrb[0].mxu0
  %v1115 = vadd.f32 %v738, %v1114
  %1116 = vmatprep.mubr.bf16.mxu0 0
  %1117 = vmatmul.mubr.bf16.gmra.mrb[0].mxu0 %v777
  %v1118 = vpop.f32.mrb[0].mxu0
  %v1119 = vadd.f32 %v734, %v1118
  %v1120 = vpop.f32.mrb[0].mxu0
  %v1121 = vadd.f32 %v738, %v1120
  %v1122 = vpop.f32.mrb[0].mxu0
  %v1123 = vadd.f32 %v734, %v1122
  %v1124 = vpop.f32.mrb[0].mxu0
  %v1125 = vadd.f32 %v738, %v1124
  %1126 = vmatprep.mubr.bf16.mxu0 0
  %1127 = vmatmul.mubr.bf16.gmra.mrb[0].mxu0 %v778
  %v1128 = vpop.f32.mrb[0].mxu0
  %v1129 = vadd.f32 %v734, %v1128
  %v1130 = vpop.f32.mrb[0].mxu0
  %v1131 = vadd.f32 %v738, %v1130
  %v1132 = vpop.f32.mrb[0].mxu0
  %v1133 = vadd.f32 %v734, %v1132
  %v1134 = vpop.f32.mrb[0].mxu0
  %v1135 = vadd.f32 %v738, %v1134
  %1136 = vmatprep.mubr.bf16.mxu0 0
  %1137 = vmatmul.mubr.bf16.gmra.mrb[0].mxu0 %v779
  %v1138 = vpop.f32.mrb[0].mxu0
  %v1139 = vadd.f32 %v734, %v1138
  %v1140 = vpop.f32.mrb[0].mxu0
  %v1141 = vadd.f32 %v738, %v1140
  %v1142 = vpop.f32.mrb[0].mxu0
  %v1143 = vadd.f32 %v734, %v1142
  %v1144 = vpop.f32.mrb[0].mxu0
  %v1145 = vadd.f32 %v738, %v1144
  %1146 = vmatprep.mubr.bf16.mxu0 0
  %1147 = vmatmul.mubr.bf16.gmra.mrb[0].mxu0 %v780
  %v1148 = vpop.f32.mrb[0].mxu0
  %v1149 = vadd.f32 %v734, %v1148
  %v1150 = vpop.f32.mrb[0].mxu0
  %v1151 = vadd.f32 %v738, %v1150
  %v1152 = vpop.f32.mrb[0].mxu0
  %v1153 = vadd.f32 %v734, %v1152
  %v1154 = vpop.f32.mrb[0].mxu0
  %v1155 = vadd.f32 %v738, %v1154
  %1156 = vmatprep.mubr.bf16.mxu0 0
  %1157 = vmatmul.mubr.bf16.gmra.mrb[0].mxu0 %v781
  %v1158 = vpop.f32.mrb[0].mxu0
  %v1159 = vadd.f32 %v734, %v1158
  %v1160 = vpop.f32.mrb[0].mxu0
  %v1161 = vadd.f32 %v738, %v1160
  %v1162 = vpop.f32.mrb[0].mxu0
  %v1163 = vadd.f32 %v734, %v1162
  %v1164 = vpop.f32.mrb[0].mxu0
  %v1165 = vadd.f32 %v738, %v1164
  %1166 = vmatprep.mubr.bf16.mxu0 0
  %1167 = vmatmul.mubr.bf16.gmra.mrb[0].mxu0 %v782
  %v1168 = vpop.f32.mrb[0].mxu0
  %v1169 = vadd.f32 %v734, %v1168
  %v1170 = vpop.f32.mrb[0].mxu0
  %v1171 = vadd.f32 %v738, %v1170
  %v1172 = vpop.f32.mrb[0].mxu0
  %v1173 = vadd.f32 %v734, %v1172
  %v1174 = vpop.f32.mrb[0].mxu0
  %v1175 = vadd.f32 %v738, %v1174
  %1176 = vdwg.mxu0
  %1177 = vst [vmem:[#allocation7] sm:$0xff] %v986
  %1178 = vst [vmem:[#allocation7 + $0x8] sm:$0xff] %v988
  %1179 = vst [vmem:[#allocation7 + $0x10] sm:$0xff] %v1099
  %1180 = vst [vmem:[#allocation7 + $0x18] sm:$0xff] %v1101
  %1181 = vst [vmem:[#allocation7 + $0x20] sm:$0xff] %v990
  %1182 = vst [vmem:[#allocation7 + $0x28] sm:$0xff] %v992
  %1183 = vst [vmem:[#allocation7 + $0x30] sm:$0xff] %v1103
  %1184 = vst [vmem:[#allocation7 + $0x38] sm:$0xff] %v1105
  %1185 = vst [vmem:[#allocation7 + $0x40] sm:$0xff] %v996
  %1186 = vst [vmem:[#allocation7 + $0x48] sm:$0xff] %v998
  %1187 = vst [vmem:[#allocation7 + $0x50] sm:$0xff] %v1109
  %1188 = vst [vmem:[#allocation7 + $0x58] sm:$0xff] %v1111
  %1189 = vst [vmem:[#allocation7 + $0x60] sm:$0xff] %v1000
  %1190 = vst [vmem:[#allocation7 + $0x68] sm:$0xff] %v1002
  %1191 = vst [vmem:[#allocation7 + $0x70] sm:$0xff] %v1113
  %1192 = vst [vmem:[#allocation7 + $0x78] sm:$0xff] %v1115
  %1193 = vst [vmem:[#allocation7 + $0x80] sm:$0xff] %v1006
  %1194 = vst [vmem:[#allocation7 + $0x88] sm:$0xff] %v1008
  %1195 = vst [vmem:[#allocation7 + $0x90] sm:$0xff] %v1119
  %1196 = vst [vmem:[#allocation7 + $0x98] sm:$0xff] %v1121
  %1197 = vst [vmem:[#allocation7 + $0xa0] sm:$0xff] %v1010
  %1198 = vst [vmem:[#allocation7 + $0xa8] sm:$0xff] %v1012
  %1199 = vst [vmem:[#allocation7 + $0xb0] sm:$0xff] %v1123
  %1200 = vst [vmem:[#allocation7 + $0xb8] sm:$0xff] %v1125
  %1201 = vst [vmem:[#allocation7 + $0xc0] sm:$0xff] %v1016
  %1202 = vst [vmem:[#allocation7 + $0xc8] sm:$0xff] %v1018
  %1203 = vst [vmem:[#allocation7 + $0xd0] sm:$0xff] %v1129
  %1204 = vst [vmem:[#allocation7 + $0xd8] sm:$0xff] %v1131
  %1205 = vst [vmem:[#allocation7 + $0xe0] sm:$0xff] %v1020
  %1206 = vst [vmem:[#allocation7 + $0xe8] sm:$0xff] %v1022
  %1207 = vst [vmem:[#allocation7 + $0xf0] sm:$0xff] %v1133
  %1208 = vst [vmem:[#allocation7 + $0xf8] sm:$0xff] %v1135
  %1209 = vst [vmem:[#allocation7 + $0x100] sm:$0xff] %v1026
  %1210 = vst [vmem:[#allocation7 + $0x108] sm:$0xff] %v1028
  %1211 = vst [vmem:[#allocation7 + $0x110] sm:$0xff] %v1139
  %1212 = vst [vmem:[#allocation7 + $0x118] sm:$0xff] %v1141
  %1213 = vst [vmem:[#allocation7 + $0x120] sm:$0xff] %v1030
  %1214 = vst [vmem:[#allocation7 + $0x128] sm:$0xff] %v1032
  %1215 = vst [vmem:[#allocation7 + $0x130] sm:$0xff] %v1143
  %1216 = vst [vmem:[#allocation7 + $0x138] sm:$0xff] %v1145
  %1217 = vst [vmem:[#allocation7 + $0x140] sm:$0xff] %v1036
  %1218 = vst [vmem:[#allocation7 + $0x148] sm:$0xff] %v1038
  %1219 = vst [vmem:[#allocation7 + $0x150] sm:$0xff] %v1149
  %1220 = vst [vmem:[#allocation7 + $0x158] sm:$0xff] %v1151
  %1221 = vst [vmem:[#allocation7 + $0x160] sm:$0xff] %v1040
  %1222 = vst [vmem:[#allocation7 + $0x168] sm:$0xff] %v1042
  %1223 = vst [vmem:[#allocation7 + $0x170] sm:$0xff] %v1153
  %1224 = vst [vmem:[#allocation7 + $0x178] sm:$0xff] %v1155
  %1225 = vst [vmem:[#allocation7 + $0x180] sm:$0xff] %v1046
  %1226 = vst [vmem:[#allocation7 + $0x188] sm:$0xff] %v1048
  %1227 = vst [vmem:[#allocation7 + $0x190] sm:$0xff] %v1159
  %1228 = vst [vmem:[#allocation7 + $0x198] sm:$0xff] %v1161
  %1229 = vst [vmem:[#allocation7 + $0x1a0] sm:$0xff] %v1050
  %1230 = vst [vmem:[#allocation7 + $0x1a8] sm:$0xff] %v1052
  %1231 = vst [vmem:[#allocation7 + $0x1b0] sm:$0xff] %v1163
  %1232 = vst [vmem:[#allocation7 + $0x1b8] sm:$0xff] %v1165
  %1233 = vst [vmem:[#allocation7 + $0x1c0] sm:$0xff] %v1056
  %1234 = vst [vmem:[#allocation7 + $0x1c8] sm:$0xff] %v1058
  %1235 = vst [vmem:[#allocation7 + $0x1d0] sm:$0xff] %v1169
  %1236 = vst [vmem:[#allocation7 + $0x1d8] sm:$0xff] %v1171
  %1237 = vst [vmem:[#allocation7 + $0x1e0] sm:$0xff] %v1060
  %1238 = vst [vmem:[#allocation7 + $0x1e8] sm:$0xff] %v1062
  %1239 = vst [vmem:[#allocation7 + $0x1f0] sm:$0xff] %v1173
  %1240 = vst [vmem:[#allocation7 + $0x1f8] sm:$0xff] %v1175
  %v1241 = vld [vmem:[%s6] sm:$0xff]
  %v1242 = vld [vmem:[%s6 + $0x8] sm:$0xff]
  %v1243 = vld [vmem:[%s6 + $0x10] sm:$0xff]
  %v1244 = vld [vmem:[%s6 + $0x18] sm:$0xff]
  %v1245 = vld [vmem:[%s6 + $0x20] sm:$0xff]
  %v1246 = vld [vmem:[%s6 + $0x28] sm:$0xff]
  %v1247 = vld [vmem:[%s6 + $0x30] sm:$0xff]
  %v1248 = vld [vmem:[%s6 + $0x38] sm:$0xff]
  %v1249 = vld [vmem:[%s6 + $0x40] sm:$0xff]
  %v1250 = vld [vmem:[%s6 + $0x48] sm:$0xff]
  %v1251 = vld [vmem:[%s6 + $0x50] sm:$0xff]
  %v1252 = vld [vmem:[%s6 + $0x58] sm:$0xff]
  %v1253 = vld [vmem:[%s6 + $0x60] sm:$0xff]
  %v1254 = vld [vmem:[%s6 + $0x68] sm:$0xff]
  %v1255 = vld [vmem:[%s6 + $0x70] sm:$0xff]
  %v1256 = vld [vmem:[%s6 + $0x78] sm:$0xff]
  %v1257 = vld [vmem:[%s6 + $0x80] sm:$0xff]
  %v1258 = vld [vmem:[%s6 + $0x88] sm:$0xff]
  %v1259 = vld [vmem:[%s6 + $0x90] sm:$0xff]
  %v1260 = vld [vmem:[%s6 + $0x98] sm:$0xff]
  %v1261 = vld [vmem:[%s6 + $0xa0] sm:$0xff]
  %v1262 = vld [vmem:[%s6 + $0xa8] sm:$0xff]
  %v1263 = vld [vmem:[%s6 + $0xb0] sm:$0xff]
  %v1264 = vld [vmem:[%s6 + $0xb8] sm:$0xff]
  %v1265 = vld [vmem:[%s6 + $0xc0] sm:$0xff]
  %v1266 = vld [vmem:[%s6 + $0xc8] sm:$0xff]
  %v1267 = vld [vmem:[%s6 + $0xd0] sm:$0xff]
  %v1268 = vld [vmem:[%s6 + $0xd8] sm:$0xff]
  %v1269 = vld [vmem:[%s6 + $0xe0] sm:$0xff]
  %v1270 = vld [vmem:[%s6 + $0xe8] sm:$0xff]
  %v1271 = vld [vmem:[%s6 + $0xf0] sm:$0xff]
  %v1272 = vld [vmem:[%s6 + $0xf8] sm:$0xff]
  %v1273 = vld [vmem:[%s7] sm:$0xff]
  %v1274 = vld [vmem:[%s7 + $0x8] sm:$0xff]
  %v1275 = vld [vmem:[%s7 + $0x10] sm:$0xff]
  %v1276 = vld [vmem:[%s7 + $0x18] sm:$0xff]
  %v1277 = vld [vmem:[%s7 + $0x20] sm:$0xff]
  %v1278 = vld [vmem:[%s7 + $0x28] sm:$0xff]
  %v1279 = vld [vmem:[%s7 + $0x30] sm:$0xff]
  %v1280 = vld [vmem:[%s7 + $0x38] sm:$0xff]
  %v1281 = vld [vmem:[%s7 + $0x40] sm:$0xff]
  %v1282 = vld [vmem:[%s7 + $0x48] sm:$0xff]
  %v1283 = vld [vmem:[%s7 + $0x50] sm:$0xff]
  %v1284 = vld [vmem:[%s7 + $0x58] sm:$0xff]
  %v1285 = vld [vmem:[%s7 + $0x60] sm:$0xff]
  %v1286 = vld [vmem:[%s7 + $0x68] sm:$0xff]
  %v1287 = vld [vmem:[%s7 + $0x70] sm:$0xff]
  %v1288 = vld [vmem:[%s7 + $0x78] sm:$0xff]
  %v1289 = vld [vmem:[%s7 + $0x80] sm:$0xff]
  %v1290 = vld [vmem:[%s7 + $0x88] sm:$0xff]
  %v1291 = vld [vmem:[%s7 + $0x90] sm:$0xff]
  %v1292 = vld [vmem:[%s7 + $0x98] sm:$0xff]
  %v1293 = vld [vmem:[%s7 + $0xa0] sm:$0xff]
  %v1294 = vld [vmem:[%s7 + $0xa8] sm:$0xff]
  %v1295 = vld [vmem:[%s7 + $0xb0] sm:$0xff]
  %v1296 = vld [vmem:[%s7 + $0xb8] sm:$0xff]
  %v1297 = vld [vmem:[%s7 + $0xc0] sm:$0xff]
  %v1298 = vld [vmem:[%s7 + $0xc8] sm:$0xff]
  %v1299 = vld [vmem:[%s7 + $0xd0] sm:$0xff]
  %v1300 = vld [vmem:[%s7 + $0xd8] sm:$0xff]
  %v1301 = vld [vmem:[%s7 + $0xe0] sm:$0xff]
  %v1302 = vld [vmem:[%s7 + $0xe8] sm:$0xff]
  %v1303 = vld [vmem:[%s7 + $0xf0] sm:$0xff]
  %v1304 = vld [vmem:[%s7 + $0xf8] sm:$0xff]
  %v1305 = vld [vmem:[#allocation2] sm:$0xff]
  %v1306 = vld [vmem:[#allocation2 + $0x8] sm:$0xff]
  %v1307 = vld [vmem:[#allocation3] sm:$0xff]
  %v1308 = vld [vmem:[#allocation3 + $0x8] sm:$0xff]
  %v1309 = vld [vmem:[#allocation4] sm:$0xff]
  %v1310 = vld [vmem:[#allocation4 + $0x8] sm:$0xff]
  %v1311 = vld [vmem:[#allocation5] sm:$0xff]
  %v1312 = vld [vmem:[#allocation5 + $0x8] sm:$0xff]
  %v1313 = vld [vmem:[#allocation6] sm:$0xff]
  %v1314 = vld [vmem:[#allocation6 + $0x8] sm:$0xff]
  %v1315 = vld [vmem:[#allocation6 + $0x10] sm:$0xff]
  %v1316 = vld [vmem:[#allocation6 + $0x18] sm:$0xff]
  %v1317 = vld [vmem:[#allocation6 + $0x20] sm:$0xff]
  %v1318 = vld [vmem:[#allocation6 + $0x28] sm:$0xff]
  %v1319 = vld [vmem:[#allocation6 + $0x30] sm:$0xff]
  %v1320 = vld [vmem:[#allocation6 + $0x38] sm:$0xff]
  %v1321 = vpack.c.bf16 %v1306, %v1305
  %v1354 = vunpack.c.l.b16 %v1241
  %v1355 = vunpack.c.h.b16 %v1241
  %v1356 = vunpack.c.l.b16 %v1242
  %v1357 = vunpack.c.h.b16 %v1242
  %v1358 = vunpack.c.l.b16 %v1243
  %v1359 = vunpack.c.h.b16 %v1243
  %v1360 = vunpack.c.l.b16 %v1244
  %v1361 = vunpack.c.h.b16 %v1244
  %v1362 = vunpack.c.l.b16 %v1245
  %v1363 = vunpack.c.h.b16 %v1245
  %v1364 = vunpack.c.l.b16 %v1246
  %v1365 = vunpack.c.h.b16 %v1246
  %v1366 = vunpack.c.l.b16 %v1247
  %v1367 = vunpack.c.h.b16 %v1247
  %v1368 = vunpack.c.l.b16 %v1248
  %v1369 = vunpack.c.h.b16 %v1248
  %v1370 = vunpack.c.l.b16 %v1249
  %v1371 = vunpack.c.h.b16 %v1249
  %v1372 = vunpack.c.l.b16 %v1250
  %v1373 = vunpack.c.h.b16 %v1250
  %v1374 = vunpack.c.l.b16 %v1251
  %v1375 = vunpack.c.h.b16 %v1251
  %v1376 = vunpack.c.l.b16 %v1252
  %v1377 = vunpack.c.h.b16 %v1252
  %v1378 = vunpack.c.l.b16 %v1253
  %v1379 = vunpack.c.h.b16 %v1253
  %v1380 = vunpack.c.l.b16 %v1254
  %v1381 = vunpack.c.h.b16 %v1254
  %v1382 = vunpack.c.l.b16 %v1255
  %v1383 = vunpack.c.h.b16 %v1255
  %v1384 = vunpack.c.l.b16 %v1256
  %v1385 = vunpack.c.h.b16 %v1256
  %v1386 = vunpack.c.l.b16 %v1257
  %v1387 = vunpack.c.h.b16 %v1257
  %v1388 = vunpack.c.l.b16 %v1258
  %v1389 = vunpack.c.h.b16 %v1258
  %v1390 = vunpack.c.l.b16 %v1259
  %v1391 = vunpack.c.h.b16 %v1259
  %v1392 = vunpack.c.l.b16 %v1260
  %v1393 = vunpack.c.h.b16 %v1260
  %v1394 = vunpack.c.l.b16 %v1261
  %v1395 = vunpack.c.h.b16 %v1261
  %v1396 = vunpack.c.l.b16 %v1262
  %v1397 = vunpack.c.h.b16 %v1262
  %v1398 = vunpack.c.l.b16 %v1263
  %v1399 = vunpack.c.h.b16 %v1263
  %v1400 = vunpack.c.l.b16 %v1264
  %v1401 = vunpack.c.h.b16 %v1264
  %v1402 = vunpack.c.l.b16 %v1265
  %v1403 = vunpack.c.h.b16 %v1265
  %v1404 = vunpack.c.l.b16 %v1266
  %v1405 = vunpack.c.h.b16 %v1266
  %v1406 = vunpack.c.l.b16 %v1267
  %v1407 = vunpack.c.h.b16 %v1267
  %v1408 = vunpack.c.l.b16 %v1268
  %v1409 = vunpack.c.h.b16 %v1268
  %v1410 = vunpack.c.l.b16 %v1269
  %v1411 = vunpack.c.h.b16 %v1269
  %v1412 = vunpack.c.l.b16 %v1270
  %v1413 = vunpack.c.h.b16 %v1270
  %v1414 = vunpack.c.l.b16 %v1271
  %v1415 = vunpack.c.h.b16 %v1271
  %v1416 = vunpack.c.l.b16 %v1272
  %v1417 = vunpack.c.h.b16 %v1272
  %v1418 = vpack.c.b16 %v1358, %v1354
  %v1419 = vpack.c.b16 %v1359, %v1355
  %v1420 = vpack.c.b16 %v1360, %v1356
  %v1421 = vpack.c.b16 %v1361, %v1357
  %v1422 = vpack.c.b16 %v1366, %v1362
  %v1423 = vpack.c.b16 %v1367, %v1363
  %v1424 = vpack.c.b16 %v1368, %v1364
  %v1425 = vpack.c.b16 %v1369, %v1365
  %v1426 = vpack.c.b16 %v1374, %v1370
  %v1427 = vpack.c.b16 %v1375, %v1371
  %v1428 = vpack.c.b16 %v1376, %v1372
  %v1429 = vpack.c.b16 %v1377, %v1373
  %v1430 = vpack.c.b16 %v1382, %v1378
  %v1431 = vpack.c.b16 %v1383, %v1379
  %v1432 = vpack.c.b16 %v1384, %v1380
  %v1433 = vpack.c.b16 %v1385, %v1381
  %v1434 = vpack.c.b16 %v1390, %v1386
  %v1435 = vpack.c.b16 %v1391, %v1387
  %v1436 = vpack.c.b16 %v1392, %v1388
  %v1437 = vpack.c.b16 %v1393, %v1389
  %v1438 = vpack.c.b16 %v1398, %v1394
  %v1439 = vpack.c.b16 %v1399, %v1395
  %v1440 = vpack.c.b16 %v1400, %v1396
  %v1441 = vpack.c.b16 %v1401, %v1397
  %v1442 = vpack.c.b16 %v1406, %v1402
  %v1443 = vpack.c.b16 %v1407, %v1403
  %v1444 = vpack.c.b16 %v1408, %v1404
  %v1445 = vpack.c.b16 %v1409, %v1405
  %v1446 = vpack.c.b16 %v1414, %v1410
  %v1447 = vpack.c.b16 %v1415, %v1411
  %v1448 = vpack.c.b16 %v1416, %v1412
  %v1449 = vpack.c.b16 %v1417, %v1413
  %1482 = vmatprep.subr.bf16.mxu0 %v1419
  %1483 = vmatpush1.bf16.msra.mxu0 %v1418
  %1484 = vmatprep.subr.bf16.mxu0 %v1423
  %1485 = vmatpush1.bf16.msra.mxu0 %v1422
  %1486 = vmatprep.subr.bf16.mxu0 %v1427
  %1487 = vmatpush1.bf16.msra.mxu0 %v1426
  %1488 = vmatprep.subr.bf16.mxu0 %v1431
  %1489 = vmatpush1.bf16.msra.mxu0 %v1430
  %1490 = vmatprep.subr.bf16.mxu0 %v1435
  %1491 = vmatpush1.bf16.msra.mxu0 %v1434
  %1492 = vmatprep.subr.bf16.mxu0 %v1439
  %1493 = vmatpush1.bf16.msra.mxu0 %v1438
  %1494 = vmatprep.subr.bf16.mxu0 %v1443
  %1495 = vmatpush1.bf16.msra.mxu0 %v1442
  %1496 = vmatprep.subr.bf16.mxu0 %v1447
  %1497 = vmatpush1.bf16.msra.mxu0 %v1446
  %1498 = vmatprep.subr.bf16.mxu0 0
  %1499 = vmatpush1.bf16.msra.mxu0 0
  %1500 = vmatprep.subr.bf16.mxu0 0
  %1501 = vmatpush1.bf16.msra.mxu0 0
  %1502 = vmatprep.subr.bf16.mxu0 0
  %1503 = vmatpush1.bf16.msra.mxu0 0
  %1504 = vmatprep.subr.bf16.mxu0 0
  %1505 = vmatpush1.bf16.msra.mxu0 0
  %1506 = vmatprep.subr.bf16.mxu0 0
  %1507 = vmatpush1.bf16.msra.mxu0 0
  %1508 = vmatprep.subr.bf16.mxu0 0
  %1509 = vmatpush1.bf16.msra.mxu0 0
  %1510 = vmatprep.subr.bf16.mxu0 0
  %1511 = vmatpush1.bf16.msra.mxu0 0
  %1512 = vmatprep.subr.bf16.mxu0 0
  %1513 = vmatpush1.bf16.msra.mxu0 0
  %1514 = vmatprep.mubr.bf16.mxu0 0
  %1515 = vmatmul.mubr.bf16.gmra.mrb[0].mxu0 %v1321
  %v1516 = vpop.f32.mrb[0].mxu0
  %v1517 = vadd.f32 0.0, %v1516
  %v1518 = vpop.f32.mrb[0].mxu0
  %v1519 = vadd.f32 0.0, %v1518
  %v1520 = vpop.f32.mrb[0].mxu0
  %v1521 = vadd.f32 0.0, %v1520
  %v1522 = vpop.f32.mrb[0].mxu0
  %v1523 = vadd.f32 0.0, %v1522
  %1524 = vdwg.mxu0
  %1525 = vmatprep.subr.bf16.mxu0 %v1421
  %1526 = vmatpush1.bf16.msra.mxu0 %v1420
  %1527 = vmatprep.subr.bf16.mxu0 %v1425
  %1528 = vmatpush1.bf16.msra.mxu0 %v1424
  %1529 = vmatprep.subr.bf16.mxu0 %v1429
  %1530 = vmatpush1.bf16.msra.mxu0 %v1428
  %1531 = vmatprep.subr.bf16.mxu0 %v1433
  %1532 = vmatpush1.bf16.msra.mxu0 %v1432
  %1533 = vmatprep.subr.bf16.mxu0 %v1437
  %1534 = vmatpush1.bf16.msra.mxu0 %v1436
  %1535 = vmatprep.subr.bf16.mxu0 %v1441
  %1536 = vmatpush1.bf16.msra.mxu0 %v1440
  %1537 = vmatprep.subr.bf16.mxu0 %v1445
  %1538 = vmatpush1.bf16.msra.mxu0 %v1444
  %1539 = vmatprep.subr.bf16.mxu0 %v1449
  %1540 = vmatpush1.bf16.msra.mxu0 %v1448
  %1541 = vmatprep.subr.bf16.mxu0 0
  %1542 = vmatpush1.bf16.msra.mxu0 0
  %1543 = vmatprep.subr.bf16.mxu0 0
  %1544 = vmatpush1.bf16.msra.mxu0 0
  %1545 = vmatprep.subr.bf16.mxu0 0
  %1546 = vmatpush1.bf16.msra.mxu0 0
  %1547 = vmatprep.subr.bf16.mxu0 0
  %1548 = vmatpush1.bf16.msra.mxu0 0
  %1549 = vmatprep.subr.bf16.mxu0 0
  %1550 = vmatpush1.bf16.msra.mxu0 0
  %1551 = vmatprep.subr.bf16.mxu0 0
  %1552 = vmatpush1.bf16.msra.mxu0 0
  %1553 = vmatprep.subr.bf16.mxu0 0
  %1554 = vmatpush1.bf16.msra.mxu0 0
  %1555 = vmatprep.subr.bf16.mxu0 0
  %1556 = vmatpush1.bf16.msra.mxu0 0
  %1557 = vmatprep.mubr.bf16.mxu0 0
  %1558 = vmatmul.mubr.bf16.gmra.mrb[0].mxu0 %v1321
  %v1559 = vpop.f32.mrb[0].mxu0
  %v1560 = vadd.f32 0.0, %v1559
  %v1561 = vpop.f32.mrb[0].mxu0
  %v1562 = vadd.f32 0.0, %v1561
  %v1563 = vpop.f32.mrb[0].mxu0
  %v1564 = vadd.f32 0.0, %v1563
  %v1565 = vpop.f32.mrb[0].mxu0
  %v1566 = vadd.f32 0.0, %v1565
  %1567 = vdwg.mxu0
  %v1568 = vadd.f32 %v1313, %v1517
  %v1569 = vadd.f32 %v1314, %v1519
  %v1570 = vadd.f32 %v1315, %v1560
  %v1571 = vadd.f32 %v1316, %v1562
  %v1572 = vadd.f32 %v1317, %v1521
  %v1573 = vadd.f32 %v1318, %v1523
  %v1574 = vadd.f32 %v1319, %v1564
  %v1575 = vadd.f32 %v1320, %v1566
  %v1576 = vxor.u32 %v1568, 2147483648
  %v1577 = vxor.u32 %v1572, 2147483648
  %v1578 = vmul.f32 %v1576, 1.442695
  %v1579 = vpow.pop %v1578
  %v1580 = vmul.f32 %v1577, 1.442695
  %v1581 = vpow.pop %v1580
  %v1582 = vadd.f32 %v1579, 1.0
  %v1583 = vadd.f32 %v1581, 1.0
  %v1584 = vrcp.pop %v1582
  %v1585 = vmul.f32 1.0, %v1584
  %v1586 = vrcp.pop %v1583
  %v1587 = vmul.f32 1.0, %v1586
  %v1588 = vxor.u32 %v1569, 2147483648
  %v1589 = vxor.u32 %v1573, 2147483648
  %v1590 = vmul.f32 %v1588, 1.442695
  %v1591 = vpow.pop %v1590
  %v1592 = vmul.f32 %v1589, 1.442695
  %v1593 = vpow.pop %v1592
  %v1594 = vadd.f32 %v1591, 1.0
  %v1595 = vadd.f32 %v1593, 1.0
  %v1596 = vrcp.pop %v1594
  %v1597 = vmul.f32 1.0, %v1596
  %v1598 = vrcp.pop %v1595
  %v1599 = vmul.f32 1.0, %v1598
  %v1600 = vtanh.pop %v1570
  %v1601 = vtanh.pop %v1574
  %v1602 = vxor.u32 %v1571, 2147483648
  %v1603 = vxor.u32 %v1575, 2147483648
  %v1604 = vmul.f32 %v1602, 1.442695
  %v1605 = vpow.pop %v1604
  %v1606 = vmul.f32 %v1603, 1.442695
  %v1607 = vpow.pop %v1606
  %v1608 = vadd.f32 %v1605, 1.0
  %v1609 = vadd.f32 %v1607, 1.0
  %v1610 = vrcp.pop %v1608
  %v1611 = vmul.f32 1.0, %v1610
  %v1612 = vrcp.pop %v1609
  %v1613 = vmul.f32 1.0, %v1612
  %v1614 = vmul.f32 %v1597, %v1307
  %v1615 = vmul.f32 %v1599, %v1308
  %v1616 = vmul.f32 %v1585, %v1600
  %v1617 = vmul.f32 %v1587, %v1601
  %v1618 = vadd.f32 %v1614, %v1616
  %v1619 = vadd.f32 %v1615, %v1617
  %v1620 = vtanh.pop %v1618
  %v1621 = vtanh.pop %v1619
  %v1622 = vmul.f32 %v1611, %v1620
  %v1623 = vmul.f32 %v1613, %v1621
  %1624 = vst [vmem:[%s14] sm:$0xff] %v1622
  %1625 = vst [vmem:[%s14 + $0x8] sm:$0xff] %v1623
  %s1626 = scalar_lea.vmem [#allocation7], 448
  %v1627 = vld [vmem:[%s1626] sm:$0xff]
  %v1628 = vld [vmem:[%s1626 + $0x8] sm:$0xff]
  %v1629 = vld [vmem:[%s1626 + $0x10] sm:$0xff]
  %v1630 = vld [vmem:[%s1626 + $0x18] sm:$0xff]
  %v1631 = vld [vmem:[%s1626 + $0x20] sm:$0xff]
  %v1632 = vld [vmem:[%s1626 + $0x28] sm:$0xff]
  %v1633 = vld [vmem:[%s1626 + $0x30] sm:$0xff]
  %v1634 = vld [vmem:[%s1626 + $0x38] sm:$0xff]
  %v1635 = vpack.c.bf16 %v1310, %v1309
  %v1668 = vunpack.c.l.b16 %v1273
  %v1669 = vunpack.c.h.b16 %v1273
  %v1670 = vunpack.c.l.b16 %v1274
  %v1671 = vunpack.c.h.b16 %v1274
  %v1672 = vunpack.c.l.b16 %v1275
  %v1673 = vunpack.c.h.b16 %v1275
  %v1674 = vunpack.c.l.b16 %v1276
  %v1675 = vunpack.c.h.b16 %v1276
  %v1676 = vunpack.c.l.b16 %v1277
  %v1677 = vunpack.c.h.b16 %v1277
  %v1678 = vunpack.c.l.b16 %v1278
  %v1679 = vunpack.c.h.b16 %v1278
  %v1680 = vunpack.c.l.b16 %v1279
  %v1681 = vunpack.c.h.b16 %v1279
  %v1682 = vunpack.c.l.b16 %v1280
  %v1683 = vunpack.c.h.b16 %v1280
  %v1684 = vunpack.c.l.b16 %v1281
  %v1685 = vunpack.c.h.b16 %v1281
  %v1686 = vunpack.c.l.b16 %v1282
  %v1687 = vunpack.c.h.b16 %v1282
  %v1688 = vunpack.c.l.b16 %v1283
  %v1689 = vunpack.c.h.b16 %v1283
  %v1690 = vunpack.c.l.b16 %v1284
  %v1691 = vunpack.c.h.b16 %v1284
  %v1692 = vunpack.c.l.b16 %v1285
  %v1693 = vunpack.c.h.b16 %v1285
  %v1694 = vunpack.c.l.b16 %v1286
  %v1695 = vunpack.c.h.b16 %v1286
  %v1696 = vunpack.c.l.b16 %v1287
  %v1697 = vunpack.c.h.b16 %v1287
  %v1698 = vunpack.c.l.b16 %v1288
  %v1699 = vunpack.c.h.b16 %v1288
  %v1700 = vunpack.c.l.b16 %v1289
  %v1701 = vunpack.c.h.b16 %v1289
  %v1702 = vunpack.c.l.b16 %v1290
  %v1703 = vunpack.c.h.b16 %v1290
  %v1704 = vunpack.c.l.b16 %v1291
  %v1705 = vunpack.c.h.b16 %v1291
  %v1706 = vunpack.c.l.b16 %v1292
  %v1707 = vunpack.c.h.b16 %v1292
  %v1708 = vunpack.c.l.b16 %v1293
  %v1709 = vunpack.c.h.b16 %v1293
  %v1710 = vunpack.c.l.b16 %v1294
  %v1711 = vunpack.c.h.b16 %v1294
  %v1712 = vunpack.c.l.b16 %v1295
  %v1713 = vunpack.c.h.b16 %v1295
  %v1714 = vunpack.c.l.b16 %v1296
  %v1715 = vunpack.c.h.b16 %v1296
  %v1716 = vunpack.c.l.b16 %v1297
  %v1717 = vunpack.c.h.b16 %v1297
  %v1718 = vunpack.c.l.b16 %v1298
  %v1719 = vunpack.c.h.b16 %v1298
  %v1720 = vunpack.c.l.b16 %v1299
  %v1721 = vunpack.c.h.b16 %v1299
  %v1722 = vunpack.c.l.b16 %v1300
  %v1723 = vunpack.c.h.b16 %v1300
  %v1724 = vunpack.c.l.b16 %v1301
  %v1725 = vunpack.c.h.b16 %v1301
  %v1726 = vunpack.c.l.b16 %v1302
  %v1727 = vunpack.c.h.b16 %v1302
  %v1728 = vunpack.c.l.b16 %v1303
  %v1729 = vunpack.c.h.b16 %v1303
  %v1730 = vunpack.c.l.b16 %v1304
  %v1731 = vunpack.c.h.b16 %v1304
  %v1732 = vpack.c.b16 %v1672, %v1668
  %v1733 = vpack.c.b16 %v1673, %v1669
  %v1734 = vpack.c.b16 %v1674, %v1670
  %v1735 = vpack.c.b16 %v1675, %v1671
  %v1736 = vpack.c.b16 %v1680, %v1676
  %v1737 = vpack.c.b16 %v1681, %v1677
  %v1738 = vpack.c.b16 %v1682, %v1678
  %v1739 = vpack.c.b16 %v1683, %v1679
  %v1740 = vpack.c.b16 %v1688, %v1684
  %v1741 = vpack.c.b16 %v1689, %v1685
  %v1742 = vpack.c.b16 %v1690, %v1686
  %v1743 = vpack.c.b16 %v1691, %v1687
  %v1744 = vpack.c.b16 %v1696, %v1692
  %v1745 = vpack.c.b16 %v1697, %v1693
  %v1746 = vpack.c.b16 %v1698, %v1694
  %v1747 = vpack.c.b16 %v1699, %v1695
  %v1748 = vpack.c.b16 %v1704, %v1700
  %v1749 = vpack.c.b16 %v1705, %v1701
  %v1750 = vpack.c.b16 %v1706, %v1702
  %v1751 = vpack.c.b16 %v1707, %v1703
  %v1752 = vpack.c.b16 %v1712, %v1708
  %v1753 = vpack.c.b16 %v1713, %v1709
  %v1754 = vpack.c.b16 %v1714, %v1710
  %v1755 = vpack.c.b16 %v1715, %v1711
  %v1756 = vpack.c.b16 %v1720, %v1716
  %v1757 = vpack.c.b16 %v1721, %v1717
  %v1758 = vpack.c.b16 %v1722, %v1718
  %v1759 = vpack.c.b16 %v1723, %v1719
  %v1760 = vpack.c.b16 %v1728, %v1724
  %v1761 = vpack.c.b16 %v1729, %v1725
  %v1762 = vpack.c.b16 %v1730, %v1726
  %v1763 = vpack.c.b16 %v1731, %v1727
  %1796 = vmatprep.subr.bf16.mxu0 %v1733
  %1797 = vmatpush1.bf16.msra.mxu0 %v1732
  %1798 = vmatprep.subr.bf16.mxu0 %v1737
  %1799 = vmatpush1.bf16.msra.mxu0 %v1736
  %1800 = vmatprep.subr.bf16.mxu0 %v1741
  %1801 = vmatpush1.bf16.msra.mxu0 %v1740
  %1802 = vmatprep.subr.bf16.mxu0 %v1745
  %1803 = vmatpush1.bf16.msra.mxu0 %v1744
  %1804 = vmatprep.subr.bf16.mxu0 %v1749
  %1805 = vmatpush1.bf16.msra.mxu0 %v1748
  %1806 = vmatprep.subr.bf16.mxu0 %v1753
  %1807 = vmatpush1.bf16.msra.mxu0 %v1752
  %1808 = vmatprep.subr.bf16.mxu0 %v1757
  %1809 = vmatpush1.bf16.msra.mxu0 %v1756
  %1810 = vmatprep.subr.bf16.mxu0 %v1761
  %1811 = vmatpush1.bf16.msra.mxu0 %v1760
  %1812 = vmatprep.subr.bf16.mxu0 0
  %1813 = vmatpush1.bf16.msra.mxu0 0
  %1814 = vmatprep.subr.bf16.mxu0 0
  %1815 = vmatpush1.bf16.msra.mxu0 0
  %1816 = vmatprep.subr.bf16.mxu0 0
  %1817 = vmatpush1.bf16.msra.mxu0 0
  %1818 = vmatprep.subr.bf16.mxu0 0
  %1819 = vmatpush1.bf16.msra.mxu0 0
  %1820 = vmatprep.subr.bf16.mxu0 0
  %1821 = vmatpush1.bf16.msra.mxu0 0
  %1822 = vmatprep.subr.bf16.mxu0 0
  %1823 = vmatpush1.bf16.msra.mxu0 0
  %1824 = vmatprep.subr.bf16.mxu0 0
  %1825 = vmatpush1.bf16.msra.mxu0 0
  %1826 = vmatprep.subr.bf16.mxu0 0
  %1827 = vmatpush1.bf16.msra.mxu0 0
  %1828 = vmatprep.mubr.bf16.mxu0 0
  %1829 = vmatmul.mubr.bf16.gmra.mrb[0].mxu0 %v1635
  %v1830 = vpop.f32.mrb[0].mxu0
  %v1831 = vadd.f32 0.0, %v1830
  %v1832 = vpop.f32.mrb[0].mxu0
  %v1833 = vadd.f32 0.0, %v1832
  %v1834 = vpop.f32.mrb[0].mxu0
  %v1835 = vadd.f32 0.0, %v1834
  %v1836 = vpop.f32.mrb[0].mxu0
  %v1837 = vadd.f32 0.0, %v1836
  %1838 = vdwg.mxu0
  %1839 = vmatprep.subr.bf16.mxu0 %v1735
  %1840 = vmatpush1.bf16.msra.mxu0 %v1734
  %1841 = vmatprep.subr.bf16.mxu0 %v1739
  %1842 = vmatpush1.bf16.msra.mxu0 %v1738
  %1843 = vmatprep.subr.bf16.mxu0 %v1743
  %1844 = vmatpush1.bf16.msra.mxu0 %v1742
  %1845 = vmatprep.subr.bf16.mxu0 %v1747
  %1846 = vmatpush1.bf16.msra.mxu0 %v1746
  %1847 = vmatprep.subr.bf16.mxu0 %v1751
  %1848 = vmatpush1.bf16.msra.mxu0 %v1750
  %1849 = vmatprep.subr.bf16.mxu0 %v1755
  %1850 = vmatpush1.bf16.msra.mxu0 %v1754
  %1851 = vmatprep.subr.bf16.mxu0 %v1759
  %1852 = vmatpush1.bf16.msra.mxu0 %v1758
  %1853 = vmatprep.subr.bf16.mxu0 %v1763
  %1854 = vmatpush1.bf16.msra.mxu0 %v1762
  %1855 = vmatprep.subr.bf16.mxu0 0
  %1856 = vmatpush1.bf16.msra.mxu0 0
  %1857 = vmatprep.subr.bf16.mxu0 0
  %1858 = vmatpush1.bf16.msra.mxu0 0
  %1859 = vmatprep.subr.bf16.mxu0 0
  %1860 = vmatpush1.bf16.msra.mxu0 0
  %1861 = vmatprep.subr.bf16.mxu0 0
  %1862 = vmatpush1.bf16.msra.mxu0 0
  %1863 = vmatprep.subr.bf16.mxu0 0
  %1864 = vmatpush1.bf16.msra.mxu0 0
  %1865 = vmatprep.subr.bf16.mxu0 0
  %1866 = vmatpush1.bf16.msra.mxu0 0
  %1867 = vmatprep.subr.bf16.mxu0 0
  %1868 = vmatpush1.bf16.msra.mxu0 0
  %1869 = vmatprep.subr.bf16.mxu0 0
  %1870 = vmatpush1.bf16.msra.mxu0 0
  %1871 = vmatprep.mubr.bf16.mxu0 0
  %1872 = vmatmul.mubr.bf16.gmra.mrb[0].mxu0 %v1635
  %v1873 = vpop.f32.mrb[0].mxu0
  %v1874 = vadd.f32 0.0, %v1873
  %v1875 = vpop.f32.mrb[0].mxu0
  %v1876 = vadd.f32 0.0, %v1875
  %v1877 = vpop.f32.mrb[0].mxu0
  %v1878 = vadd.f32 0.0, %v1877
  %v1879 = vpop.f32.mrb[0].mxu0
  %v1880 = vadd.f32 0.0, %v1879
  %1881 = vdwg.mxu0
  %v1882 = vadd.f32 %v1627, %v1831
  %v1883 = vadd.f32 %v1628, %v1833
  %v1884 = vadd.f32 %v1629, %v1874
  %v1885 = vadd.f32 %v1630, %v1876
  %v1886 = vadd.f32 %v1631, %v1835
  %v1887 = vadd.f32 %v1632, %v1837
  %v1888 = vadd.f32 %v1633, %v1878
  %v1889 = vadd.f32 %v1634, %v1880
  %v1890 = vxor.u32 %v1882, 2147483648
  %v1891 = vxor.u32 %v1886, 2147483648
  %v1892 = vmul.f32 %v1890, 1.442695
  %v1893 = vpow.pop %v1892
  %v1894 = vmul.f32 %v1891, 1.442695
  %v1895 = vpow.pop %v1894
  %v1896 = vadd.f32 %v1893, 1.0
  %v1897 = vadd.f32 %v1895, 1.0
  %v1898 = vrcp.pop %v1896
  %v1899 = vmul.f32 1.0, %v1898
  %v1900 = vrcp.pop %v1897
  %v1901 = vmul.f32 1.0, %v1900
  %v1902 = vxor.u32 %v1883, 2147483648
  %v1903 = vxor.u32 %v1887, 2147483648
  %v1904 = vmul.f32 %v1902, 1.442695
  %v1905 = vpow.pop %v1904
  %v1906 = vmul.f32 %v1903, 1.442695
  %v1907 = vpow.pop %v1906
  %v1908 = vadd.f32 %v1905, 1.0
  %v1909 = vadd.f32 %v1907, 1.0
  %v1910 = vrcp.pop %v1908
  %v1911 = vmul.f32 1.0, %v1910
  %v1912 = vrcp.pop %v1909
  %v1913 = vmul.f32 1.0, %v1912
  %v1914 = vtanh.pop %v1884
  %v1915 = vtanh.pop %v1888
  %v1916 = vxor.u32 %v1885, 2147483648
  %v1917 = vxor.u32 %v1889, 2147483648
  %v1918 = vmul.f32 %v1916, 1.442695
  %v1919 = vpow.pop %v1918
  %v1920 = vmul.f32 %v1917, 1.442695
  %v1921 = vpow.pop %v1920
  %v1922 = vadd.f32 %v1919, 1.0
  %v1923 = vadd.f32 %v1921, 1.0
  %v1924 = vrcp.pop %v1922
  %v1925 = vmul.f32 1.0, %v1924
  %v1926 = vrcp.pop %v1923
  %v1927 = vmul.f32 1.0, %v1926
  %v1928 = vmul.f32 %v1911, %v1311
  %v1929 = vmul.f32 %v1913, %v1312
  %v1930 = vmul.f32 %v1899, %v1914
  %v1931 = vmul.f32 %v1901, %v1915
  %v1932 = vadd.f32 %v1928, %v1930
  %v1933 = vadd.f32 %v1929, %v1931
  %v1934 = vtanh.pop %v1932
  %v1935 = vtanh.pop %v1933
  %v1936 = vmul.f32 %v1925, %v1934
  %v1937 = vmul.f32 %v1927, %v1935
  %s1938 = scalar_lea.vmem %s89, 112
  %1939 = vst [vmem:[%s1938] sm:$0xff] %v1936
  %1940 = vst [vmem:[%s1938 + $0x8] sm:$0xff] %v1937
  %s1941 = scalar_lea.vmem [#allocation6], 64
  %v1942 = vld [vmem:[%s1941] sm:$0xff]
  %v1943 = vld [vmem:[%s1941 + $0x8] sm:$0xff]
  %v1944 = vld [vmem:[%s1941 + $0x10] sm:$0xff]
  %v1945 = vld [vmem:[%s1941 + $0x18] sm:$0xff]
  %v1946 = vld [vmem:[%s1941 + $0x20] sm:$0xff]
  %v1947 = vld [vmem:[%s1941 + $0x28] sm:$0xff]
  %v1948 = vld [vmem:[%s1941 + $0x30] sm:$0xff]
  %v1949 = vld [vmem:[%s1941 + $0x38] sm:$0xff]
  %v1950 = vpack.c.bf16 %v1623, %v1622
  %1951 = vmatprep.subr.bf16.mxu0 %v1419
  %1952 = vmatpush1.bf16.msra.mxu0 %v1418
  %1953 = vmatprep.subr.bf16.mxu0 %v1423
  %1954 = vmatpush1.bf16.msra.mxu0 %v1422
  %1955 = vmatprep.subr.bf16.mxu0 %v1427
  %1956 = vmatpush1.bf16.msra.mxu0 %v1426
  %1957 = vmatprep.subr.bf16.mxu0 %v1431
  %1958 = vmatpush1.bf16.msra.mxu0 %v1430
  %1959 = vmatprep.subr.bf16.mxu0 %v1435
  %1960 = vmatpush1.bf16.msra.mxu0 %v1434
  %1961 = vmatprep.subr.bf16.mxu0 %v1439
  %1962 = vmatpush1.bf16.msra.mxu0 %v1438
  %1963 = vmatprep.subr.bf16.mxu0 %v1443
  %1964 = vmatpush1.bf16.msra.mxu0 %v1442
  %1965 = vmatprep.subr.bf16.mxu0 %v1447
  %1966 = vmatpush1.bf16.msra.mxu0 %v1446
  %1967 = vmatprep.subr.bf16.mxu0 0
  %1968 = vmatpush1.bf16.msra.mxu0 0
  %1969 = vmatprep.subr.bf16.mxu0 0
  %1970 = vmatpush1.bf16.msra.mxu0 0
  %1971 = vmatprep.subr.bf16.mxu0 0
  %1972 = vmatpush1.bf16.msra.mxu0 0
  %1973 = vmatprep.subr.bf16.mxu0 0
  %1974 = vmatpush1.bf16.msra.mxu0 0
  %1975 = vmatprep.subr.bf16.mxu0 0
  %1976 = vmatpush1.bf16.msra.mxu0 0
  %1977 = vmatprep.subr.bf16.mxu0 0
  %1978 = vmatpush1.bf16.msra.mxu0 0
  %1979 = vmatprep.subr.bf16.mxu0 0
  %1980 = vmatpush1.bf16.msra.mxu0 0
  %1981 = vmatprep.subr.bf16.mxu0 0
  %1982 = vmatpush1.bf16.msra.mxu0 0
  %1983 = vmatprep.mubr.bf16.mxu0 0
  %1984 = vmatmul.mubr.bf16.gmra.mrb[0].mxu0 %v1950
  %v1985 = vpop.f32.mrb[0].mxu0
  %v1986 = vadd.f32 0.0, %v1985
  %v1987 = vpop.f32.mrb[0].mxu0
  %v1988 = vadd.f32 0.0, %v1987
  %v1989 = vpop.f32.mrb[0].mxu0
  %v1990 = vadd.f32 0.0, %v1989
  %v1991 = vpop.f32.mrb[0].mxu0
  %v1992 = vadd.f32 0.0, %v1991
  %1993 = vdwg.mxu0
  %1994 = vmatprep.subr.bf16.mxu0 %v1421
  %1995 = vmatpush1.bf16.msra.mxu0 %v1420
  %1996 = vmatprep.subr.bf16.mxu0 %v1425
  %1997 = vmatpush1.bf16.msra.mxu0 %v1424
  %1998 = vmatprep.subr.bf16.mxu0 %v1429
  %1999 = vmatpush1.bf16.msra.mxu0 %v1428
  %2000 = vmatprep.subr.bf16.mxu0 %v1433
  %2001 = vmatpush1.bf16.msra.mxu0 %v1432
  %2002 = vmatprep.subr.bf16.mxu0 %v1437
  %2003 = vmatpush1.bf16.msra.mxu0 %v1436
  %2004 = vmatprep.subr.bf16.mxu0 %v1441
  %2005 = vmatpush1.bf16.msra.mxu0 %v1440
  %2006 = vmatprep.subr.bf16.mxu0 %v1445
  %2007 = vmatpush1.bf16.msra.mxu0 %v1444
  %2008 = vmatprep.subr.bf16.mxu0 %v1449
  %2009 = vmatpush1.bf16.msra.mxu0 %v1448
  %2010 = vmatprep.subr.bf16.mxu0 0
  %2011 = vmatpush1.bf16.msra.mxu0 0
  %2012 = vmatprep.subr.bf16.mxu0 0
  %2013 = vmatpush1.bf16.msra.mxu0 0
  %2014 = vmatprep.subr.bf16.mxu0 0
  %2015 = vmatpush1.bf16.msra.mxu0 0
  %2016 = vmatprep.subr.bf16.mxu0 0
  %2017 = vmatpush1.bf16.msra.mxu0 0
  %2018 = vmatprep.subr.bf16.mxu0 0
  %2019 = vmatpush1.bf16.msra.mxu0 0
  %2020 = vmatprep.subr.bf16.mxu0 0
  %2021 = vmatpush1.bf16.msra.mxu0 0
  %2022 = vmatprep.subr.bf16.mxu0 0
  %2023 = vmatpush1.bf16.msra.mxu0 0
  %2024 = vmatprep.subr.bf16.mxu0 0
  %2025 = vmatpush1.bf16.msra.mxu0 0
  %2026 = vmatprep.mubr.bf16.mxu0 0
  %2027 = vmatmul.mubr.bf16.gmra.mrb[0].mxu0 %v1950
  %v2028 = vpop.f32.mrb[0].mxu0
  %v2029 = vadd.f32 0.0, %v2028
  %v2030 = vpop.f32.mrb[0].mxu0
  %v2031 = vadd.f32 0.0, %v2030
  %v2032 = vpop.f32.mrb[0].mxu0
  %v2033 = vadd.f32 0.0, %v2032
  %v2034 = vpop.f32.mrb[0].mxu0
  %v2035 = vadd.f32 0.0, %v2034
  %2036 = vdwg.mxu0
  %v2037 = vadd.f32 %v1942, %v1986
  %v2038 = vadd.f32 %v1943, %v1988
  %v2039 = vadd.f32 %v1944, %v2029
  %v2040 = vadd.f32 %v1945, %v2031
  %v2041 = vadd.f32 %v1946, %v1990
  %v2042 = vadd.f32 %v1947, %v1992
  %v2043 = vadd.f32 %v1948, %v2033
  %v2044 = vadd.f32 %v1949, %v2035
  %v2045 = vxor.u32 %v2037, 2147483648
  %v2046 = vxor.u32 %v2041, 2147483648
  %v2047 = vmul.f32 %v2045, 1.442695
  %v2048 = vpow.pop %v2047
  %v2049 = vmul.f32 %v2046, 1.442695
  %v2050 = vpow.pop %v2049
  %v2051 = vadd.f32 %v2048, 1.0
  %v2052 = vadd.f32 %v2050, 1.0
  %v2053 = vrcp.pop %v2051
  %v2054 = vmul.f32 1.0, %v2053
  %v2055 = vrcp.pop %v2052
  %v2056 = vmul.f32 1.0, %v2055
  %v2057 = vxor.u32 %v2038, 2147483648
  %v2058 = vxor.u32 %v2042, 2147483648
  %v2059 = vmul.f32 %v2057, 1.442695
  %v2060 = vpow.pop %v2059
  %v2061 = vmul.f32 %v2058, 1.442695
  %v2062 = vpow.pop %v2061
  %v2063 = vadd.f32 %v2060, 1.0
  %v2064 = vadd.f32 %v2062, 1.0
  %v2065 = vrcp.pop %v2063
  %v2066 = vmul.f32 1.0, %v2065
  %v2067 = vrcp.pop %v2064
  %v2068 = vmul.f32 1.0, %v2067
  %v2069 = vtanh.pop %v2039
  %v2070 = vtanh.pop %v2043
  %v2071 = vxor.u32 %v2040, 2147483648
  %v2072 = vxor.u32 %v2044, 2147483648
  %v2073 = vmul.f32 %v2071, 1.442695
  %v2074 = vpow.pop %v2073
  %v2075 = vmul.f32 %v2072, 1.442695
  %v2076 = vpow.pop %v2075
  %v2077 = vadd.f32 %v2074, 1.0
  %v2078 = vadd.f32 %v2076, 1.0
  %v2079 = vrcp.pop %v2077
  %v2080 = vmul.f32 1.0, %v2079
  %v2081 = vrcp.pop %v2078
  %v2082 = vmul.f32 1.0, %v2081
  %v2083 = vmul.f32 %v2066, %v1618
  %v2084 = vmul.f32 %v2068, %v1619
  %v2085 = vmul.f32 %v2054, %v2069
  %v2086 = vmul.f32 %v2056, %v2070
  %v2087 = vadd.f32 %v2083, %v2085
  %v2088 = vadd.f32 %v2084, %v2086
  %v2089 = vtanh.pop %v2087
  %v2090 = vtanh.pop %v2088
  %v2091 = vmul.f32 %v2080, %v2089
  %v2092 = vmul.f32 %v2082, %v2090
  %s2093 = scalar_lea.vmem %s14, 16
  %2094 = vst [vmem:[%s2093] sm:$0xff] %v2091
  %2095 = vst [vmem:[%s2093 + $0x8] sm:$0xff] %v2092
  %s2096 = scalar_lea.vmem [#allocation7], 384
  %v2097 = vld [vmem:[%s2096] sm:$0xff]
  %v2098 = vld [vmem:[%s2096 + $0x8] sm:$0xff]
  %v2099 = vld [vmem:[%s2096 + $0x10] sm:$0xff]
  %v2100 = vld [vmem:[%s2096 + $0x18] sm:$0xff]
  %v2101 = vld [vmem:[%s2096 + $0x20] sm:$0xff]
  %v2102 = vld [vmem:[%s2096 + $0x28] sm:$0xff]
  %v2103 = vld [vmem:[%s2096 + $0x30] sm:$0xff]
  %v2104 = vld [vmem:[%s2096 + $0x38] sm:$0xff]
  %v2105 = vpack.c.bf16 %v1937, %v1936
  %2106 = vmatprep.subr.bf16.mxu0 %v1733
  %2107 = vmatpush1.bf16.msra.mxu0 %v1732
  %2108 = vmatprep.subr.bf16.mxu0 %v1737
  %2109 = vmatpush1.bf16.msra.mxu0 %v1736
  %2110 = vmatprep.subr.bf16.mxu0 %v1741
  %2111 = vmatpush1.bf16.msra.mxu0 %v1740
  %2112 = vmatprep.subr.bf16.mxu0 %v1745
  %2113 = vmatpush1.bf16.msra.mxu0 %v1744
  %2114 = vmatprep.subr.bf16.mxu0 %v1749
  %2115 = vmatpush1.bf16.msra.mxu0 %v1748
  %2116 = vmatprep.subr.bf16.mxu0 %v1753
  %2117 = vmatpush1.bf16.msra.mxu0 %v1752
  %2118 = vmatprep.subr.bf16.mxu0 %v1757
  %2119 = vmatpush1.bf16.msra.mxu0 %v1756
  %2120 = vmatprep.subr.bf16.mxu0 %v1761
  %2121 = vmatpush1.bf16.msra.mxu0 %v1760
  %2122 = vmatprep.subr.bf16.mxu0 0
  %2123 = vmatpush1.bf16.msra.mxu0 0
  %2124 = vmatprep.subr.bf16.mxu0 0
  %2125 = vmatpush1.bf16.msra.mxu0 0
  %2126 = vmatprep.subr.bf16.mxu0 0
  %2127 = vmatpush1.bf16.msra.mxu0 0
  %2128 = vmatprep.subr.bf16.mxu0 0
  %2129 = vmatpush1.bf16.msra.mxu0 0
  %2130 = vmatprep.subr.bf16.mxu0 0
  %2131 = vmatpush1.bf16.msra.mxu0 0
  %2132 = vmatprep.subr.bf16.mxu0 0
  %2133 = vmatpush1.bf16.msra.mxu0 0
  %2134 = vmatprep.subr.bf16.mxu0 0
  %2135 = vmatpush1.bf16.msra.mxu0 0
  %2136 = vmatprep.subr.bf16.mxu0 0
  %2137 = vmatpush1.bf16.msra.mxu0 0
  %2138 = vmatprep.mubr.bf16.mxu0 0
  %2139 = vmatmul.mubr.bf16.gmra.mrb[0].mxu0 %v2105
  %v2140 = vpop.f32.mrb[0].mxu0
  %v2141 = vadd.f32 0.0, %v2140
  %v2142 = vpop.f32.mrb[0].mxu0
  %v2143 = vadd.f32 0.0, %v2142
  %v2144 = vpop.f32.mrb[0].mxu0
  %v2145 = vadd.f32 0.0, %v2144
  %v2146 = vpop.f32.mrb[0].mxu0
  %v2147 = vadd.f32 0.0, %v2146
  %2148 = vdwg.mxu0
  %2149 = vmatprep.subr.bf16.mxu0 %v1735
  %2150 = vmatpush1.bf16.msra.mxu0 %v1734
  %2151 = vmatprep.subr.bf16.mxu0 %v1739
  %2152 = vmatpush1.bf16.msra.mxu0 %v1738
  %2153 = vmatprep.subr.bf16.mxu0 %v1743
  %2154 = vmatpush1.bf16.msra.mxu0 %v1742
  %2155 = vmatprep.subr.bf16.mxu0 %v1747
  %2156 = vmatpush1.bf16.msra.mxu0 %v1746
  %2157 = vmatprep.subr.bf16.mxu0 %v1751
  %2158 = vmatpush1.bf16.msra.mxu0 %v1750
  %2159 = vmatprep.subr.bf16.mxu0 %v1755
  %2160 = vmatpush1.bf16.msra.mxu0 %v1754
  %2161 = vmatprep.subr.bf16.mxu0 %v1759
  %2162 = vmatpush1.bf16.msra.mxu0 %v1758
  %2163 = vmatprep.subr.bf16.mxu0 %v1763
  %2164 = vmatpush1.bf16.msra.mxu0 %v1762
  %2165 = vmatprep.subr.bf16.mxu0 0
  %2166 = vmatpush1.bf16.msra.mxu0 0
  %2167 = vmatprep.subr.bf16.mxu0 0
  %2168 = vmatpush1.bf16.msra.mxu0 0
  %2169 = vmatprep.subr.bf16.mxu0 0
  %2170 = vmatpush1.bf16.msra.mxu0 0
  %2171 = vmatprep.subr.bf16.mxu0 0
  %2172 = vmatpush1.bf16.msra.mxu0 0
  %2173 = vmatprep.subr.bf16.mxu0 0
  %2174 = vmatpush1.bf16.msra.mxu0 0
  %2175 = vmatprep.subr.bf16.mxu0 0
  %2176 = vmatpush1.bf16.msra.mxu0 0
  %2177 = vmatprep.subr.bf16.mxu0 0
  %2178 = vmatpush1.bf16.msra.mxu0 0
  %2179 = vmatprep.subr.bf16.mxu0 0
  %2180 = vmatpush1.bf16.msra.mxu0 0
  %2181 = vmatprep.mubr.bf16.mxu0 0
  %2182 = vmatmul.mubr.bf16.gmra.mrb[0].mxu0 %v2105
  %v2183 = vpop.f32.mrb[0].mxu0
  %v2184 = vadd.f32 0.0, %v2183
  %v2185 = vpop.f32.mrb[0].mxu0
  %v2186 = vadd.f32 0.0, %v2185
  %v2187 = vpop.f32.mrb[0].mxu0
  %v2188 = vadd.f32 0.0, %v2187
  %v2189 = vpop.f32.mrb[0].mxu0
  %v2190 = vadd.f32 0.0, %v2189
  %2191 = vdwg.mxu0
  %v2192 = vadd.f32 %v2097, %v2141
  %v2193 = vadd.f32 %v2098, %v2143
  %v2194 = vadd.f32 %v2099, %v2184
  %v2195 = vadd.f32 %v2100, %v2186
  %v2196 = vadd.f32 %v2101, %v2145
  %v2197 = vadd.f32 %v2102, %v2147
  %v2198 = vadd.f32 %v2103, %v2188
  %v2199 = vadd.f32 %v2104, %v2190
  %v2200 = vxor.u32 %v2192, 2147483648
  %v2201 = vxor.u32 %v2196, 2147483648
  %v2202 = vmul.f32 %v2200, 1.442695
  %v2203 = vpow.pop %v2202
  %v2204 = vmul.f32 %v2201, 1.442695
  %v2205 = vpow.pop %v2204
  %v2206 = vadd.f32 %v2203, 1.0
  %v2207 = vadd.f32 %v2205, 1.0
  %v2208 = vrcp.pop %v2206
  %v2209 = vmul.f32 1.0, %v2208
  %v2210 = vrcp.pop %v2207
  %v2211 = vmul.f32 1.0, %v2210
  %v2212 = vxor.u32 %v2193, 2147483648
  %v2213 = vxor.u32 %v2197, 2147483648
  %v2214 = vmul.f32 %v2212, 1.442695
  %v2215 = vpow.pop %v2214
  %v2216 = vmul.f32 %v2213, 1.442695
  %v2217 = vpow.pop %v2216
  %v2218 = vadd.f32 %v2215, 1.0
  %v2219 = vadd.f32 %v2217, 1.0
  %v2220 = vrcp.pop %v2218
  %v2221 = vmul.f32 1.0, %v2220
  %v2222 = vrcp.pop %v2219
  %v2223 = vmul.f32 1.0, %v2222
  %v2224 = vtanh.pop %v2194
  %v2225 = vtanh.pop %v2198
  %v2226 = vxor.u32 %v2195, 2147483648
  %v2227 = vxor.u32 %v2199, 2147483648
  %v2228 = vmul.f32 %v2226, 1.442695
  %v2229 = vpow.pop %v2228
  %v2230 = vmul.f32 %v2227, 1.442695
  %v2231 = vpow.pop %v2230
  %v2232 = vadd.f32 %v2229, 1.0
  %v2233 = vadd.f32 %v2231, 1.0
  %v2234 = vrcp.pop %v2232
  %v2235 = vmul.f32 1.0, %v2234
  %v2236 = vrcp.pop %v2233
  %v2237 = vmul.f32 1.0, %v2236
  %v2238 = vmul.f32 %v2221, %v1932
  %v2239 = vmul.f32 %v2223, %v1933
  %v2240 = vmul.f32 %v2209, %v2224
  %v2241 = vmul.f32 %v2211, %v2225
  %v2242 = vadd.f32 %v2238, %v2240
  %v2243 = vadd.f32 %v2239, %v2241
  %v2244 = vtanh.pop %v2242
  %v2245 = vtanh.pop %v2243
  %v2246 = vmul.f32 %v2235, %v2244
  %v2247 = vmul.f32 %v2237, %v2245
  %s2248 = scalar_lea.vmem %s89, 96
  %2249 = vst [vmem:[%s2248] sm:$0xff] %v2246
  %2250 = vst [vmem:[%s2248 + $0x8] sm:$0xff] %v2247
  %s2251 = scalar_lea.vmem [#allocation6], 128
  %v2252 = vld [vmem:[%s2251] sm:$0xff]
  %v2253 = vld [vmem:[%s2251 + $0x8] sm:$0xff]
  %v2254 = vld [vmem:[%s2251 + $0x10] sm:$0xff]
  %v2255 = vld [vmem:[%s2251 + $0x18] sm:$0xff]
  %v2256 = vld [vmem:[%s2251 + $0x20] sm:$0xff]
  %v2257 = vld [vmem:[%s2251 + $0x28] sm:$0xff]
  %v2258 = vld [vmem:[%s2251 + $0x30] sm:$0xff]
  %v2259 = vld [vmem:[%s2251 + $0x38] sm:$0xff]
  %v2260 = vpack.c.bf16 %v2092, %v2091
  %2261 = vmatprep.subr.bf16.mxu0 %v1419
  %2262 = vmatpush1.bf16.msra.mxu0 %v1418
  %2263 = vmatprep.subr.bf16.mxu0 %v1423
  %2264 = vmatpush1.bf16.msra.mxu0 %v1422
  %2265 = vmatprep.subr.bf16.mxu0 %v1427
  %2266 = vmatpush1.bf16.msra.mxu0 %v1426
  %2267 = vmatprep.subr.bf16.mxu0 %v1431
  %2268 = vmatpush1.bf16.msra.mxu0 %v1430
  %2269 = vmatprep.subr.bf16.mxu0 %v1435
  %2270 = vmatpush1.bf16.msra.mxu0 %v1434
  %2271 = vmatprep.subr.bf16.mxu0 %v1439
  %2272 = vmatpush1.bf16.msra.mxu0 %v1438
  %2273 = vmatprep.subr.bf16.mxu0 %v1443
  %2274 = vmatpush1.bf16.msra.mxu0 %v1442
  %2275 = vmatprep.subr.bf16.mxu0 %v1447
  %2276 = vmatpush1.bf16.msra.mxu0 %v1446
  %2277 = vmatprep.subr.bf16.mxu0 0
  %2278 = vmatpush1.bf16.msra.mxu0 0
  %2279 = vmatprep.subr.bf16.mxu0 0
  %2280 = vmatpush1.bf16.msra.mxu0 0
  %2281 = vmatprep.subr.bf16.mxu0 0
  %2282 = vmatpush1.bf16.msra.mxu0 0
  %2283 = vmatprep.subr.bf16.mxu0 0
  %2284 = vmatpush1.bf16.msra.mxu0 0
  %2285 = vmatprep.subr.bf16.mxu0 0
  %2286 = vmatpush1.bf16.msra.mxu0 0
  %2287 = vmatprep.subr.bf16.mxu0 0
  %2288 = vmatpush1.bf16.msra.mxu0 0
  %2289 = vmatprep.subr.bf16.mxu0 0
  %2290 = vmatpush1.bf16.msra.mxu0 0
  %2291 = vmatprep.subr.bf16.mxu0 0
  %2292 = vmatpush1.bf16.msra.mxu0 0
  %2293 = vmatprep.mubr.bf16.mxu0 0
  %2294 = vmatmul.mubr.bf16.gmra.mrb[0].mxu0 %v2260
  %v2295 = vpop.f32.mrb[0].mxu0
  %v2296 = vadd.f32 0.0, %v2295
  %v2297 = vpop.f32.mrb[0].mxu0
  %v2298 = vadd.f32 0.0, %v2297
  %v2299 = vpop.f32.mrb[0].mxu0
  %v2300 = vadd.f32 0.0, %v2299
  %v2301 = vpop.f32.mrb[0].mxu0
  %v2302 = vadd.f32 0.0, %v2301
  %2303 = vdwg.mxu0
  %2304 = vmatprep.subr.bf16.mxu0 %v1421
  %2305 = vmatpush1.bf16.msra.mxu0 %v1420
  %2306 = vmatprep.subr.bf16.mxu0 %v1425
  %2307 = vmatpush1.bf16.msra.mxu0 %v1424
  %2308 = vmatprep.subr.bf16.mxu0 %v1429
  %2309 = vmatpush1.bf16.msra.mxu0 %v1428
  %2310 = vmatprep.subr.bf16.mxu0 %v1433
  %2311 = vmatpush1.bf16.msra.mxu0 %v1432
  %2312 = vmatprep.subr.bf16.mxu0 %v1437
  %2313 = vmatpush1.bf16.msra.mxu0 %v1436
  %2314 = vmatprep.subr.bf16.mxu0 %v1441
  %2315 = vmatpush1.bf16.msra.mxu0 %v1440
  %2316 = vmatprep.subr.bf16.mxu0 %v1445
  %2317 = vmatpush1.bf16.msra.mxu0 %v1444
  %2318 = vmatprep.subr.bf16.mxu0 %v1449
  %2319 = vmatpush1.bf16.msra.mxu0 %v1448
  %2320 = vmatprep.subr.bf16.mxu0 0
  %2321 = vmatpush1.bf16.msra.mxu0 0
  %2322 = vmatprep.subr.bf16.mxu0 0
  %2323 = vmatpush1.bf16.msra.mxu0 0
  %2324 = vmatprep.subr.bf16.mxu0 0
  %2325 = vmatpush1.bf16.msra.mxu0 0
  %2326 = vmatprep.subr.bf16.mxu0 0
  %2327 = vmatpush1.bf16.msra.mxu0 0
  %2328 = vmatprep.subr.bf16.mxu0 0
  %2329 = vmatpush1.bf16.msra.mxu0 0
  %2330 = vmatprep.subr.bf16.mxu0 0
  %2331 = vmatpush1.bf16.msra.mxu0 0
  %2332 = vmatprep.subr.bf16.mxu0 0
  %2333 = vmatpush1.bf16.msra.mxu0 0
  %2334 = vmatprep.subr.bf16.mxu0 0
  %2335 = vmatpush1.bf16.msra.mxu0 0
  %2336 = vmatprep.mubr.bf16.mxu0 0
  %2337 = vmatmul.mubr.bf16.gmra.mrb[0].mxu0 %v2260
  %v2338 = vpop.f32.mrb[0].mxu0
  %v2339 = vadd.f32 0.0, %v2338
  %v2340 = vpop.f32.mrb[0].mxu0
  %v2341 = vadd.f32 0.0, %v2340
  %v2342 = vpop.f32.mrb[0].mxu0
  %v2343 = vadd.f32 0.0, %v2342
  %v2344 = vpop.f32.mrb[0].mxu0
  %v2345 = vadd.f32 0.0, %v2344
  %2346 = vdwg.mxu0
  %v2347 = vadd.f32 %v2252, %v2296
  %v2348 = vadd.f32 %v2253, %v2298
  %v2349 = vadd.f32 %v2254, %v2339
  %v2350 = vadd.f32 %v2255, %v2341
  %v2351 = vadd.f32 %v2256, %v2300
  %v2352 = vadd.f32 %v2257, %v2302
  %v2353 = vadd.f32 %v2258, %v2343
  %v2354 = vadd.f32 %v2259, %v2345
  %v2355 = vxor.u32 %v2347, 2147483648
  %v2356 = vxor.u32 %v2351, 2147483648
  %v2357 = vmul.f32 %v2355, 1.442695
  %v2358 = vpow.pop %v2357
  %v2359 = vmul.f32 %v2356, 1.442695
  %v2360 = vpow.pop %v2359
  %v2361 = vadd.f32 %v2358, 1.0
  %v2362 = vadd.f32 %v2360, 1.0
  %v2363 = vrcp.pop %v2361
  %v2364 = vmul.f32 1.0, %v2363
  %v2365 = vrcp.pop %v2362
  %v2366 = vmul.f32 1.0, %v2365
  %v2367 = vxor.u32 %v2348, 2147483648
  %v2368 = vxor.u32 %v2352, 2147483648
  %v2369 = vmul.f32 %v2367, 1.442695
  %v2370 = vpow.pop %v2369
  %v2371 = vmul.f32 %v2368, 1.442695
  %v2372 = vpow.pop %v2371
  %v2373 = vadd.f32 %v2370, 1.0
  %v2374 = vadd.f32 %v2372, 1.0
  %v2375 = vrcp.pop %v2373
  %v2376 = vmul.f32 1.0, %v2375
  %v2377 = vrcp.pop %v2374
  %v2378 = vmul.f32 1.0, %v2377
  %v2379 = vtanh.pop %v2349
  %v2380 = vtanh.pop %v2353
  %v2381 = vxor.u32 %v2350, 2147483648
  %v2382 = vxor.u32 %v2354, 2147483648
  %v2383 = vmul.f32 %v2381, 1.442695
  %v2384 = vpow.pop %v2383
  %v2385 = vmul.f32 %v2382, 1.442695
  %v2386 = vpow.pop %v2385
  %v2387 = vadd.f32 %v2384, 1.0
  %v2388 = vadd.f32 %v2386, 1.0
  %v2389 = vrcp.pop %v2387
  %v2390 = vmul.f32 1.0, %v2389
  %v2391 = vrcp.pop %v2388
  %v2392 = vmul.f32 1.0, %v2391
  %v2393 = vmul.f32 %v2376, %v2087
  %v2394 = vmul.f32 %v2378, %v2088
  %v2395 = vmul.f32 %v2364, %v2379
  %v2396 = vmul.f32 %v2366, %v2380
  %v2397 = vadd.f32 %v2393, %v2395
  %v2398 = vadd.f32 %v2394, %v2396
  %v2399 = vtanh.pop %v2397
  %v2400 = vtanh.pop %v2398
  %v2401 = vmul.f32 %v2390, %v2399
  %v2402 = vmul.f32 %v2392, %v2400
  %s2403 = scalar_lea.vmem %s14, 32
  %2404 = vst [vmem:[%s2403] sm:$0xff] %v2401
  %2405 = vst [vmem:[%s2403 + $0x8] sm:$0xff] %v2402
  %s2406 = scalar_lea.vmem [#allocation7], 320
  %v2407 = vld [vmem:[%s2406] sm:$0xff]
  %v2408 = vld [vmem:[%s2406 + $0x8] sm:$0xff]
  %v2409 = vld [vmem:[%s2406 + $0x10] sm:$0xff]
  %v2410 = vld [vmem:[%s2406 + $0x18] sm:$0xff]
  %v2411 = vld [vmem:[%s2406 + $0x20] sm:$0xff]
  %v2412 = vld [vmem:[%s2406 + $0x28] sm:$0xff]
  %v2413 = vld [vmem:[%s2406 + $0x30] sm:$0xff]
  %v2414 = vld [vmem:[%s2406 + $0x38] sm:$0xff]
  %v2415 = vpack.c.bf16 %v2247, %v2246
  %2416 = vmatprep.subr.bf16.mxu0 %v1733
  %2417 = vmatpush1.bf16.msra.mxu0 %v1732
  %2418 = vmatprep.subr.bf16.mxu0 %v1737
  %2419 = vmatpush1.bf16.msra.mxu0 %v1736
  %2420 = vmatprep.subr.bf16.mxu0 %v1741
  %2421 = vmatpush1.bf16.msra.mxu0 %v1740
  %2422 = vmatprep.subr.bf16.mxu0 %v1745
  %2423 = vmatpush1.bf16.msra.mxu0 %v1744
  %2424 = vmatprep.subr.bf16.mxu0 %v1749
  %2425 = vmatpush1.bf16.msra.mxu0 %v1748
  %2426 = vmatprep.subr.bf16.mxu0 %v1753
  %2427 = vmatpush1.bf16.msra.mxu0 %v1752
  %2428 = vmatprep.subr.bf16.mxu0 %v1757
  %2429 = vmatpush1.bf16.msra.mxu0 %v1756
  %2430 = vmatprep.subr.bf16.mxu0 %v1761
  %2431 = vmatpush1.bf16.msra.mxu0 %v1760
  %2432 = vmatprep.subr.bf16.mxu0 0
  %2433 = vmatpush1.bf16.msra.mxu0 0
  %2434 = vmatprep.subr.bf16.mxu0 0
  %2435 = vmatpush1.bf16.msra.mxu0 0
  %2436 = vmatprep.subr.bf16.mxu0 0
  %2437 = vmatpush1.bf16.msra.mxu0 0
  %2438 = vmatprep.subr.bf16.mxu0 0
  %2439 = vmatpush1.bf16.msra.mxu0 0
  %2440 = vmatprep.subr.bf16.mxu0 0
  %2441 = vmatpush1.bf16.msra.mxu0 0
  %2442 = vmatprep.subr.bf16.mxu0 0
  %2443 = vmatpush1.bf16.msra.mxu0 0
  %2444 = vmatprep.subr.bf16.mxu0 0
  %2445 = vmatpush1.bf16.msra.mxu0 0
  %2446 = vmatprep.subr.bf16.mxu0 0
  %2447 = vmatpush1.bf16.msra.mxu0 0
  %2448 = vmatprep.mubr.bf16.mxu0 0
  %2449 = vmatmul.mubr.bf16.gmra.mrb[0].mxu0 %v2415
  %v2450 = vpop.f32.mrb[0].mxu0
  %v2451 = vadd.f32 0.0, %v2450
  %v2452 = vpop.f32.mrb[0].mxu0
  %v2453 = vadd.f32 0.0, %v2452
  %v2454 = vpop.f32.mrb[0].mxu0
  %v2455 = vadd.f32 0.0, %v2454
  %v2456 = vpop.f32.mrb[0].mxu0
  %v2457 = vadd.f32 0.0, %v2456
  %2458 = vdwg.mxu0
  %2459 = vmatprep.subr.bf16.mxu0 %v1735
  %2460 = vmatpush1.bf16.msra.mxu0 %v1734
  %2461 = vmatprep.subr.bf16.mxu0 %v1739
  %2462 = vmatpush1.bf16.msra.mxu0 %v1738
  %2463 = vmatprep.subr.bf16.mxu0 %v1743
  %2464 = vmatpush1.bf16.msra.mxu0 %v1742
  %2465 = vmatprep.subr.bf16.mxu0 %v1747
  %2466 = vmatpush1.bf16.msra.mxu0 %v1746
  %2467 = vmatprep.subr.bf16.mxu0 %v1751
  %2468 = vmatpush1.bf16.msra.mxu0 %v1750
  %2469 = vmatprep.subr.bf16.mxu0 %v1755
  %2470 = vmatpush1.bf16.msra.mxu0 %v1754
  %2471 = vmatprep.subr.bf16.mxu0 %v1759
  %2472 = vmatpush1.bf16.msra.mxu0 %v1758
  %2473 = vmatprep.subr.bf16.mxu0 %v1763
  %2474 = vmatpush1.bf16.msra.mxu0 %v1762
  %2475 = vmatprep.subr.bf16.mxu0 0
  %2476 = vmatpush1.bf16.msra.mxu0 0
  %2477 = vmatprep.subr.bf16.mxu0 0
  %2478 = vmatpush1.bf16.msra.mxu0 0
  %2479 = vmatprep.subr.bf16.mxu0 0
  %2480 = vmatpush1.bf16.msra.mxu0 0
  %2481 = vmatprep.subr.bf16.mxu0 0
  %2482 = vmatpush1.bf16.msra.mxu0 0
  %2483 = vmatprep.subr.bf16.mxu0 0
  %2484 = vmatpush1.bf16.msra.mxu0 0
  %2485 = vmatprep.subr.bf16.mxu0 0
  %2486 = vmatpush1.bf16.msra.mxu0 0
  %2487 = vmatprep.subr.bf16.mxu0 0
  %2488 = vmatpush1.bf16.msra.mxu0 0
  %2489 = vmatprep.subr.bf16.mxu0 0
  %2490 = vmatpush1.bf16.msra.mxu0 0
  %2491 = vmatprep.mubr.bf16.mxu0 0
  %2492 = vmatmul.mubr.bf16.gmra.mrb[0].mxu0 %v2415
  %v2493 = vpop.f32.mrb[0].mxu0
  %v2494 = vadd.f32 0.0, %v2493
  %v2495 = vpop.f32.mrb[0].mxu0
  %v2496 = vadd.f32 0.0, %v2495
  %v2497 = vpop.f32.mrb[0].mxu0
  %v2498 = vadd.f32 0.0, %v2497
  %v2499 = vpop.f32.mrb[0].mxu0
  %v2500 = vadd.f32 0.0, %v2499
  %2501 = vdwg.mxu0
  %v2502 = vadd.f32 %v2407, %v2451
  %v2503 = vadd.f32 %v2408, %v2453
  %v2504 = vadd.f32 %v2409, %v2494
  %v2505 = vadd.f32 %v2410, %v2496
  %v2506 = vadd.f32 %v2411, %v2455
  %v2507 = vadd.f32 %v2412, %v2457
  %v2508 = vadd.f32 %v2413, %v2498
  %v2509 = vadd.f32 %v2414, %v2500
  %v2510 = vxor.u32 %v2502, 2147483648
  %v2511 = vxor.u32 %v2506, 2147483648
  %v2512 = vmul.f32 %v2510, 1.442695
  %v2513 = vpow.pop %v2512
  %v2514 = vmul.f32 %v2511, 1.442695
  %v2515 = vpow.pop %v2514
  %v2516 = vadd.f32 %v2513, 1.0
  %v2517 = vadd.f32 %v2515, 1.0
  %v2518 = vrcp.pop %v2516
  %v2519 = vmul.f32 1.0, %v2518
  %v2520 = vrcp.pop %v2517
  %v2521 = vmul.f32 1.0, %v2520
  %v2522 = vxor.u32 %v2503, 2147483648
  %v2523 = vxor.u32 %v2507, 2147483648
  %v2524 = vmul.f32 %v2522, 1.442695
  %v2525 = vpow.pop %v2524
  %v2526 = vmul.f32 %v2523, 1.442695
  %v2527 = vpow.pop %v2526
  %v2528 = vadd.f32 %v2525, 1.0
  %v2529 = vadd.f32 %v2527, 1.0
  %v2530 = vrcp.pop %v2528
  %v2531 = vmul.f32 1.0, %v2530
  %v2532 = vrcp.pop %v2529
  %v2533 = vmul.f32 1.0, %v2532
  %v2534 = vtanh.pop %v2504
  %v2535 = vtanh.pop %v2508
  %v2536 = vxor.u32 %v2505, 2147483648
  %v2537 = vxor.u32 %v2509, 2147483648
  %v2538 = vmul.f32 %v2536, 1.442695
  %v2539 = vpow.pop %v2538
  %v2540 = vmul.f32 %v2537, 1.442695
  %v2541 = vpow.pop %v2540
  %v2542 = vadd.f32 %v2539, 1.0
  %v2543 = vadd.f32 %v2541, 1.0
  %v2544 = vrcp.pop %v2542
  %v2545 = vmul.f32 1.0, %v2544
  %v2546 = vrcp.pop %v2543
  %v2547 = vmul.f32 1.0, %v2546
  %v2548 = vmul.f32 %v2531, %v2242
  %v2549 = vmul.f32 %v2533, %v2243
  %v2550 = vmul.f32 %v2519, %v2534
  %v2551 = vmul.f32 %v2521, %v2535
  %v2552 = vadd.f32 %v2548, %v2550
  %v2553 = vadd.f32 %v2549, %v2551
  %v2554 = vtanh.pop %v2552
  %v2555 = vtanh.pop %v2553
  %v2556 = vmul.f32 %v2545, %v2554
  %v2557 = vmul.f32 %v2547, %v2555
  %s2558 = scalar_lea.vmem %s89, 80
  %2559 = vst [vmem:[%s2558] sm:$0xff] %v2556
  %2560 = vst [vmem:[%s2558 + $0x8] sm:$0xff] %v2557
  %s2561 = scalar_lea.vmem [#allocation6], 192
  %v2562 = vld [vmem:[%s2561] sm:$0xff]
  %v2563 = vld [vmem:[%s2561 + $0x8] sm:$0xff]
  %v2564 = vld [vmem:[%s2561 + $0x10] sm:$0xff]
  %v2565 = vld [vmem:[%s2561 + $0x18] sm:$0xff]
  %v2566 = vld [vmem:[%s2561 + $0x20] sm:$0xff]
  %v2567 = vld [vmem:[%s2561 + $0x28] sm:$0xff]
  %v2568 = vld [vmem:[%s2561 + $0x30] sm:$0xff]
  %v2569 = vld [vmem:[%s2561 + $0x38] sm:$0xff]
  %v2570 = vpack.c.bf16 %v2402, %v2401
  %2571 = vmatprep.subr.bf16.mxu0 %v1419
  %2572 = vmatpush1.bf16.msra.mxu0 %v1418
  %2573 = vmatprep.subr.bf16.mxu0 %v1423
  %2574 = vmatpush1.bf16.msra.mxu0 %v1422
  %2575 = vmatprep.subr.bf16.mxu0 %v1427
  %2576 = vmatpush1.bf16.msra.mxu0 %v1426
  %2577 = vmatprep.subr.bf16.mxu0 %v1431
  %2578 = vmatpush1.bf16.msra.mxu0 %v1430
  %2579 = vmatprep.subr.bf16.mxu0 %v1435
  %2580 = vmatpush1.bf16.msra.mxu0 %v1434
  %2581 = vmatprep.subr.bf16.mxu0 %v1439
  %2582 = vmatpush1.bf16.msra.mxu0 %v1438
  %2583 = vmatprep.subr.bf16.mxu0 %v1443
  %2584 = vmatpush1.bf16.msra.mxu0 %v1442
  %2585 = vmatprep.subr.bf16.mxu0 %v1447
  %2586 = vmatpush1.bf16.msra.mxu0 %v1446
  %2587 = vmatprep.subr.bf16.mxu0 0
  %2588 = vmatpush1.bf16.msra.mxu0 0
  %2589 = vmatprep.subr.bf16.mxu0 0
  %2590 = vmatpush1.bf16.msra.mxu0 0
  %2591 = vmatprep.subr.bf16.mxu0 0
  %2592 = vmatpush1.bf16.msra.mxu0 0
  %2593 = vmatprep.subr.bf16.mxu0 0
  %2594 = vmatpush1.bf16.msra.mxu0 0
  %2595 = vmatprep.subr.bf16.mxu0 0
  %2596 = vmatpush1.bf16.msra.mxu0 0
  %2597 = vmatprep.subr.bf16.mxu0 0
  %2598 = vmatpush1.bf16.msra.mxu0 0
  %2599 = vmatprep.subr.bf16.mxu0 0
  %2600 = vmatpush1.bf16.msra.mxu0 0
  %2601 = vmatprep.subr.bf16.mxu0 0
  %2602 = vmatpush1.bf16.msra.mxu0 0
  %2603 = vmatprep.mubr.bf16.mxu0 0
  %2604 = vmatmul.mubr.bf16.gmra.mrb[0].mxu0 %v2570
  %v2605 = vpop.f32.mrb[0].mxu0
  %v2606 = vadd.f32 0.0, %v2605
  %v2607 = vpop.f32.mrb[0].mxu0
  %v2608 = vadd.f32 0.0, %v2607
  %v2609 = vpop.f32.mrb[0].mxu0
  %v2610 = vadd.f32 0.0, %v2609
  %v2611 = vpop.f32.mrb[0].mxu0
  %v2612 = vadd.f32 0.0, %v2611
  %2613 = vdwg.mxu0
  %2614 = vmatprep.subr.bf16.mxu0 %v1421
  %2615 = vmatpush1.bf16.msra.mxu0 %v1420
  %2616 = vmatprep.subr.bf16.mxu0 %v1425
  %2617 = vmatpush1.bf16.msra.mxu0 %v1424
  %2618 = vmatprep.subr.bf16.mxu0 %v1429
  %2619 = vmatpush1.bf16.msra.mxu0 %v1428
  %2620 = vmatprep.subr.bf16.mxu0 %v1433
  %2621 = vmatpush1.bf16.msra.mxu0 %v1432
  %2622 = vmatprep.subr.bf16.mxu0 %v1437
  %2623 = vmatpush1.bf16.msra.mxu0 %v1436
  %2624 = vmatprep.subr.bf16.mxu0 %v1441
  %2625 = vmatpush1.bf16.msra.mxu0 %v1440
  %2626 = vmatprep.subr.bf16.mxu0 %v1445
  %2627 = vmatpush1.bf16.msra.mxu0 %v1444
  %2628 = vmatprep.subr.bf16.mxu0 %v1449
  %2629 = vmatpush1.bf16.msra.mxu0 %v1448
  %2630 = vmatprep.subr.bf16.mxu0 0
  %2631 = vmatpush1.bf16.msra.mxu0 0
  %2632 = vmatprep.subr.bf16.mxu0 0
  %2633 = vmatpush1.bf16.msra.mxu0 0
  %2634 = vmatprep.subr.bf16.mxu0 0
  %2635 = vmatpush1.bf16.msra.mxu0 0
  %2636 = vmatprep.subr.bf16.mxu0 0
  %2637 = vmatpush1.bf16.msra.mxu0 0
  %2638 = vmatprep.subr.bf16.mxu0 0
  %2639 = vmatpush1.bf16.msra.mxu0 0
  %2640 = vmatprep.subr.bf16.mxu0 0
  %2641 = vmatpush1.bf16.msra.mxu0 0
  %2642 = vmatprep.subr.bf16.mxu0 0
  %2643 = vmatpush1.bf16.msra.mxu0 0
  %2644 = vmatprep.subr.bf16.mxu0 0
  %2645 = vmatpush1.bf16.msra.mxu0 0
  %2646 = vmatprep.mubr.bf16.mxu0 0
  %2647 = vmatmul.mubr.bf16.gmra.mrb[0].mxu0 %v2570
  %v2648 = vpop.f32.mrb[0].mxu0
  %v2649 = vadd.f32 0.0, %v2648
  %v2650 = vpop.f32.mrb[0].mxu0
  %v2651 = vadd.f32 0.0, %v2650
  %v2652 = vpop.f32.mrb[0].mxu0
  %v2653 = vadd.f32 0.0, %v2652
  %v2654 = vpop.f32.mrb[0].mxu0
  %v2655 = vadd.f32 0.0, %v2654
  %2656 = vdwg.mxu0
  %v2657 = vadd.f32 %v2562, %v2606
  %v2658 = vadd.f32 %v2563, %v2608
  %v2659 = vadd.f32 %v2564, %v2649
  %v2660 = vadd.f32 %v2565, %v2651
  %v2661 = vadd.f32 %v2566, %v2610
  %v2662 = vadd.f32 %v2567, %v2612
  %v2663 = vadd.f32 %v2568, %v2653
  %v2664 = vadd.f32 %v2569, %v2655
  %v2665 = vxor.u32 %v2657, 2147483648
  %v2666 = vxor.u32 %v2661, 2147483648
  %v2667 = vmul.f32 %v2665, 1.442695
  %v2668 = vpow.pop %v2667
  %v2669 = vmul.f32 %v2666, 1.442695
  %v2670 = vpow.pop %v2669
  %v2671 = vadd.f32 %v2668, 1.0
  %v2672 = vadd.f32 %v2670, 1.0
  %v2673 = vrcp.pop %v2671
  %v2674 = vmul.f32 1.0, %v2673
  %v2675 = vrcp.pop %v2672
  %v2676 = vmul.f32 1.0, %v2675
  %v2677 = vxor.u32 %v2658, 2147483648
  %v2678 = vxor.u32 %v2662, 2147483648
  %v2679 = vmul.f32 %v2677, 1.442695
  %v2680 = vpow.pop %v2679
  %v2681 = vmul.f32 %v2678, 1.442695
  %v2682 = vpow.pop %v2681
  %v2683 = vadd.f32 %v2680, 1.0
  %v2684 = vadd.f32 %v2682, 1.0
  %v2685 = vrcp.pop %v2683
  %v2686 = vmul.f32 1.0, %v2685
  %v2687 = vrcp.pop %v2684
  %v2688 = vmul.f32 1.0, %v2687
  %v2689 = vtanh.pop %v2659
  %v2690 = vtanh.pop %v2663
  %v2691 = vxor.u32 %v2660, 2147483648
  %v2692 = vxor.u32 %v2664, 2147483648
  %v2693 = vmul.f32 %v2691, 1.442695
  %v2694 = vpow.pop %v2693
  %v2695 = vmul.f32 %v2692, 1.442695
  %v2696 = vpow.pop %v2695
  %v2697 = vadd.f32 %v2694, 1.0
  %v2698 = vadd.f32 %v2696, 1.0
  %v2699 = vrcp.pop %v2697
  %v2700 = vmul.f32 1.0, %v2699
  %v2701 = vrcp.pop %v2698
  %v2702 = vmul.f32 1.0, %v2701
  %v2703 = vmul.f32 %v2686, %v2397
  %v2704 = vmul.f32 %v2688, %v2398
  %v2705 = vmul.f32 %v2674, %v2689
  %v2706 = vmul.f32 %v2676, %v2690
  %v2707 = vadd.f32 %v2703, %v2705
  %v2708 = vadd.f32 %v2704, %v2706
  %v2709 = vtanh.pop %v2707
  %v2710 = vtanh.pop %v2708
  %v2711 = vmul.f32 %v2700, %v2709
  %v2712 = vmul.f32 %v2702, %v2710
  %s2713 = scalar_lea.vmem %s14, 48
  %2714 = vst [vmem:[%s2713] sm:$0xff] %v2711
  %2715 = vst [vmem:[%s2713 + $0x8] sm:$0xff] %v2712
  %s2716 = scalar_lea.vmem [#allocation7], 256
  %v2717 = vld [vmem:[%s2716] sm:$0xff]
  %v2718 = vld [vmem:[%s2716 + $0x8] sm:$0xff]
  %v2719 = vld [vmem:[%s2716 + $0x10] sm:$0xff]
  %v2720 = vld [vmem:[%s2716 + $0x18] sm:$0xff]
  %v2721 = vld [vmem:[%s2716 + $0x20] sm:$0xff]
  %v2722 = vld [vmem:[%s2716 + $0x28] sm:$0xff]
  %v2723 = vld [vmem:[%s2716 + $0x30] sm:$0xff]
  %v2724 = vld [vmem:[%s2716 + $0x38] sm:$0xff]
  %v2725 = vpack.c.bf16 %v2557, %v2556
  %2726 = vmatprep.subr.bf16.mxu0 %v1733
  %2727 = vmatpush1.bf16.msra.mxu0 %v1732
  %2728 = vmatprep.subr.bf16.mxu0 %v1737
  %2729 = vmatpush1.bf16.msra.mxu0 %v1736
  %2730 = vmatprep.subr.bf16.mxu0 %v1741
  %2731 = vmatpush1.bf16.msra.mxu0 %v1740
  %2732 = vmatprep.subr.bf16.mxu0 %v1745
  %2733 = vmatpush1.bf16.msra.mxu0 %v1744
  %2734 = vmatprep.subr.bf16.mxu0 %v1749
  %2735 = vmatpush1.bf16.msra.mxu0 %v1748
  %2736 = vmatprep.subr.bf16.mxu0 %v1753
  %2737 = vmatpush1.bf16.msra.mxu0 %v1752
  %2738 = vmatprep.subr.bf16.mxu0 %v1757
  %2739 = vmatpush1.bf16.msra.mxu0 %v1756
  %2740 = vmatprep.subr.bf16.mxu0 %v1761
  %2741 = vmatpush1.bf16.msra.mxu0 %v1760
  %2742 = vmatprep.subr.bf16.mxu0 0
  %2743 = vmatpush1.bf16.msra.mxu0 0
  %2744 = vmatprep.subr.bf16.mxu0 0
  %2745 = vmatpush1.bf16.msra.mxu0 0
  %2746 = vmatprep.subr.bf16.mxu0 0
  %2747 = vmatpush1.bf16.msra.mxu0 0
  %2748 = vmatprep.subr.bf16.mxu0 0
  %2749 = vmatpush1.bf16.msra.mxu0 0
  %2750 = vmatprep.subr.bf16.mxu0 0
  %2751 = vmatpush1.bf16.msra.mxu0 0
  %2752 = vmatprep.subr.bf16.mxu0 0
  %2753 = vmatpush1.bf16.msra.mxu0 0
  %2754 = vmatprep.subr.bf16.mxu0 0
  %2755 = vmatpush1.bf16.msra.mxu0 0
  %2756 = vmatprep.subr.bf16.mxu0 0
  %2757 = vmatpush1.bf16.msra.mxu0 0
  %2758 = vmatprep.mubr.bf16.mxu0 0
  %2759 = vmatmul.mubr.bf16.gmra.mrb[0].mxu0 %v2725
  %v2760 = vpop.f32.mrb[0].mxu0
  %v2761 = vadd.f32 0.0, %v2760
  %v2762 = vpop.f32.mrb[0].mxu0
  %v2763 = vadd.f32 0.0, %v2762
  %v2764 = vpop.f32.mrb[0].mxu0
  %v2765 = vadd.f32 0.0, %v2764
  %v2766 = vpop.f32.mrb[0].mxu0
  %v2767 = vadd.f32 0.0, %v2766
  %2768 = vdwg.mxu0
  %2769 = vmatprep.subr.bf16.mxu0 %v1735
  %2770 = vmatpush1.bf16.msra.mxu0 %v1734
  %2771 = vmatprep.subr.bf16.mxu0 %v1739
  %2772 = vmatpush1.bf16.msra.mxu0 %v1738
  %2773 = vmatprep.subr.bf16.mxu0 %v1743
  %2774 = vmatpush1.bf16.msra.mxu0 %v1742
  %2775 = vmatprep.subr.bf16.mxu0 %v1747
  %2776 = vmatpush1.bf16.msra.mxu0 %v1746
  %2777 = vmatprep.subr.bf16.mxu0 %v1751
  %2778 = vmatpush1.bf16.msra.mxu0 %v1750
  %2779 = vmatprep.subr.bf16.mxu0 %v1755
  %2780 = vmatpush1.bf16.msra.mxu0 %v1754
  %2781 = vmatprep.subr.bf16.mxu0 %v1759
  %2782 = vmatpush1.bf16.msra.mxu0 %v1758
  %2783 = vmatprep.subr.bf16.mxu0 %v1763
  %2784 = vmatpush1.bf16.msra.mxu0 %v1762
  %2785 = vmatprep.subr.bf16.mxu0 0
  %2786 = vmatpush1.bf16.msra.mxu0 0
  %2787 = vmatprep.subr.bf16.mxu0 0
  %2788 = vmatpush1.bf16.msra.mxu0 0
  %2789 = vmatprep.subr.bf16.mxu0 0
  %2790 = vmatpush1.bf16.msra.mxu0 0
  %2791 = vmatprep.subr.bf16.mxu0 0
  %2792 = vmatpush1.bf16.msra.mxu0 0
  %2793 = vmatprep.subr.bf16.mxu0 0
  %2794 = vmatpush1.bf16.msra.mxu0 0
  %2795 = vmatprep.subr.bf16.mxu0 0
  %2796 = vmatpush1.bf16.msra.mxu0 0
  %2797 = vmatprep.subr.bf16.mxu0 0
  %2798 = vmatpush1.bf16.msra.mxu0 0
  %2799 = vmatprep.subr.bf16.mxu0 0
  %2800 = vmatpush1.bf16.msra.mxu0 0
  %2801 = vmatprep.mubr.bf16.mxu0 0
  %2802 = vmatmul.mubr.bf16.gmra.mrb[0].mxu0 %v2725
  %v2803 = vpop.f32.mrb[0].mxu0
  %v2804 = vadd.f32 0.0, %v2803
  %v2805 = vpop.f32.mrb[0].mxu0
  %v2806 = vadd.f32 0.0, %v2805
  %v2807 = vpop.f32.mrb[0].mxu0
  %v2808 = vadd.f32 0.0, %v2807
  %v2809 = vpop.f32.mrb[0].mxu0
  %v2810 = vadd.f32 0.0, %v2809
  %2811 = vdwg.mxu0
  %v2812 = vadd.f32 %v2717, %v2761
  %v2813 = vadd.f32 %v2718, %v2763
  %v2814 = vadd.f32 %v2719, %v2804
  %v2815 = vadd.f32 %v2720, %v2806
  %v2816 = vadd.f32 %v2721, %v2765
  %v2817 = vadd.f32 %v2722, %v2767
  %v2818 = vadd.f32 %v2723, %v2808
  %v2819 = vadd.f32 %v2724, %v2810
  %v2820 = vxor.u32 %v2812, 2147483648
  %v2821 = vxor.u32 %v2816, 2147483648
  %v2822 = vmul.f32 %v2820, 1.442695
  %v2823 = vpow.pop %v2822
  %v2824 = vmul.f32 %v2821, 1.442695
  %v2825 = vpow.pop %v2824
  %v2826 = vadd.f32 %v2823, 1.0
  %v2827 = vadd.f32 %v2825, 1.0
  %v2828 = vrcp.pop %v2826
  %v2829 = vmul.f32 1.0, %v2828
  %v2830 = vrcp.pop %v2827
  %v2831 = vmul.f32 1.0, %v2830
  %v2832 = vxor.u32 %v2813, 2147483648
  %v2833 = vxor.u32 %v2817, 2147483648
  %v2834 = vmul.f32 %v2832, 1.442695
  %v2835 = vpow.pop %v2834
  %v2836 = vmul.f32 %v2833, 1.442695
  %v2837 = vpow.pop %v2836
  %v2838 = vadd.f32 %v2835, 1.0
  %v2839 = vadd.f32 %v2837, 1.0
  %v2840 = vrcp.pop %v2838
  %v2841 = vmul.f32 1.0, %v2840
  %v2842 = vrcp.pop %v2839
  %v2843 = vmul.f32 1.0, %v2842
  %v2844 = vtanh.pop %v2814
  %v2845 = vtanh.pop %v2818
  %v2846 = vxor.u32 %v2815, 2147483648
  %v2847 = vxor.u32 %v2819, 2147483648
  %v2848 = vmul.f32 %v2846, 1.442695
  %v2849 = vpow.pop %v2848
  %v2850 = vmul.f32 %v2847, 1.442695
  %v2851 = vpow.pop %v2850
  %v2852 = vadd.f32 %v2849, 1.0
  %v2853 = vadd.f32 %v2851, 1.0
  %v2854 = vrcp.pop %v2852
  %v2855 = vmul.f32 1.0, %v2854
  %v2856 = vrcp.pop %v2853
  %v2857 = vmul.f32 1.0, %v2856
  %v2858 = vmul.f32 %v2841, %v2552
  %v2859 = vmul.f32 %v2843, %v2553
  %v2860 = vmul.f32 %v2829, %v2844
  %v2861 = vmul.f32 %v2831, %v2845
  %v2862 = vadd.f32 %v2858, %v2860
  %v2863 = vadd.f32 %v2859, %v2861
  %v2864 = vtanh.pop %v2862
  %v2865 = vtanh.pop %v2863
  %v2866 = vmul.f32 %v2855, %v2864
  %v2867 = vmul.f32 %v2857, %v2865
  %s2868 = scalar_lea.vmem %s89, 64
  %2869 = vst [vmem:[%s2868] sm:$0xff] %v2866
  %2870 = vst [vmem:[%s2868 + $0x8] sm:$0xff] %v2867
  %s2871 = scalar_lea.vmem [#allocation6], 256
  %v2872 = vld [vmem:[%s2871] sm:$0xff]
  %v2873 = vld [vmem:[%s2871 + $0x8] sm:$0xff]
  %v2874 = vld [vmem:[%s2871 + $0x10] sm:$0xff]
  %v2875 = vld [vmem:[%s2871 + $0x18] sm:$0xff]
  %v2876 = vld [vmem:[%s2871 + $0x20] sm:$0xff]
  %v2877 = vld [vmem:[%s2871 + $0x28] sm:$0xff]
  %v2878 = vld [vmem:[%s2871 + $0x30] sm:$0xff]
  %v2879 = vld [vmem:[%s2871 + $0x38] sm:$0xff]
  %v2880 = vpack.c.bf16 %v2712, %v2711
  %2881 = vmatprep.subr.bf16.mxu0 %v1419
  %2882 = vmatpush1.bf16.msra.mxu0 %v1418
  %2883 = vmatprep.subr.bf16.mxu0 %v1423
  %2884 = vmatpush1.bf16.msra.mxu0 %v1422
  %2885 = vmatprep.subr.bf16.mxu0 %v1427
  %2886 = vmatpush1.bf16.msra.mxu0 %v1426
  %2887 = vmatprep.subr.bf16.mxu0 %v1431
  %2888 = vmatpush1.bf16.msra.mxu0 %v1430
  %2889 = vmatprep.subr.bf16.mxu0 %v1435
  %2890 = vmatpush1.bf16.msra.mxu0 %v1434
  %2891 = vmatprep.subr.bf16.mxu0 %v1439
  %2892 = vmatpush1.bf16.msra.mxu0 %v1438
  %2893 = vmatprep.subr.bf16.mxu0 %v1443
  %2894 = vmatpush1.bf16.msra.mxu0 %v1442
  %2895 = vmatprep.subr.bf16.mxu0 %v1447
  %2896 = vmatpush1.bf16.msra.mxu0 %v1446
  %2897 = vmatprep.subr.bf16.mxu0 0
  %2898 = vmatpush1.bf16.msra.mxu0 0
  %2899 = vmatprep.subr.bf16.mxu0 0
  %2900 = vmatpush1.bf16.msra.mxu0 0
  %2901 = vmatprep.subr.bf16.mxu0 0
  %2902 = vmatpush1.bf16.msra.mxu0 0
  %2903 = vmatprep.subr.bf16.mxu0 0
  %2904 = vmatpush1.bf16.msra.mxu0 0
  %2905 = vmatprep.subr.bf16.mxu0 0
  %2906 = vmatpush1.bf16.msra.mxu0 0
  %2907 = vmatprep.subr.bf16.mxu0 0
  %2908 = vmatpush1.bf16.msra.mxu0 0
  %2909 = vmatprep.subr.bf16.mxu0 0
  %2910 = vmatpush1.bf16.msra.mxu0 0
  %2911 = vmatprep.subr.bf16.mxu0 0
  %2912 = vmatpush1.bf16.msra.mxu0 0
  %2913 = vmatprep.mubr.bf16.mxu0 0
  %2914 = vmatmul.mubr.bf16.gmra.mrb[0].mxu0 %v2880
  %v2915 = vpop.f32.mrb[0].mxu0
  %v2916 = vadd.f32 0.0, %v2915
  %v2917 = vpop.f32.mrb[0].mxu0
  %v2918 = vadd.f32 0.0, %v2917
  %v2919 = vpop.f32.mrb[0].mxu0
  %v2920 = vadd.f32 0.0, %v2919
  %v2921 = vpop.f32.mrb[0].mxu0
  %v2922 = vadd.f32 0.0, %v2921
  %2923 = vdwg.mxu0
  %2924 = vmatprep.subr.bf16.mxu0 %v1421
  %2925 = vmatpush1.bf16.msra.mxu0 %v1420
  %2926 = vmatprep.subr.bf16.mxu0 %v1425
  %2927 = vmatpush1.bf16.msra.mxu0 %v1424
  %2928 = vmatprep.subr.bf16.mxu0 %v1429
  %2929 = vmatpush1.bf16.msra.mxu0 %v1428
  %2930 = vmatprep.subr.bf16.mxu0 %v1433
  %2931 = vmatpush1.bf16.msra.mxu0 %v1432
  %2932 = vmatprep.subr.bf16.mxu0 %v1437
  %2933 = vmatpush1.bf16.msra.mxu0 %v1436
  %2934 = vmatprep.subr.bf16.mxu0 %v1441
  %2935 = vmatpush1.bf16.msra.mxu0 %v1440
  %2936 = vmatprep.subr.bf16.mxu0 %v1445
  %2937 = vmatpush1.bf16.msra.mxu0 %v1444
  %2938 = vmatprep.subr.bf16.mxu0 %v1449
  %2939 = vmatpush1.bf16.msra.mxu0 %v1448
  %2940 = vmatprep.subr.bf16.mxu0 0
  %2941 = vmatpush1.bf16.msra.mxu0 0
  %2942 = vmatprep.subr.bf16.mxu0 0
  %2943 = vmatpush1.bf16.msra.mxu0 0
  %2944 = vmatprep.subr.bf16.mxu0 0
  %2945 = vmatpush1.bf16.msra.mxu0 0
  %2946 = vmatprep.subr.bf16.mxu0 0
  %2947 = vmatpush1.bf16.msra.mxu0 0
  %2948 = vmatprep.subr.bf16.mxu0 0
  %2949 = vmatpush1.bf16.msra.mxu0 0
  %2950 = vmatprep.subr.bf16.mxu0 0
  %2951 = vmatpush1.bf16.msra.mxu0 0
  %2952 = vmatprep.subr.bf16.mxu0 0
  %2953 = vmatpush1.bf16.msra.mxu0 0
  %2954 = vmatprep.subr.bf16.mxu0 0
  %2955 = vmatpush1.bf16.msra.mxu0 0
  %2956 = vmatprep.mubr.bf16.mxu0 0
  %2957 = vmatmul.mubr.bf16.gmra.mrb[0].mxu0 %v2880
  %v2958 = vpop.f32.mrb[0].mxu0
  %v2959 = vadd.f32 0.0, %v2958
  %v2960 = vpop.f32.mrb[0].mxu0
  %v2961 = vadd.f32 0.0, %v2960
  %v2962 = vpop.f32.mrb[0].mxu0
  %v2963 = vadd.f32 0.0, %v2962
  %v2964 = vpop.f32.mrb[0].mxu0
  %v2965 = vadd.f32 0.0, %v2964
  %2966 = vdwg.mxu0
  %v2967 = vadd.f32 %v2872, %v2916
  %v2968 = vadd.f32 %v2873, %v2918
  %v2969 = vadd.f32 %v2874, %v2959
  %v2970 = vadd.f32 %v2875, %v2961
  %v2971 = vadd.f32 %v2876, %v2920
  %v2972 = vadd.f32 %v2877, %v2922
  %v2973 = vadd.f32 %v2878, %v2963
  %v2974 = vadd.f32 %v2879, %v2965
  %v2975 = vxor.u32 %v2967, 2147483648
  %v2976 = vxor.u32 %v2971, 2147483648
  %v2977 = vmul.f32 %v2975, 1.442695
  %v2978 = vpow.pop %v2977
  %v2979 = vmul.f32 %v2976, 1.442695
  %v2980 = vpow.pop %v2979
  %v2981 = vadd.f32 %v2978, 1.0
  %v2982 = vadd.f32 %v2980, 1.0
  %v2983 = vrcp.pop %v2981
  %v2984 = vmul.f32 1.0, %v2983
  %v2985 = vrcp.pop %v2982
  %v2986 = vmul.f32 1.0, %v2985
  %v2987 = vxor.u32 %v2968, 2147483648
  %v2988 = vxor.u32 %v2972, 2147483648
  %v2989 = vmul.f32 %v2987, 1.442695
  %v2990 = vpow.pop %v2989
  %v2991 = vmul.f32 %v2988, 1.442695
  %v2992 = vpow.pop %v2991
  %v2993 = vadd.f32 %v2990, 1.0
  %v2994 = vadd.f32 %v2992, 1.0
  %v2995 = vrcp.pop %v2993
  %v2996 = vmul.f32 1.0, %v2995
  %v2997 = vrcp.pop %v2994
  %v2998 = vmul.f32 1.0, %v2997
  %v2999 = vtanh.pop %v2969
  %v3000 = vtanh.pop %v2973
  %v3001 = vxor.u32 %v2970, 2147483648
  %v3002 = vxor.u32 %v2974, 2147483648
  %v3003 = vmul.f32 %v3001, 1.442695
  %v3004 = vpow.pop %v3003
  %v3005 = vmul.f32 %v3002, 1.442695
  %v3006 = vpow.pop %v3005
  %v3007 = vadd.f32 %v3004, 1.0
  %v3008 = vadd.f32 %v3006, 1.0
  %v3009 = vrcp.pop %v3007
  %v3010 = vmul.f32 1.0, %v3009
  %v3011 = vrcp.pop %v3008
  %v3012 = vmul.f32 1.0, %v3011
  %v3013 = vmul.f32 %v2996, %v2707
  %v3014 = vmul.f32 %v2998, %v2708
  %v3015 = vmul.f32 %v2984, %v2999
  %v3016 = vmul.f32 %v2986, %v3000
  %v3017 = vadd.f32 %v3013, %v3015
  %v3018 = vadd.f32 %v3014, %v3016
  %v3019 = vtanh.pop %v3017
  %v3020 = vtanh.pop %v3018
  %v3021 = vmul.f32 %v3010, %v3019
  %v3022 = vmul.f32 %v3012, %v3020
  %s3023 = scalar_lea.vmem %s14, 64
  %3024 = vst [vmem:[%s3023] sm:$0xff] %v3021
  %3025 = vst [vmem:[%s3023 + $0x8] sm:$0xff] %v3022
  %s3026 = scalar_lea.vmem [#allocation7], 192
  %v3027 = vld [vmem:[%s3026] sm:$0xff]
  %v3028 = vld [vmem:[%s3026 + $0x8] sm:$0xff]
  %v3029 = vld [vmem:[%s3026 + $0x10] sm:$0xff]
  %v3030 = vld [vmem:[%s3026 + $0x18] sm:$0xff]
  %v3031 = vld [vmem:[%s3026 + $0x20] sm:$0xff]
  %v3032 = vld [vmem:[%s3026 + $0x28] sm:$0xff]
  %v3033 = vld [vmem:[%s3026 + $0x30] sm:$0xff]
  %v3034 = vld [vmem:[%s3026 + $0x38] sm:$0xff]
  %v3035 = vpack.c.bf16 %v2867, %v2866
  %3036 = vmatprep.subr.bf16.mxu0 %v1733
  %3037 = vmatpush1.bf16.msra.mxu0 %v1732
  %3038 = vmatprep.subr.bf16.mxu0 %v1737
  %3039 = vmatpush1.bf16.msra.mxu0 %v1736
  %3040 = vmatprep.subr.bf16.mxu0 %v1741
  %3041 = vmatpush1.bf16.msra.mxu0 %v1740
  %3042 = vmatprep.subr.bf16.mxu0 %v1745
  %3043 = vmatpush1.bf16.msra.mxu0 %v1744
  %3044 = vmatprep.subr.bf16.mxu0 %v1749
  %3045 = vmatpush1.bf16.msra.mxu0 %v1748
  %3046 = vmatprep.subr.bf16.mxu0 %v1753
  %3047 = vmatpush1.bf16.msra.mxu0 %v1752
  %3048 = vmatprep.subr.bf16.mxu0 %v1757
  %3049 = vmatpush1.bf16.msra.mxu0 %v1756
  %3050 = vmatprep.subr.bf16.mxu0 %v1761
  %3051 = vmatpush1.bf16.msra.mxu0 %v1760
  %3052 = vmatprep.subr.bf16.mxu0 0
  %3053 = vmatpush1.bf16.msra.mxu0 0
  %3054 = vmatprep.subr.bf16.mxu0 0
  %3055 = vmatpush1.bf16.msra.mxu0 0
  %3056 = vmatprep.subr.bf16.mxu0 0
  %3057 = vmatpush1.bf16.msra.mxu0 0
  %3058 = vmatprep.subr.bf16.mxu0 0
  %3059 = vmatpush1.bf16.msra.mxu0 0
  %3060 = vmatprep.subr.bf16.mxu0 0
  %3061 = vmatpush1.bf16.msra.mxu0 0
  %3062 = vmatprep.subr.bf16.mxu0 0
  %3063 = vmatpush1.bf16.msra.mxu0 0
  %3064 = vmatprep.subr.bf16.mxu0 0
  %3065 = vmatpush1.bf16.msra.mxu0 0
  %3066 = vmatprep.subr.bf16.mxu0 0
  %3067 = vmatpush1.bf16.msra.mxu0 0
  %3068 = vmatprep.mubr.bf16.mxu0 0
  %3069 = vmatmul.mubr.bf16.gmra.mrb[0].mxu0 %v3035
  %v3070 = vpop.f32.mrb[0].mxu0
  %v3071 = vadd.f32 0.0, %v3070
  %v3072 = vpop.f32.mrb[0].mxu0
  %v3073 = vadd.f32 0.0, %v3072
  %v3074 = vpop.f32.mrb[0].mxu0
  %v3075 = vadd.f32 0.0, %v3074
  %v3076 = vpop.f32.mrb[0].mxu0
  %v3077 = vadd.f32 0.0, %v3076
  %3078 = vdwg.mxu0
  %3079 = vmatprep.subr.bf16.mxu0 %v1735
  %3080 = vmatpush1.bf16.msra.mxu0 %v1734
  %3081 = vmatprep.subr.bf16.mxu0 %v1739
  %3082 = vmatpush1.bf16.msra.mxu0 %v1738
  %3083 = vmatprep.subr.bf16.mxu0 %v1743
  %3084 = vmatpush1.bf16.msra.mxu0 %v1742
  %3085 = vmatprep.subr.bf16.mxu0 %v1747
  %3086 = vmatpush1.bf16.msra.mxu0 %v1746
  %3087 = vmatprep.subr.bf16.mxu0 %v1751
  %3088 = vmatpush1.bf16.msra.mxu0 %v1750
  %3089 = vmatprep.subr.bf16.mxu0 %v1755
  %3090 = vmatpush1.bf16.msra.mxu0 %v1754
  %3091 = vmatprep.subr.bf16.mxu0 %v1759
  %3092 = vmatpush1.bf16.msra.mxu0 %v1758
  %3093 = vmatprep.subr.bf16.mxu0 %v1763
  %3094 = vmatpush1.bf16.msra.mxu0 %v1762
  %3095 = vmatprep.subr.bf16.mxu0 0
  %3096 = vmatpush1.bf16.msra.mxu0 0
  %3097 = vmatprep.subr.bf16.mxu0 0
  %3098 = vmatpush1.bf16.msra.mxu0 0
  %3099 = vmatprep.subr.bf16.mxu0 0
  %3100 = vmatpush1.bf16.msra.mxu0 0
  %3101 = vmatprep.subr.bf16.mxu0 0
  %3102 = vmatpush1.bf16.msra.mxu0 0
  %3103 = vmatprep.subr.bf16.mxu0 0
  %3104 = vmatpush1.bf16.msra.mxu0 0
  %3105 = vmatprep.subr.bf16.mxu0 0
  %3106 = vmatpush1.bf16.msra.mxu0 0
  %3107 = vmatprep.subr.bf16.mxu0 0
  %3108 = vmatpush1.bf16.msra.mxu0 0
  %3109 = vmatprep.subr.bf16.mxu0 0
  %3110 = vmatpush1.bf16.msra.mxu0 0
  %3111 = vmatprep.mubr.bf16.mxu0 0
  %3112 = vmatmul.mubr.bf16.gmra.mrb[0].mxu0 %v3035
  %v3113 = vpop.f32.mrb[0].mxu0
  %v3114 = vadd.f32 0.0, %v3113
  %v3115 = vpop.f32.mrb[0].mxu0
  %v3116 = vadd.f32 0.0, %v3115
  %v3117 = vpop.f32.mrb[0].mxu0
  %v3118 = vadd.f32 0.0, %v3117
  %v3119 = vpop.f32.mrb[0].mxu0
  %v3120 = vadd.f32 0.0, %v3119
  %3121 = vdwg.mxu0
  %v3122 = vadd.f32 %v3027, %v3071
  %v3123 = vadd.f32 %v3028, %v3073
  %v3124 = vadd.f32 %v3029, %v3114
  %v3125 = vadd.f32 %v3030, %v3116
  %v3126 = vadd.f32 %v3031, %v3075
  %v3127 = vadd.f32 %v3032, %v3077
  %v3128 = vadd.f32 %v3033, %v3118
  %v3129 = vadd.f32 %v3034, %v3120
  %v3130 = vxor.u32 %v3122, 2147483648
  %v3131 = vxor.u32 %v3126, 2147483648
  %v3132 = vmul.f32 %v3130, 1.442695
  %v3133 = vpow.pop %v3132
  %v3134 = vmul.f32 %v3131, 1.442695
  %v3135 = vpow.pop %v3134
  %v3136 = vadd.f32 %v3133, 1.0
  %v3137 = vadd.f32 %v3135, 1.0
  %v3138 = vrcp.pop %v3136
  %v3139 = vmul.f32 1.0, %v3138
  %v3140 = vrcp.pop %v3137
  %v3141 = vmul.f32 1.0, %v3140
  %v3142 = vxor.u32 %v3123, 2147483648
  %v3143 = vxor.u32 %v3127, 2147483648
  %v3144 = vmul.f32 %v3142, 1.442695
  %v3145 = vpow.pop %v3144
  %v3146 = vmul.f32 %v3143, 1.442695
  %v3147 = vpow.pop %v3146
  %v3148 = vadd.f32 %v3145, 1.0
  %v3149 = vadd.f32 %v3147, 1.0
  %v3150 = vrcp.pop %v3148
  %v3151 = vmul.f32 1.0, %v3150
  %v3152 = vrcp.pop %v3149
  %v3153 = vmul.f32 1.0, %v3152
  %v3154 = vtanh.pop %v3124
  %v3155 = vtanh.pop %v3128
  %v3156 = vxor.u32 %v3125, 2147483648
  %v3157 = vxor.u32 %v3129, 2147483648
  %v3158 = vmul.f32 %v3156, 1.442695
  %v3159 = vpow.pop %v3158
  %v3160 = vmul.f32 %v3157, 1.442695
  %v3161 = vpow.pop %v3160
  %v3162 = vadd.f32 %v3159, 1.0
  %v3163 = vadd.f32 %v3161, 1.0
  %v3164 = vrcp.pop %v3162
  %v3165 = vmul.f32 1.0, %v3164
  %v3166 = vrcp.pop %v3163
  %v3167 = vmul.f32 1.0, %v3166
  %v3168 = vmul.f32 %v3151, %v2862
  %v3169 = vmul.f32 %v3153, %v2863
  %v3170 = vmul.f32 %v3139, %v3154
  %v3171 = vmul.f32 %v3141, %v3155
  %v3172 = vadd.f32 %v3168, %v3170
  %v3173 = vadd.f32 %v3169, %v3171
  %v3174 = vtanh.pop %v3172
  %v3175 = vtanh.pop %v3173
  %v3176 = vmul.f32 %v3165, %v3174
  %v3177 = vmul.f32 %v3167, %v3175
  %s3178 = scalar_lea.vmem %s89, 48
  %3179 = vst [vmem:[%s3178] sm:$0xff] %v3176
  %3180 = vst [vmem:[%s3178 + $0x8] sm:$0xff] %v3177
  %s3181 = scalar_lea.vmem [#allocation6], 320
  %v3182 = vld [vmem:[%s3181] sm:$0xff]
  %v3183 = vld [vmem:[%s3181 + $0x8] sm:$0xff]
  %v3184 = vld [vmem:[%s3181 + $0x10] sm:$0xff]
  %v3185 = vld [vmem:[%s3181 + $0x18] sm:$0xff]
  %v3186 = vld [vmem:[%s3181 + $0x20] sm:$0xff]
  %v3187 = vld [vmem:[%s3181 + $0x28] sm:$0xff]
  %v3188 = vld [vmem:[%s3181 + $0x30] sm:$0xff]
  %v3189 = vld [vmem:[%s3181 + $0x38] sm:$0xff]
  %v3190 = vpack.c.bf16 %v3022, %v3021
  %3191 = vmatprep.subr.bf16.mxu0 %v1419
  %3192 = vmatpush1.bf16.msra.mxu0 %v1418
  %3193 = vmatprep.subr.bf16.mxu0 %v1423
  %3194 = vmatpush1.bf16.msra.mxu0 %v1422
  %3195 = vmatprep.subr.bf16.mxu0 %v1427
  %3196 = vmatpush1.bf16.msra.mxu0 %v1426
  %3197 = vmatprep.subr.bf16.mxu0 %v1431
  %3198 = vmatpush1.bf16.msra.mxu0 %v1430
  %3199 = vmatprep.subr.bf16.mxu0 %v1435
  %3200 = vmatpush1.bf16.msra.mxu0 %v1434
  %3201 = vmatprep.subr.bf16.mxu0 %v1439
  %3202 = vmatpush1.bf16.msra.mxu0 %v1438
  %3203 = vmatprep.subr.bf16.mxu0 %v1443
  %3204 = vmatpush1.bf16.msra.mxu0 %v1442
  %3205 = vmatprep.subr.bf16.mxu0 %v1447
  %3206 = vmatpush1.bf16.msra.mxu0 %v1446
  %3207 = vmatprep.subr.bf16.mxu0 0
  %3208 = vmatpush1.bf16.msra.mxu0 0
  %3209 = vmatprep.subr.bf16.mxu0 0
  %3210 = vmatpush1.bf16.msra.mxu0 0
  %3211 = vmatprep.subr.bf16.mxu0 0
  %3212 = vmatpush1.bf16.msra.mxu0 0
  %3213 = vmatprep.subr.bf16.mxu0 0
  %3214 = vmatpush1.bf16.msra.mxu0 0
  %3215 = vmatprep.subr.bf16.mxu0 0
  %3216 = vmatpush1.bf16.msra.mxu0 0
  %3217 = vmatprep.subr.bf16.mxu0 0
  %3218 = vmatpush1.bf16.msra.mxu0 0
  %3219 = vmatprep.subr.bf16.mxu0 0
  %3220 = vmatpush1.bf16.msra.mxu0 0
  %3221 = vmatprep.subr.bf16.mxu0 0
  %3222 = vmatpush1.bf16.msra.mxu0 0
  %3223 = vmatprep.mubr.bf16.mxu0 0
  %3224 = vmatmul.mubr.bf16.gmra.mrb[0].mxu0 %v3190
  %v3225 = vpop.f32.mrb[0].mxu0
  %v3226 = vadd.f32 0.0, %v3225
  %v3227 = vpop.f32.mrb[0].mxu0
  %v3228 = vadd.f32 0.0, %v3227
  %v3229 = vpop.f32.mrb[0].mxu0
  %v3230 = vadd.f32 0.0, %v3229
  %v3231 = vpop.f32.mrb[0].mxu0
  %v3232 = vadd.f32 0.0, %v3231
  %3233 = vdwg.mxu0
  %3234 = vmatprep.subr.bf16.mxu0 %v1421
  %3235 = vmatpush1.bf16.msra.mxu0 %v1420
  %3236 = vmatprep.subr.bf16.mxu0 %v1425
  %3237 = vmatpush1.bf16.msra.mxu0 %v1424
  %3238 = vmatprep.subr.bf16.mxu0 %v1429
  %3239 = vmatpush1.bf16.msra.mxu0 %v1428
  %3240 = vmatprep.subr.bf16.mxu0 %v1433
  %3241 = vmatpush1.bf16.msra.mxu0 %v1432
  %3242 = vmatprep.subr.bf16.mxu0 %v1437
  %3243 = vmatpush1.bf16.msra.mxu0 %v1436
  %3244 = vmatprep.subr.bf16.mxu0 %v1441
  %3245 = vmatpush1.bf16.msra.mxu0 %v1440
  %3246 = vmatprep.subr.bf16.mxu0 %v1445
  %3247 = vmatpush1.bf16.msra.mxu0 %v1444
  %3248 = vmatprep.subr.bf16.mxu0 %v1449
  %3249 = vmatpush1.bf16.msra.mxu0 %v1448
  %3250 = vmatprep.subr.bf16.mxu0 0
  %3251 = vmatpush1.bf16.msra.mxu0 0
  %3252 = vmatprep.subr.bf16.mxu0 0
  %3253 = vmatpush1.bf16.msra.mxu0 0
  %3254 = vmatprep.subr.bf16.mxu0 0
  %3255 = vmatpush1.bf16.msra.mxu0 0
  %3256 = vmatprep.subr.bf16.mxu0 0
  %3257 = vmatpush1.bf16.msra.mxu0 0
  %3258 = vmatprep.subr.bf16.mxu0 0
  %3259 = vmatpush1.bf16.msra.mxu0 0
  %3260 = vmatprep.subr.bf16.mxu0 0
  %3261 = vmatpush1.bf16.msra.mxu0 0
  %3262 = vmatprep.subr.bf16.mxu0 0
  %3263 = vmatpush1.bf16.msra.mxu0 0
  %3264 = vmatprep.subr.bf16.mxu0 0
  %3265 = vmatpush1.bf16.msra.mxu0 0
  %3266 = vmatprep.mubr.bf16.mxu0 0
  %3267 = vmatmul.mubr.bf16.gmra.mrb[0].mxu0 %v3190
  %v3268 = vpop.f32.mrb[0].mxu0
  %v3269 = vadd.f32 0.0, %v3268
  %v3270 = vpop.f32.mrb[0].mxu0
  %v3271 = vadd.f32 0.0, %v3270
  %v3272 = vpop.f32.mrb[0].mxu0
  %v3273 = vadd.f32 0.0, %v3272
  %v3274 = vpop.f32.mrb[0].mxu0
  %v3275 = vadd.f32 0.0, %v3274
  %3276 = vdwg.mxu0
  %v3277 = vadd.f32 %v3182, %v3226
  %v3278 = vadd.f32 %v3183, %v3228
  %v3279 = vadd.f32 %v3184, %v3269
  %v3280 = vadd.f32 %v3185, %v3271
  %v3281 = vadd.f32 %v3186, %v3230
  %v3282 = vadd.f32 %v3187, %v3232
  %v3283 = vadd.f32 %v3188, %v3273
  %v3284 = vadd.f32 %v3189, %v3275
  %v3285 = vxor.u32 %v3277, 2147483648
  %v3286 = vxor.u32 %v3281, 2147483648
  %v3287 = vmul.f32 %v3285, 1.442695
  %v3288 = vpow.pop %v3287
  %v3289 = vmul.f32 %v3286, 1.442695
  %v3290 = vpow.pop %v3289
  %v3291 = vadd.f32 %v3288, 1.0
  %v3292 = vadd.f32 %v3290, 1.0
  %v3293 = vrcp.pop %v3291
  %v3294 = vmul.f32 1.0, %v3293
  %v3295 = vrcp.pop %v3292
  %v3296 = vmul.f32 1.0, %v3295
  %v3297 = vxor.u32 %v3278, 2147483648
  %v3298 = vxor.u32 %v3282, 2147483648
  %v3299 = vmul.f32 %v3297, 1.442695
  %v3300 = vpow.pop %v3299
  %v3301 = vmul.f32 %v3298, 1.442695
  %v3302 = vpow.pop %v3301
  %v3303 = vadd.f32 %v3300, 1.0
  %v3304 = vadd.f32 %v3302, 1.0
  %v3305 = vrcp.pop %v3303
  %v3306 = vmul.f32 1.0, %v3305
  %v3307 = vrcp.pop %v3304
  %v3308 = vmul.f32 1.0, %v3307
  %v3309 = vtanh.pop %v3279
  %v3310 = vtanh.pop %v3283
  %v3311 = vxor.u32 %v3280, 2147483648
  %v3312 = vxor.u32 %v3284, 2147483648
  %v3313 = vmul.f32 %v3311, 1.442695
  %v3314 = vpow.pop %v3313
  %v3315 = vmul.f32 %v3312, 1.442695
  %v3316 = vpow.pop %v3315
  %v3317 = vadd.f32 %v3314, 1.0
  %v3318 = vadd.f32 %v3316, 1.0
  %v3319 = vrcp.pop %v3317
  %v3320 = vmul.f32 1.0, %v3319
  %v3321 = vrcp.pop %v3318
  %v3322 = vmul.f32 1.0, %v3321
  %v3323 = vmul.f32 %v3306, %v3017
  %v3324 = vmul.f32 %v3308, %v3018
  %v3325 = vmul.f32 %v3294, %v3309
  %v3326 = vmul.f32 %v3296, %v3310
  %v3327 = vadd.f32 %v3323, %v3325
  %v3328 = vadd.f32 %v3324, %v3326
  %v3329 = vtanh.pop %v3327
  %v3330 = vtanh.pop %v3328
  %v3331 = vmul.f32 %v3320, %v3329
  %v3332 = vmul.f32 %v3322, %v3330
  %s3333 = scalar_lea.vmem %s14, 80
  %3334 = vst [vmem:[%s3333] sm:$0xff] %v3331
  %3335 = vst [vmem:[%s3333 + $0x8] sm:$0xff] %v3332
  %s3336 = scalar_lea.vmem [#allocation7], 128
  %v3337 = vld [vmem:[%s3336] sm:$0xff]
  %v3338 = vld [vmem:[%s3336 + $0x8] sm:$0xff]
  %v3339 = vld [vmem:[%s3336 + $0x10] sm:$0xff]
  %v3340 = vld [vmem:[%s3336 + $0x18] sm:$0xff]
  %v3341 = vld [vmem:[%s3336 + $0x20] sm:$0xff]
  %v3342 = vld [vmem:[%s3336 + $0x28] sm:$0xff]
  %v3343 = vld [vmem:[%s3336 + $0x30] sm:$0xff]
  %v3344 = vld [vmem:[%s3336 + $0x38] sm:$0xff]
  %v3345 = vpack.c.bf16 %v3177, %v3176
  %3346 = vmatprep.subr.bf16.mxu0 %v1733
  %3347 = vmatpush1.bf16.msra.mxu0 %v1732
  %3348 = vmatprep.subr.bf16.mxu0 %v1737
  %3349 = vmatpush1.bf16.msra.mxu0 %v1736
  %3350 = vmatprep.subr.bf16.mxu0 %v1741
  %3351 = vmatpush1.bf16.msra.mxu0 %v1740
  %3352 = vmatprep.subr.bf16.mxu0 %v1745
  %3353 = vmatpush1.bf16.msra.mxu0 %v1744
  %3354 = vmatprep.subr.bf16.mxu0 %v1749
  %3355 = vmatpush1.bf16.msra.mxu0 %v1748
  %3356 = vmatprep.subr.bf16.mxu0 %v1753
  %3357 = vmatpush1.bf16.msra.mxu0 %v1752
  %3358 = vmatprep.subr.bf16.mxu0 %v1757
  %3359 = vmatpush1.bf16.msra.mxu0 %v1756
  %3360 = vmatprep.subr.bf16.mxu0 %v1761
  %3361 = vmatpush1.bf16.msra.mxu0 %v1760
  %3362 = vmatprep.subr.bf16.mxu0 0
  %3363 = vmatpush1.bf16.msra.mxu0 0
  %3364 = vmatprep.subr.bf16.mxu0 0
  %3365 = vmatpush1.bf16.msra.mxu0 0
  %3366 = vmatprep.subr.bf16.mxu0 0
  %3367 = vmatpush1.bf16.msra.mxu0 0
  %3368 = vmatprep.subr.bf16.mxu0 0
  %3369 = vmatpush1.bf16.msra.mxu0 0
  %3370 = vmatprep.subr.bf16.mxu0 0
  %3371 = vmatpush1.bf16.msra.mxu0 0
  %3372 = vmatprep.subr.bf16.mxu0 0
  %3373 = vmatpush1.bf16.msra.mxu0 0
  %3374 = vmatprep.subr.bf16.mxu0 0
  %3375 = vmatpush1.bf16.msra.mxu0 0
  %3376 = vmatprep.subr.bf16.mxu0 0
  %3377 = vmatpush1.bf16.msra.mxu0 0
  %3378 = vmatprep.mubr.bf16.mxu0 0
  %3379 = vmatmul.mubr.bf16.gmra.mrb[0].mxu0 %v3345
  %v3380 = vpop.f32.mrb[0].mxu0
  %v3381 = vadd.f32 0.0, %v3380
  %v3382 = vpop.f32.mrb[0].mxu0
  %v3383 = vadd.f32 0.0, %v3382
  %v3384 = vpop.f32.mrb[0].mxu0
  %v3385 = vadd.f32 0.0, %v3384
  %v3386 = vpop.f32.mrb[0].mxu0
  %v3387 = vadd.f32 0.0, %v3386
  %3388 = vdwg.mxu0
  %3389 = vmatprep.subr.bf16.mxu0 %v1735
  %3390 = vmatpush1.bf16.msra.mxu0 %v1734
  %3391 = vmatprep.subr.bf16.mxu0 %v1739
  %3392 = vmatpush1.bf16.msra.mxu0 %v1738
  %3393 = vmatprep.subr.bf16.mxu0 %v1743
  %3394 = vmatpush1.bf16.msra.mxu0 %v1742
  %3395 = vmatprep.subr.bf16.mxu0 %v1747
  %3396 = vmatpush1.bf16.msra.mxu0 %v1746
  %3397 = vmatprep.subr.bf16.mxu0 %v1751
  %3398 = vmatpush1.bf16.msra.mxu0 %v1750
  %3399 = vmatprep.subr.bf16.mxu0 %v1755
  %3400 = vmatpush1.bf16.msra.mxu0 %v1754
  %3401 = vmatprep.subr.bf16.mxu0 %v1759
  %3402 = vmatpush1.bf16.msra.mxu0 %v1758
  %3403 = vmatprep.subr.bf16.mxu0 %v1763
  %3404 = vmatpush1.bf16.msra.mxu0 %v1762
  %3405 = vmatprep.subr.bf16.mxu0 0
  %3406 = vmatpush1.bf16.msra.mxu0 0
  %3407 = vmatprep.subr.bf16.mxu0 0
  %3408 = vmatpush1.bf16.msra.mxu0 0
  %3409 = vmatprep.subr.bf16.mxu0 0
  %3410 = vmatpush1.bf16.msra.mxu0 0
  %3411 = vmatprep.subr.bf16.mxu0 0
  %3412 = vmatpush1.bf16.msra.mxu0 0
  %3413 = vmatprep.subr.bf16.mxu0 0
  %3414 = vmatpush1.bf16.msra.mxu0 0
  %3415 = vmatprep.subr.bf16.mxu0 0
  %3416 = vmatpush1.bf16.msra.mxu0 0
  %3417 = vmatprep.subr.bf16.mxu0 0
  %3418 = vmatpush1.bf16.msra.mxu0 0
  %3419 = vmatprep.subr.bf16.mxu0 0
  %3420 = vmatpush1.bf16.msra.mxu0 0
  %3421 = vmatprep.mubr.bf16.mxu0 0
  %3422 = vmatmul.mubr.bf16.gmra.mrb[0].mxu0 %v3345
  %v3423 = vpop.f32.mrb[0].mxu0
  %v3424 = vadd.f32 0.0, %v3423
  %v3425 = vpop.f32.mrb[0].mxu0
  %v3426 = vadd.f32 0.0, %v3425
  %v3427 = vpop.f32.mrb[0].mxu0
  %v3428 = vadd.f32 0.0, %v3427
  %v3429 = vpop.f32.mrb[0].mxu0
  %v3430 = vadd.f32 0.0, %v3429
  %3431 = vdwg.mxu0
  %v3432 = vadd.f32 %v3337, %v3381
  %v3433 = vadd.f32 %v3338, %v3383
  %v3434 = vadd.f32 %v3339, %v3424
  %v3435 = vadd.f32 %v3340, %v3426
  %v3436 = vadd.f32 %v3341, %v3385
  %v3437 = vadd.f32 %v3342, %v3387
  %v3438 = vadd.f32 %v3343, %v3428
  %v3439 = vadd.f32 %v3344, %v3430
  %v3440 = vxor.u32 %v3432, 2147483648
  %v3441 = vxor.u32 %v3436, 2147483648
  %v3442 = vmul.f32 %v3440, 1.442695
  %v3443 = vpow.pop %v3442
  %v3444 = vmul.f32 %v3441, 1.442695
  %v3445 = vpow.pop %v3444
  %v3446 = vadd.f32 %v3443, 1.0
  %v3447 = vadd.f32 %v3445, 1.0
  %v3448 = vrcp.pop %v3446
  %v3449 = vmul.f32 1.0, %v3448
  %v3450 = vrcp.pop %v3447
  %v3451 = vmul.f32 1.0, %v3450
  %v3452 = vxor.u32 %v3433, 2147483648
  %v3453 = vxor.u32 %v3437, 2147483648
  %v3454 = vmul.f32 %v3452, 1.442695
  %v3455 = vpow.pop %v3454
  %v3456 = vmul.f32 %v3453, 1.442695
  %v3457 = vpow.pop %v3456
  %v3458 = vadd.f32 %v3455, 1.0
  %v3459 = vadd.f32 %v3457, 1.0
  %v3460 = vrcp.pop %v3458
  %v3461 = vmul.f32 1.0, %v3460
  %v3462 = vrcp.pop %v3459
  %v3463 = vmul.f32 1.0, %v3462
  %v3464 = vtanh.pop %v3434
  %v3465 = vtanh.pop %v3438
  %v3466 = vxor.u32 %v3435, 2147483648
  %v3467 = vxor.u32 %v3439, 2147483648
  %v3468 = vmul.f32 %v3466, 1.442695
  %v3469 = vpow.pop %v3468
  %v3470 = vmul.f32 %v3467, 1.442695
  %v3471 = vpow.pop %v3470
  %v3472 = vadd.f32 %v3469, 1.0
  %v3473 = vadd.f32 %v3471, 1.0
  %v3474 = vrcp.pop %v3472
  %v3475 = vmul.f32 1.0, %v3474
  %v3476 = vrcp.pop %v3473
  %v3477 = vmul.f32 1.0, %v3476
  %v3478 = vmul.f32 %v3461, %v3172
  %v3479 = vmul.f32 %v3463, %v3173
  %v3480 = vmul.f32 %v3449, %v3464
  %v3481 = vmul.f32 %v3451, %v3465
  %v3482 = vadd.f32 %v3478, %v3480
  %v3483 = vadd.f32 %v3479, %v3481
  %v3484 = vtanh.pop %v3482
  %v3485 = vtanh.pop %v3483
  %v3486 = vmul.f32 %v3475, %v3484
  %v3487 = vmul.f32 %v3477, %v3485
  %s3488 = scalar_lea.vmem %s89, 32
  %3489 = vst [vmem:[%s3488] sm:$0xff] %v3486
  %3490 = vst [vmem:[%s3488 + $0x8] sm:$0xff] %v3487
  %s3491 = scalar_lea.vmem [#allocation6], 384
  %v3492 = vld [vmem:[%s3491] sm:$0xff]
  %v3493 = vld [vmem:[%s3491 + $0x8] sm:$0xff]
  %v3494 = vld [vmem:[%s3491 + $0x10] sm:$0xff]
  %v3495 = vld [vmem:[%s3491 + $0x18] sm:$0xff]
  %v3496 = vld [vmem:[%s3491 + $0x20] sm:$0xff]
  %v3497 = vld [vmem:[%s3491 + $0x28] sm:$0xff]
  %v3498 = vld [vmem:[%s3491 + $0x30] sm:$0xff]
  %v3499 = vld [vmem:[%s3491 + $0x38] sm:$0xff]
  %v3500 = vpack.c.bf16 %v3332, %v3331
  %3501 = vmatprep.subr.bf16.mxu0 %v1419
  %3502 = vmatpush1.bf16.msra.mxu0 %v1418
  %3503 = vmatprep.subr.bf16.mxu0 %v1423
  %3504 = vmatpush1.bf16.msra.mxu0 %v1422
  %3505 = vmatprep.subr.bf16.mxu0 %v1427
  %3506 = vmatpush1.bf16.msra.mxu0 %v1426
  %3507 = vmatprep.subr.bf16.mxu0 %v1431
  %3508 = vmatpush1.bf16.msra.mxu0 %v1430
  %3509 = vmatprep.subr.bf16.mxu0 %v1435
  %3510 = vmatpush1.bf16.msra.mxu0 %v1434
  %3511 = vmatprep.subr.bf16.mxu0 %v1439
  %3512 = vmatpush1.bf16.msra.mxu0 %v1438
  %3513 = vmatprep.subr.bf16.mxu0 %v1443
  %3514 = vmatpush1.bf16.msra.mxu0 %v1442
  %3515 = vmatprep.subr.bf16.mxu0 %v1447
  %3516 = vmatpush1.bf16.msra.mxu0 %v1446
  %3517 = vmatprep.subr.bf16.mxu0 0
  %3518 = vmatpush1.bf16.msra.mxu0 0
  %3519 = vmatprep.subr.bf16.mxu0 0
  %3520 = vmatpush1.bf16.msra.mxu0 0
  %3521 = vmatprep.subr.bf16.mxu0 0
  %3522 = vmatpush1.bf16.msra.mxu0 0
  %3523 = vmatprep.subr.bf16.mxu0 0
  %3524 = vmatpush1.bf16.msra.mxu0 0
  %3525 = vmatprep.subr.bf16.mxu0 0
  %3526 = vmatpush1.bf16.msra.mxu0 0
  %3527 = vmatprep.subr.bf16.mxu0 0
  %3528 = vmatpush1.bf16.msra.mxu0 0
  %3529 = vmatprep.subr.bf16.mxu0 0
  %3530 = vmatpush1.bf16.msra.mxu0 0
  %3531 = vmatprep.subr.bf16.mxu0 0
  %3532 = vmatpush1.bf16.msra.mxu0 0
  %3533 = vmatprep.mubr.bf16.mxu0 0
  %3534 = vmatmul.mubr.bf16.gmra.mrb[0].mxu0 %v3500
  %v3535 = vpop.f32.mrb[0].mxu0
  %v3536 = vadd.f32 0.0, %v3535
  %v3537 = vpop.f32.mrb[0].mxu0
  %v3538 = vadd.f32 0.0, %v3537
  %v3539 = vpop.f32.mrb[0].mxu0
  %v3540 = vadd.f32 0.0, %v3539
  %v3541 = vpop.f32.mrb[0].mxu0
  %v3542 = vadd.f32 0.0, %v3541
  %3543 = vdwg.mxu0
  %3544 = vmatprep.subr.bf16.mxu0 %v1421
  %3545 = vmatpush1.bf16.msra.mxu0 %v1420
  %3546 = vmatprep.subr.bf16.mxu0 %v1425
  %3547 = vmatpush1.bf16.msra.mxu0 %v1424
  %3548 = vmatprep.subr.bf16.mxu0 %v1429
  %3549 = vmatpush1.bf16.msra.mxu0 %v1428
  %3550 = vmatprep.subr.bf16.mxu0 %v1433
  %3551 = vmatpush1.bf16.msra.mxu0 %v1432
  %3552 = vmatprep.subr.bf16.mxu0 %v1437
  %3553 = vmatpush1.bf16.msra.mxu0 %v1436
  %3554 = vmatprep.subr.bf16.mxu0 %v1441
  %3555 = vmatpush1.bf16.msra.mxu0 %v1440
  %3556 = vmatprep.subr.bf16.mxu0 %v1445
  %3557 = vmatpush1.bf16.msra.mxu0 %v1444
  %3558 = vmatprep.subr.bf16.mxu0 %v1449
  %3559 = vmatpush1.bf16.msra.mxu0 %v1448
  %3560 = vmatprep.subr.bf16.mxu0 0
  %3561 = vmatpush1.bf16.msra.mxu0 0
  %3562 = vmatprep.subr.bf16.mxu0 0
  %3563 = vmatpush1.bf16.msra.mxu0 0
  %3564 = vmatprep.subr.bf16.mxu0 0
  %3565 = vmatpush1.bf16.msra.mxu0 0
  %3566 = vmatprep.subr.bf16.mxu0 0
  %3567 = vmatpush1.bf16.msra.mxu0 0
  %3568 = vmatprep.subr.bf16.mxu0 0
  %3569 = vmatpush1.bf16.msra.mxu0 0
  %3570 = vmatprep.subr.bf16.mxu0 0
  %3571 = vmatpush1.bf16.msra.mxu0 0
  %3572 = vmatprep.subr.bf16.mxu0 0
  %3573 = vmatpush1.bf16.msra.mxu0 0
  %3574 = vmatprep.subr.bf16.mxu0 0
  %3575 = vmatpush1.bf16.msra.mxu0 0
  %3576 = vmatprep.mubr.bf16.mxu0 0
  %3577 = vmatmul.mubr.bf16.gmra.mrb[0].mxu0 %v3500
  %v3578 = vpop.f32.mrb[0].mxu0
  %v3579 = vadd.f32 0.0, %v3578
  %v3580 = vpop.f32.mrb[0].mxu0
  %v3581 = vadd.f32 0.0, %v3580
  %v3582 = vpop.f32.mrb[0].mxu0
  %v3583 = vadd.f32 0.0, %v3582
  %v3584 = vpop.f32.mrb[0].mxu0
  %v3585 = vadd.f32 0.0, %v3584
  %3586 = vdwg.mxu0
  %v3587 = vadd.f32 %v3492, %v3536
  %v3588 = vadd.f32 %v3493, %v3538
  %v3589 = vadd.f32 %v3494, %v3579
  %v3590 = vadd.f32 %v3495, %v3581
  %v3591 = vadd.f32 %v3496, %v3540
  %v3592 = vadd.f32 %v3497, %v3542
  %v3593 = vadd.f32 %v3498, %v3583
  %v3594 = vadd.f32 %v3499, %v3585
  %v3595 = vxor.u32 %v3587, 2147483648
  %v3596 = vxor.u32 %v3591, 2147483648
  %v3597 = vmul.f32 %v3595, 1.442695
  %v3598 = vpow.pop %v3597
  %v3599 = vmul.f32 %v3596, 1.442695
  %v3600 = vpow.pop %v3599
  %v3601 = vadd.f32 %v3598, 1.0
  %v3602 = vadd.f32 %v3600, 1.0
  %v3603 = vrcp.pop %v3601
  %v3604 = vmul.f32 1.0, %v3603
  %v3605 = vrcp.pop %v3602
  %v3606 = vmul.f32 1.0, %v3605
  %v3607 = vxor.u32 %v3588, 2147483648
  %v3608 = vxor.u32 %v3592, 2147483648
  %v3609 = vmul.f32 %v3607, 1.442695
  %v3610 = vpow.pop %v3609
  %v3611 = vmul.f32 %v3608, 1.442695
  %v3612 = vpow.pop %v3611
  %v3613 = vadd.f32 %v3610, 1.0
  %v3614 = vadd.f32 %v3612, 1.0
  %v3615 = vrcp.pop %v3613
  %v3616 = vmul.f32 1.0, %v3615
  %v3617 = vrcp.pop %v3614
  %v3618 = vmul.f32 1.0, %v3617
  %v3619 = vtanh.pop %v3589
  %v3620 = vtanh.pop %v3593
  %v3621 = vxor.u32 %v3590, 2147483648
  %v3622 = vxor.u32 %v3594, 2147483648
  %v3623 = vmul.f32 %v3621, 1.442695
  %v3624 = vpow.pop %v3623
  %v3625 = vmul.f32 %v3622, 1.442695
  %v3626 = vpow.pop %v3625
  %v3627 = vadd.f32 %v3624, 1.0
  %v3628 = vadd.f32 %v3626, 1.0
  %v3629 = vrcp.pop %v3627
  %v3630 = vmul.f32 1.0, %v3629
  %v3631 = vrcp.pop %v3628
  %v3632 = vmul.f32 1.0, %v3631
  %v3633 = vmul.f32 %v3616, %v3327
  %v3634 = vmul.f32 %v3618, %v3328
  %v3635 = vmul.f32 %v3604, %v3619
  %v3636 = vmul.f32 %v3606, %v3620
  %v3637 = vadd.f32 %v3633, %v3635
  %v3638 = vadd.f32 %v3634, %v3636
  %v3639 = vtanh.pop %v3637
  %v3640 = vtanh.pop %v3638
  %v3641 = vmul.f32 %v3630, %v3639
  %v3642 = vmul.f32 %v3632, %v3640
  %s3643 = scalar_lea.vmem %s14, 96
  %3644 = vst [vmem:[%s3643] sm:$0xff] %v3641
  %3645 = vst [vmem:[%s3643 + $0x8] sm:$0xff] %v3642
  %s3646 = scalar_lea.vmem [#allocation7], 64
  %v3647 = vld [vmem:[%s3646] sm:$0xff]
  %v3648 = vld [vmem:[%s3646 + $0x8] sm:$0xff]
  %v3649 = vld [vmem:[%s3646 + $0x10] sm:$0xff]
  %v3650 = vld [vmem:[%s3646 + $0x18] sm:$0xff]
  %v3651 = vld [vmem:[%s3646 + $0x20] sm:$0xff]
  %v3652 = vld [vmem:[%s3646 + $0x28] sm:$0xff]
  %v3653 = vld [vmem:[%s3646 + $0x30] sm:$0xff]
  %v3654 = vld [vmem:[%s3646 + $0x38] sm:$0xff]
  %v3655 = vpack.c.bf16 %v3487, %v3486
  %3656 = vmatprep.subr.bf16.mxu0 %v1733
  %3657 = vmatpush1.bf16.msra.mxu0 %v1732
  %3658 = vmatprep.subr.bf16.mxu0 %v1737
  %3659 = vmatpush1.bf16.msra.mxu0 %v1736
  %3660 = vmatprep.subr.bf16.mxu0 %v1741
  %3661 = vmatpush1.bf16.msra.mxu0 %v1740
  %3662 = vmatprep.subr.bf16.mxu0 %v1745
  %3663 = vmatpush1.bf16.msra.mxu0 %v1744
  %3664 = vmatprep.subr.bf16.mxu0 %v1749
  %3665 = vmatpush1.bf16.msra.mxu0 %v1748
  %3666 = vmatprep.subr.bf16.mxu0 %v1753
  %3667 = vmatpush1.bf16.msra.mxu0 %v1752
  %3668 = vmatprep.subr.bf16.mxu0 %v1757
  %3669 = vmatpush1.bf16.msra.mxu0 %v1756
  %3670 = vmatprep.subr.bf16.mxu0 %v1761
  %3671 = vmatpush1.bf16.msra.mxu0 %v1760
  %3672 = vmatprep.subr.bf16.mxu0 0
  %3673 = vmatpush1.bf16.msra.mxu0 0
  %3674 = vmatprep.subr.bf16.mxu0 0
  %3675 = vmatpush1.bf16.msra.mxu0 0
  %3676 = vmatprep.subr.bf16.mxu0 0
  %3677 = vmatpush1.bf16.msra.mxu0 0
  %3678 = vmatprep.subr.bf16.mxu0 0
  %3679 = vmatpush1.bf16.msra.mxu0 0
  %3680 = vmatprep.subr.bf16.mxu0 0
  %3681 = vmatpush1.bf16.msra.mxu0 0
  %3682 = vmatprep.subr.bf16.mxu0 0
  %3683 = vmatpush1.bf16.msra.mxu0 0
  %3684 = vmatprep.subr.bf16.mxu0 0
  %3685 = vmatpush1.bf16.msra.mxu0 0
  %3686 = vmatprep.subr.bf16.mxu0 0
  %3687 = vmatpush1.bf16.msra.mxu0 0
  %3688 = vmatprep.mubr.bf16.mxu0 0
  %3689 = vmatmul.mubr.bf16.gmra.mrb[0].mxu0 %v3655
  %v3690 = vpop.f32.mrb[0].mxu0
  %v3691 = vadd.f32 0.0, %v3690
  %v3692 = vpop.f32.mrb[0].mxu0
  %v3693 = vadd.f32 0.0, %v3692
  %v3694 = vpop.f32.mrb[0].mxu0
  %v3695 = vadd.f32 0.0, %v3694
  %v3696 = vpop.f32.mrb[0].mxu0
  %v3697 = vadd.f32 0.0, %v3696
  %3698 = vdwg.mxu0
  %3699 = vmatprep.subr.bf16.mxu0 %v1735
  %3700 = vmatpush1.bf16.msra.mxu0 %v1734
  %3701 = vmatprep.subr.bf16.mxu0 %v1739
  %3702 = vmatpush1.bf16.msra.mxu0 %v1738
  %3703 = vmatprep.subr.bf16.mxu0 %v1743
  %3704 = vmatpush1.bf16.msra.mxu0 %v1742
  %3705 = vmatprep.subr.bf16.mxu0 %v1747
  %3706 = vmatpush1.bf16.msra.mxu0 %v1746
  %3707 = vmatprep.subr.bf16.mxu0 %v1751
  %3708 = vmatpush1.bf16.msra.mxu0 %v1750
  %3709 = vmatprep.subr.bf16.mxu0 %v1755
  %3710 = vmatpush1.bf16.msra.mxu0 %v1754
  %3711 = vmatprep.subr.bf16.mxu0 %v1759
  %3712 = vmatpush1.bf16.msra.mxu0 %v1758
  %3713 = vmatprep.subr.bf16.mxu0 %v1763
  %3714 = vmatpush1.bf16.msra.mxu0 %v1762
  %3715 = vmatprep.subr.bf16.mxu0 0
  %3716 = vmatpush1.bf16.msra.mxu0 0
  %3717 = vmatprep.subr.bf16.mxu0 0
  %3718 = vmatpush1.bf16.msra.mxu0 0
  %3719 = vmatprep.subr.bf16.mxu0 0
  %3720 = vmatpush1.bf16.msra.mxu0 0
  %3721 = vmatprep.subr.bf16.mxu0 0
  %3722 = vmatpush1.bf16.msra.mxu0 0
  %3723 = vmatprep.subr.bf16.mxu0 0
  %3724 = vmatpush1.bf16.msra.mxu0 0
  %3725 = vmatprep.subr.bf16.mxu0 0
  %3726 = vmatpush1.bf16.msra.mxu0 0
  %3727 = vmatprep.subr.bf16.mxu0 0
  %3728 = vmatpush1.bf16.msra.mxu0 0
  %3729 = vmatprep.subr.bf16.mxu0 0
  %3730 = vmatpush1.bf16.msra.mxu0 0
  %3731 = vmatprep.mubr.bf16.mxu0 0
  %3732 = vmatmul.mubr.bf16.gmra.mrb[0].mxu0 %v3655
  %v3733 = vpop.f32.mrb[0].mxu0
  %v3734 = vadd.f32 0.0, %v3733
  %v3735 = vpop.f32.mrb[0].mxu0
  %v3736 = vadd.f32 0.0, %v3735
  %v3737 = vpop.f32.mrb[0].mxu0
  %v3738 = vadd.f32 0.0, %v3737
  %v3739 = vpop.f32.mrb[0].mxu0
  %v3740 = vadd.f32 0.0, %v3739
  %3741 = vdwg.mxu0
  %v3742 = vadd.f32 %v3647, %v3691
  %v3743 = vadd.f32 %v3648, %v3693
  %v3744 = vadd.f32 %v3649, %v3734
  %v3745 = vadd.f32 %v3650, %v3736
  %v3746 = vadd.f32 %v3651, %v3695
  %v3747 = vadd.f32 %v3652, %v3697
  %v3748 = vadd.f32 %v3653, %v3738
  %v3749 = vadd.f32 %v3654, %v3740
  %v3750 = vxor.u32 %v3742, 2147483648
  %v3751 = vxor.u32 %v3746, 2147483648
  %v3752 = vmul.f32 %v3750, 1.442695
  %v3753 = vpow.pop %v3752
  %v3754 = vmul.f32 %v3751, 1.442695
  %v3755 = vpow.pop %v3754
  %v3756 = vadd.f32 %v3753, 1.0
  %v3757 = vadd.f32 %v3755, 1.0
  %v3758 = vrcp.pop %v3756
  %v3759 = vmul.f32 1.0, %v3758
  %v3760 = vrcp.pop %v3757
  %v3761 = vmul.f32 1.0, %v3760
  %v3762 = vxor.u32 %v3743, 2147483648
  %v3763 = vxor.u32 %v3747, 2147483648
  %v3764 = vmul.f32 %v3762, 1.442695
  %v3765 = vpow.pop %v3764
  %v3766 = vmul.f32 %v3763, 1.442695
  %v3767 = vpow.pop %v3766
  %v3768 = vadd.f32 %v3765, 1.0
  %v3769 = vadd.f32 %v3767, 1.0
  %v3770 = vrcp.pop %v3768
  %v3771 = vmul.f32 1.0, %v3770
  %v3772 = vrcp.pop %v3769
  %v3773 = vmul.f32 1.0, %v3772
  %v3774 = vtanh.pop %v3744
  %v3775 = vtanh.pop %v3748
  %v3776 = vxor.u32 %v3745, 2147483648
  %v3777 = vxor.u32 %v3749, 2147483648
  %v3778 = vmul.f32 %v3776, 1.442695
  %v3779 = vpow.pop %v3778
  %v3780 = vmul.f32 %v3777, 1.442695
  %v3781 = vpow.pop %v3780
  %v3782 = vadd.f32 %v3779, 1.0
  %v3783 = vadd.f32 %v3781, 1.0
  %v3784 = vrcp.pop %v3782
  %v3785 = vmul.f32 1.0, %v3784
  %v3786 = vrcp.pop %v3783
  %v3787 = vmul.f32 1.0, %v3786
  %v3788 = vmul.f32 %v3771, %v3482
  %v3789 = vmul.f32 %v3773, %v3483
  %v3790 = vmul.f32 %v3759, %v3774
  %v3791 = vmul.f32 %v3761, %v3775
  %v3792 = vadd.f32 %v3788, %v3790
  %v3793 = vadd.f32 %v3789, %v3791
  %v3794 = vtanh.pop %v3792
  %v3795 = vtanh.pop %v3793
  %v3796 = vmul.f32 %v3785, %v3794
  %v3797 = vmul.f32 %v3787, %v3795
  %s3798 = scalar_lea.vmem %s89, 16
  %3799 = vst [vmem:[%s3798] sm:$0xff] %v3796
  %3800 = vst [vmem:[%s3798 + $0x8] sm:$0xff] %v3797
  %s3801 = scalar_lea.vmem [#allocation6], 448
  %v3802 = vld [vmem:[%s3801] sm:$0xff]
  %v3803 = vld [vmem:[%s3801 + $0x8] sm:$0xff]
  %v3804 = vld [vmem:[%s3801 + $0x10] sm:$0xff]
  %v3805 = vld [vmem:[%s3801 + $0x18] sm:$0xff]
  %v3806 = vld [vmem:[%s3801 + $0x20] sm:$0xff]
  %v3807 = vld [vmem:[%s3801 + $0x28] sm:$0xff]
  %v3808 = vld [vmem:[%s3801 + $0x30] sm:$0xff]
  %v3809 = vld [vmem:[%s3801 + $0x38] sm:$0xff]
  %v3810 = vpack.c.bf16 %v3642, %v3641
  %3811 = vmatprep.subr.bf16.mxu0 %v1419
  %3812 = vmatpush1.bf16.msra.mxu0 %v1418
  %3813 = vmatprep.subr.bf16.mxu0 %v1423
  %3814 = vmatpush1.bf16.msra.mxu0 %v1422
  %3815 = vmatprep.subr.bf16.mxu0 %v1427
  %3816 = vmatpush1.bf16.msra.mxu0 %v1426
  %3817 = vmatprep.subr.bf16.mxu0 %v1431
  %3818 = vmatpush1.bf16.msra.mxu0 %v1430
  %3819 = vmatprep.subr.bf16.mxu0 %v1435
  %3820 = vmatpush1.bf16.msra.mxu0 %v1434
  %3821 = vmatprep.subr.bf16.mxu0 %v1439
  %3822 = vmatpush1.bf16.msra.mxu0 %v1438
  %3823 = vmatprep.subr.bf16.mxu0 %v1443
  %3824 = vmatpush1.bf16.msra.mxu0 %v1442
  %3825 = vmatprep.subr.bf16.mxu0 %v1447
  %3826 = vmatpush1.bf16.msra.mxu0 %v1446
  %3827 = vmatprep.subr.bf16.mxu0 0
  %3828 = vmatpush1.bf16.msra.mxu0 0
  %3829 = vmatprep.subr.bf16.mxu0 0
  %3830 = vmatpush1.bf16.msra.mxu0 0
  %3831 = vmatprep.subr.bf16.mxu0 0
  %3832 = vmatpush1.bf16.msra.mxu0 0
  %3833 = vmatprep.subr.bf16.mxu0 0
  %3834 = vmatpush1.bf16.msra.mxu0 0
  %3835 = vmatprep.subr.bf16.mxu0 0
  %3836 = vmatpush1.bf16.msra.mxu0 0
  %3837 = vmatprep.subr.bf16.mxu0 0
  %3838 = vmatpush1.bf16.msra.mxu0 0
  %3839 = vmatprep.subr.bf16.mxu0 0
  %3840 = vmatpush1.bf16.msra.mxu0 0
  %3841 = vmatprep.subr.bf16.mxu0 0
  %3842 = vmatpush1.bf16.msra.mxu0 0
  %3843 = vmatprep.mubr.bf16.mxu0 0
  %3844 = vmatmul.mubr.bf16.gmra.mrb[0].mxu0 %v3810
  %v3845 = vpop.f32.mrb[0].mxu0
  %v3846 = vadd.f32 0.0, %v3845
  %v3847 = vpop.f32.mrb[0].mxu0
  %v3848 = vadd.f32 0.0, %v3847
  %v3849 = vpop.f32.mrb[0].mxu0
  %v3850 = vadd.f32 0.0, %v3849
  %v3851 = vpop.f32.mrb[0].mxu0
  %v3852 = vadd.f32 0.0, %v3851
  %3853 = vdwg.mxu0
  %3854 = vmatprep.subr.bf16.mxu0 %v1421
  %3855 = vmatpush1.bf16.msra.mxu0 %v1420
  %3856 = vmatprep.subr.bf16.mxu0 %v1425
  %3857 = vmatpush1.bf16.msra.mxu0 %v1424
  %3858 = vmatprep.subr.bf16.mxu0 %v1429
  %3859 = vmatpush1.bf16.msra.mxu0 %v1428
  %3860 = vmatprep.subr.bf16.mxu0 %v1433
  %3861 = vmatpush1.bf16.msra.mxu0 %v1432
  %3862 = vmatprep.subr.bf16.mxu0 %v1437
  %3863 = vmatpush1.bf16.msra.mxu0 %v1436
  %3864 = vmatprep.subr.bf16.mxu0 %v1441
  %3865 = vmatpush1.bf16.msra.mxu0 %v1440
  %3866 = vmatprep.subr.bf16.mxu0 %v1445
  %3867 = vmatpush1.bf16.msra.mxu0 %v1444
  %3868 = vmatprep.subr.bf16.mxu0 %v1449
  %3869 = vmatpush1.bf16.msra.mxu0 %v1448
  %3870 = vmatprep.subr.bf16.mxu0 0
  %3871 = vmatpush1.bf16.msra.mxu0 0
  %3872 = vmatprep.subr.bf16.mxu0 0
  %3873 = vmatpush1.bf16.msra.mxu0 0
  %3874 = vmatprep.subr.bf16.mxu0 0
  %3875 = vmatpush1.bf16.msra.mxu0 0
  %3876 = vmatprep.subr.bf16.mxu0 0
  %3877 = vmatpush1.bf16.msra.mxu0 0
  %3878 = vmatprep.subr.bf16.mxu0 0
  %3879 = vmatpush1.bf16.msra.mxu0 0
  %3880 = vmatprep.subr.bf16.mxu0 0
  %3881 = vmatpush1.bf16.msra.mxu0 0
  %3882 = vmatprep.subr.bf16.mxu0 0
  %3883 = vmatpush1.bf16.msra.mxu0 0
  %3884 = vmatprep.subr.bf16.mxu0 0
  %3885 = vmatpush1.bf16.msra.mxu0 0
  %3886 = vmatprep.mubr.bf16.mxu0 0
  %3887 = vmatmul.mubr.bf16.gmra.mrb[0].mxu0 %v3810
  %v3888 = vpop.f32.mrb[0].mxu0
  %v3889 = vadd.f32 0.0, %v3888
  %v3890 = vpop.f32.mrb[0].mxu0
  %v3891 = vadd.f32 0.0, %v3890
  %v3892 = vpop.f32.mrb[0].mxu0
  %v3893 = vadd.f32 0.0, %v3892
  %v3894 = vpop.f32.mrb[0].mxu0
  %v3895 = vadd.f32 0.0, %v3894
  %3896 = vdwg.mxu0
  %v3897 = vadd.f32 %v3802, %v3846
  %v3898 = vadd.f32 %v3803, %v3848
  %v3899 = vadd.f32 %v3804, %v3889
  %v3900 = vadd.f32 %v3805, %v3891
  %v3901 = vadd.f32 %v3806, %v3850
  %v3902 = vadd.f32 %v3807, %v3852
  %v3903 = vadd.f32 %v3808, %v3893
  %v3904 = vadd.f32 %v3809, %v3895
  %v3905 = vxor.u32 %v3897, 2147483648
  %v3906 = vxor.u32 %v3901, 2147483648
  %v3907 = vmul.f32 %v3905, 1.442695
  %v3908 = vpow.pop %v3907
  %v3909 = vmul.f32 %v3906, 1.442695
  %v3910 = vpow.pop %v3909
  %v3911 = vadd.f32 %v3908, 1.0
  %v3912 = vadd.f32 %v3910, 1.0
  %v3913 = vrcp.pop %v3911
  %v3914 = vmul.f32 1.0, %v3913
  %v3915 = vrcp.pop %v3912
  %v3916 = vmul.f32 1.0, %v3915
  %v3917 = vxor.u32 %v3898, 2147483648
  %v3918 = vxor.u32 %v3902, 2147483648
  %v3919 = vmul.f32 %v3917, 1.442695
  %v3920 = vpow.pop %v3919
  %v3921 = vmul.f32 %v3918, 1.442695
  %v3922 = vpow.pop %v3921
  %v3923 = vadd.f32 %v3920, 1.0
  %v3924 = vadd.f32 %v3922, 1.0
  %v3925 = vrcp.pop %v3923
  %v3926 = vmul.f32 1.0, %v3925
  %v3927 = vrcp.pop %v3924
  %v3928 = vmul.f32 1.0, %v3927
  %v3929 = vtanh.pop %v3899
  %v3930 = vtanh.pop %v3903
  %v3931 = vxor.u32 %v3900, 2147483648
  %v3932 = vxor.u32 %v3904, 2147483648
  %v3933 = vmul.f32 %v3931, 1.442695
  %v3934 = vpow.pop %v3933
  %v3935 = vmul.f32 %v3932, 1.442695
  %v3936 = vpow.pop %v3935
  %v3937 = vadd.f32 %v3934, 1.0
  %v3938 = vadd.f32 %v3936, 1.0
  %v3939 = vrcp.pop %v3937
  %v3940 = vmul.f32 1.0, %v3939
  %v3941 = vrcp.pop %v3938
  %v3942 = vmul.f32 1.0, %v3941
  %v3943 = vmul.f32 %v3926, %v3637
  %v3944 = vmul.f32 %v3928, %v3638
  %v3945 = vmul.f32 %v3914, %v3929
  %v3946 = vmul.f32 %v3916, %v3930
  %v3947 = vadd.f32 %v3943, %v3945
  %v3948 = vadd.f32 %v3944, %v3946
  %v3949 = vtanh.pop %v3947
  %v3950 = vtanh.pop %v3948
  %v3951 = vmul.f32 %v3940, %v3949
  %v3952 = vmul.f32 %v3942, %v3950
  %s3953 = scalar_lea.vmem %s14, 112
  %3954 = vst [vmem:[%s3953] sm:$0xff] %v3951
  %3955 = vst [vmem:[%s3953 + $0x8] sm:$0xff] %v3952
  %v3956 = vld [vmem:[#allocation7] sm:$0xff]
  %v3957 = vld [vmem:[#allocation7 + $0x8] sm:$0xff]
  %v3958 = vld [vmem:[#allocation7 + $0x10] sm:$0xff]
  %v3959 = vld [vmem:[#allocation7 + $0x18] sm:$0xff]
  %v3960 = vld [vmem:[#allocation7 + $0x20] sm:$0xff]
  %v3961 = vld [vmem:[#allocation7 + $0x28] sm:$0xff]
  %v3962 = vld [vmem:[#allocation7 + $0x30] sm:$0xff]
  %v3963 = vld [vmem:[#allocation7 + $0x38] sm:$0xff]
  %v3964 = vpack.c.bf16 %v3797, %v3796
  %3965 = vmatprep.subr.bf16.mxu0 %v1733
  %3966 = vmatpush1.bf16.msra.mxu0 %v1732
  %3967 = vmatprep.subr.bf16.mxu0 %v1737
  %3968 = vmatpush1.bf16.msra.mxu0 %v1736
  %3969 = vmatprep.subr.bf16.mxu0 %v1741
  %3970 = vmatpush1.bf16.msra.mxu0 %v1740
  %3971 = vmatprep.subr.bf16.mxu0 %v1745
  %3972 = vmatpush1.bf16.msra.mxu0 %v1744
  %3973 = vmatprep.subr.bf16.mxu0 %v1749
  %3974 = vmatpush1.bf16.msra.mxu0 %v1748
  %3975 = vmatprep.subr.bf16.mxu0 %v1753
  %3976 = vmatpush1.bf16.msra.mxu0 %v1752
  %3977 = vmatprep.subr.bf16.mxu0 %v1757
  %3978 = vmatpush1.bf16.msra.mxu0 %v1756
  %3979 = vmatprep.subr.bf16.mxu0 %v1761
  %3980 = vmatpush1.bf16.msra.mxu0 %v1760
  %3981 = vmatprep.subr.bf16.mxu0 0
  %3982 = vmatpush1.bf16.msra.mxu0 0
  %3983 = vmatprep.subr.bf16.mxu0 0
  %3984 = vmatpush1.bf16.msra.mxu0 0
  %3985 = vmatprep.subr.bf16.mxu0 0
  %3986 = vmatpush1.bf16.msra.mxu0 0
  %3987 = vmatprep.subr.bf16.mxu0 0
  %3988 = vmatpush1.bf16.msra.mxu0 0
  %3989 = vmatprep.subr.bf16.mxu0 0
  %3990 = vmatpush1.bf16.msra.mxu0 0
  %3991 = vmatprep.subr.bf16.mxu0 0
  %3992 = vmatpush1.bf16.msra.mxu0 0
  %3993 = vmatprep.subr.bf16.mxu0 0
  %3994 = vmatpush1.bf16.msra.mxu0 0
  %3995 = vmatprep.subr.bf16.mxu0 0
  %3996 = vmatpush1.bf16.msra.mxu0 0
  %3997 = vmatprep.mubr.bf16.mxu0 0
  %3998 = vmatmul.mubr.bf16.gmra.mrb[0].mxu0 %v3964
  %v3999 = vpop.f32.mrb[0].mxu0
  %v4000 = vadd.f32 0.0, %v3999
  %v4001 = vpop.f32.mrb[0].mxu0
  %v4002 = vadd.f32 0.0, %v4001
  %v4003 = vpop.f32.mrb[0].mxu0
  %v4004 = vadd.f32 0.0, %v4003
  %v4005 = vpop.f32.mrb[0].mxu0
  %v4006 = vadd.f32 0.0, %v4005
  %4007 = vdwg.mxu0
  %4008 = vmatprep.subr.bf16.mxu0 %v1735
  %4009 = vmatpush1.bf16.msra.mxu0 %v1734
  %4010 = vmatprep.subr.bf16.mxu0 %v1739
  %4011 = vmatpush1.bf16.msra.mxu0 %v1738
  %4012 = vmatprep.subr.bf16.mxu0 %v1743
  %4013 = vmatpush1.bf16.msra.mxu0 %v1742
  %4014 = vmatprep.subr.bf16.mxu0 %v1747
  %4015 = vmatpush1.bf16.msra.mxu0 %v1746
  %4016 = vmatprep.subr.bf16.mxu0 %v1751
  %4017 = vmatpush1.bf16.msra.mxu0 %v1750
  %4018 = vmatprep.subr.bf16.mxu0 %v1755
  %4019 = vmatpush1.bf16.msra.mxu0 %v1754
  %4020 = vmatprep.subr.bf16.mxu0 %v1759
  %4021 = vmatpush1.bf16.msra.mxu0 %v1758
  %4022 = vmatprep.subr.bf16.mxu0 %v1763
  %4023 = vmatpush1.bf16.msra.mxu0 %v1762
  %4024 = vmatprep.subr.bf16.mxu0 0
  %4025 = vmatpush1.bf16.msra.mxu0 0
  %4026 = vmatprep.subr.bf16.mxu0 0
  %4027 = vmatpush1.bf16.msra.mxu0 0
  %4028 = vmatprep.subr.bf16.mxu0 0
  %4029 = vmatpush1.bf16.msra.mxu0 0
  %4030 = vmatprep.subr.bf16.mxu0 0
  %4031 = vmatpush1.bf16.msra.mxu0 0
  %4032 = vmatprep.subr.bf16.mxu0 0
  %4033 = vmatpush1.bf16.msra.mxu0 0
  %4034 = vmatprep.subr.bf16.mxu0 0
  %4035 = vmatpush1.bf16.msra.mxu0 0
  %4036 = vmatprep.subr.bf16.mxu0 0
  %4037 = vmatpush1.bf16.msra.mxu0 0
  %4038 = vmatprep.subr.bf16.mxu0 0
  %4039 = vmatpush1.bf16.msra.mxu0 0
  %4040 = vmatprep.mubr.bf16.mxu0 0
  %4041 = vmatmul.mubr.bf16.gmra.mrb[0].mxu0 %v3964
  %v4042 = vpop.f32.mrb[0].mxu0
  %v4043 = vadd.f32 0.0, %v4042
  %v4044 = vpop.f32.mrb[0].mxu0
  %v4045 = vadd.f32 0.0, %v4044
  %v4046 = vpop.f32.mrb[0].mxu0
  %v4047 = vadd.f32 0.0, %v4046
  %v4048 = vpop.f32.mrb[0].mxu0
  %v4049 = vadd.f32 0.0, %v4048
  %4050 = vdwg.mxu0
  %v4051 = vadd.f32 %v3956, %v4000
  %v4052 = vadd.f32 %v3957, %v4002
  %v4053 = vadd.f32 %v3958, %v4043
  %v4054 = vadd.f32 %v3959, %v4045
  %v4055 = vadd.f32 %v3960, %v4004
  %v4056 = vadd.f32 %v3961, %v4006
  %v4057 = vadd.f32 %v3962, %v4047
  %v4058 = vadd.f32 %v3963, %v4049
  %v4059 = vxor.u32 %v4051, 2147483648
  %v4060 = vxor.u32 %v4055, 2147483648
  %v4061 = vmul.f32 %v4059, 1.442695
  %v4062 = vpow.pop %v4061
  %v4063 = vmul.f32 %v4060, 1.442695
  %v4064 = vpow.pop %v4063
  %v4065 = vadd.f32 %v4062, 1.0
  %v4066 = vadd.f32 %v4064, 1.0
  %v4067 = vrcp.pop %v4065
  %v4068 = vmul.f32 1.0, %v4067
  %v4069 = vrcp.pop %v4066
  %v4070 = vmul.f32 1.0, %v4069
  %v4071 = vxor.u32 %v4052, 2147483648
  %v4072 = vxor.u32 %v4056, 2147483648
  %v4073 = vmul.f32 %v4071, 1.442695
  %v4074 = vpow.pop %v4073
  %v4075 = vmul.f32 %v4072, 1.442695
  %v4076 = vpow.pop %v4075
  %v4077 = vadd.f32 %v4074, 1.0
  %v4078 = vadd.f32 %v4076, 1.0
  %v4079 = vrcp.pop %v4077
  %v4080 = vmul.f32 1.0, %v4079
  %v4081 = vrcp.pop %v4078
  %v4082 = vmul.f32 1.0, %v4081
  %v4083 = vtanh.pop %v4053
  %v4084 = vtanh.pop %v4057
  %v4085 = vxor.u32 %v4054, 2147483648
  %v4086 = vxor.u32 %v4058, 2147483648
  %v4087 = vmul.f32 %v4085, 1.442695
  %v4088 = vpow.pop %v4087
  %v4089 = vmul.f32 %v4086, 1.442695
  %v4090 = vpow.pop %v4089
  %v4091 = vadd.f32 %v4088, 1.0
  %v4092 = vadd.f32 %v4090, 1.0
  %v4093 = vrcp.pop %v4091
  %v4094 = vmul.f32 1.0, %v4093
  %v4095 = vrcp.pop %v4092
  %v4096 = vmul.f32 1.0, %v4095
  %v4097 = vmul.f32 %v4080, %v3792
  %v4098 = vmul.f32 %v4082, %v3793
  %v4099 = vmul.f32 %v4068, %v4083
  %v4100 = vmul.f32 %v4070, %v4084
  %v4101 = vadd.f32 %v4097, %v4099
  %v4102 = vadd.f32 %v4098, %v4100
  %v4103 = vtanh.pop %v4101
  %v4104 = vtanh.pop %v4102
  %v4105 = vmul.f32 %v4094, %v4103
  %v4106 = vmul.f32 %v4096, %v4104
  %4107 = vst [vmem:[%s89] sm:$0xff] %v4105
  %4108 = vst [vmem:[%s89 + $0x8] sm:$0xff] %v4106
  %4109 = vst [vmem:[#allocation2] sm:$0xff] %v3951
  %4110 = vst [vmem:[#allocation2 + $0x8] sm:$0xff] %v3952
  %4111 = vst [vmem:[#allocation3] sm:$0xff] %v3947
  %4112 = vst [vmem:[#allocation3 + $0x8] sm:$0xff] %v3948
  %4113 = vst [vmem:[#allocation4] sm:$0xff] %v4105
  %4114 = vst [vmem:[#allocation4 + $0x8] sm:$0xff] %v4106
  %4115 = vst [vmem:[#allocation5] sm:$0xff] %v4101
  %4116 = vst [vmem:[#allocation5 + $0x8] sm:$0xff] %v4102
  // Predicated region
  $region62: #{lstm_encoder_forward.1} parent=0 // pred_check
    %p4117 = pneg %p93
  $region63: #{lstm_encoder_forward.1} parent=0 // pred_check_branch
    %4119 = sbr.rel (%p4117) target = $region65
  $region64: #{lstm_encoder_forward.1} parent=0 // pred_region
    %v4120 = vpack.c.bf16 %v3952, %v3951
    %v4121 = vpack.c.bf16 %v4106, %v4105
    %v4122 = vpack.c.bf16 %v3948, %v3947
    %v4123 = vpack.c.bf16 %v4102, %v4101
    %v4124 = vld [vmem:[%s8] sm:$0xf]
    %v4125 = vld [vmem:[%s8 + $0x4] sm:$0xf]
    %v4126 = vld [vmem:[%s8 + $0x8] sm:$0xf]
    %v4127 = vld [vmem:[%s8 + $0xc] sm:$0xf]
    %v4128 = vld [vmem:[%s8 + $0x10] sm:$0xf]
    %v4129 = vld [vmem:[%s8 + $0x14] sm:$0xf]
    %v4130 = vld [vmem:[%s8 + $0x18] sm:$0xf]
    %v4131 = vld [vmem:[%s8 + $0x1c] sm:$0xf]
    %v4132 = vld [vmem:[%s8 + $0x20] sm:$0xf]
    %v4133 = vld [vmem:[%s8 + $0x24] sm:$0xf]
    %v4134 = vld [vmem:[%s8 + $0x28] sm:$0xf]
    %v4135 = vld [vmem:[%s8 + $0x2c] sm:$0xf]
    %v4136 = vld [vmem:[%s8 + $0x30] sm:$0xf]
    %v4137 = vld [vmem:[%s8 + $0x34] sm:$0xf]
    %v4138 = vld [vmem:[%s8 + $0x38] sm:$0xf]
    %v4139 = vld [vmem:[%s8 + $0x3c] sm:$0xf]
    %v4140 = vld [vmem:[%s9] sm:$0xf]
    %v4141 = vld [vmem:[%s9 + $0x4] sm:$0xf]
    %v4142 = vld [vmem:[%s9 + $0x8] sm:$0xf]
    %v4143 = vld [vmem:[%s9 + $0xc] sm:$0xf]
    %v4144 = vld [vmem:[%s9 + $0x10] sm:$0xf]
    %v4145 = vld [vmem:[%s9 + $0x14] sm:$0xf]
    %v4146 = vld [vmem:[%s9 + $0x18] sm:$0xf]
    %v4147 = vld [vmem:[%s9 + $0x1c] sm:$0xf]
    %v4148 = vld [vmem:[%s9 + $0x20] sm:$0xf]
    %v4149 = vld [vmem:[%s9 + $0x24] sm:$0xf]
    %v4150 = vld [vmem:[%s9 + $0x28] sm:$0xf]
    %v4151 = vld [vmem:[%s9 + $0x2c] sm:$0xf]
    %v4152 = vld [vmem:[%s9 + $0x30] sm:$0xf]
    %v4153 = vld [vmem:[%s9 + $0x34] sm:$0xf]
    %v4154 = vld [vmem:[%s9 + $0x38] sm:$0xf]
    %v4155 = vld [vmem:[%s9 + $0x3c] sm:$0xf]
    %v4172 = vunpack.c.l.b16 %v4140
    %v4173 = vunpack.c.l.b16 %v4141
    %v4174 = vunpack.c.l.b16 %v4142
    %v4175 = vunpack.c.l.b16 %v4143
    %v4176 = vunpack.c.l.b16 %v4144
    %v4177 = vunpack.c.l.b16 %v4145
    %v4178 = vunpack.c.l.b16 %v4146
    %v4179 = vunpack.c.l.b16 %v4147
    %v4180 = vunpack.c.l.b16 %v4148
    %v4181 = vunpack.c.l.b16 %v4149
    %v4182 = vunpack.c.l.b16 %v4150
    %v4183 = vunpack.c.l.b16 %v4151
    %v4184 = vunpack.c.l.b16 %v4152
    %v4185 = vunpack.c.l.b16 %v4153
    %v4186 = vunpack.c.l.b16 %v4154
    %v4187 = vunpack.c.l.b16 %v4155
    %v4188 = vpack.c.b16 %v4173, %v4172
    %v4189 = vpack.c.b16 %v4175, %v4174
    %v4190 = vpack.c.b16 %v4177, %v4176
    %v4191 = vpack.c.b16 %v4179, %v4178
    %v4192 = vpack.c.b16 %v4181, %v4180
    %v4193 = vpack.c.b16 %v4183, %v4182
    %v4194 = vpack.c.b16 %v4185, %v4184
    %v4195 = vpack.c.b16 %v4187, %v4186
    %4204 = vmatprep.subr.bf16.mxu0 0
    %4205 = vmatpush1.bf16.msra.mxu0 %v4188
    %4206 = vmatprep.subr.bf16.mxu0 0
    %4207 = vmatpush1.bf16.msra.mxu0 %v4189
    %4208 = vmatprep.subr.bf16.mxu0 0
    %4209 = vmatpush1.bf16.msra.mxu0 %v4190
    %4210 = vmatprep.subr.bf16.mxu0 0
    %4211 = vmatpush1.bf16.msra.mxu0 %v4191
    %4212 = vmatprep.subr.bf16.mxu0 0
    %4213 = vmatpush1.bf16.msra.mxu0 %v4192
    %4214 = vmatprep.subr.bf16.mxu0 0
    %4215 = vmatpush1.bf16.msra.mxu0 %v4193
    %4216 = vmatprep.subr.bf16.mxu0 0
    %4217 = vmatpush1.bf16.msra.mxu0 %v4194
    %4218 = vmatprep.subr.bf16.mxu0 0
    %4219 = vmatpush1.bf16.msra.mxu0 %v4195
    %4220 = vmatprep.subr.bf16.mxu0 0
    %4221 = vmatpush1.bf16.msra.mxu0 0
    %4222 = vmatprep.subr.bf16.mxu0 0
    %4223 = vmatpush1.bf16.msra.mxu0 0
    %4224 = vmatprep.subr.bf16.mxu0 0
    %4225 = vmatpush1.bf16.msra.mxu0 0
    %4226 = vmatprep.subr.bf16.mxu0 0
    %4227 = vmatpush1.bf16.msra.mxu0 0
    %4228 = vmatprep.subr.bf16.mxu0 0
    %4229 = vmatpush1.bf16.msra.mxu0 0
    %4230 = vmatprep.subr.bf16.mxu0 0
    %4231 = vmatpush1.bf16.msra.mxu0 0
    %4232 = vmatprep.subr.bf16.mxu0 0
    %4233 = vmatpush1.bf16.msra.mxu0 0
    %4234 = vmatprep.subr.bf16.mxu0 0
    %4235 = vmatpush1.bf16.msra.mxu0 0
    %4236 = vmatprep.mubr.bf16.mxu0 0
    %4237 = vmatmul.mubr.bf16.gmra.mrb[0].mxu0 %v4121
    %v4238 = vpop.f32.mrb[0].mxu0
    %v4239 = vadd.f32 0.0, %v4238
    %v4240 = vpop.f32.mrb[0].mxu0
    %v4241 = vpop.f32.mrb[0].mxu0
    %v4242 = vadd.f32 0.0, %v4241
    %v4243 = vpop.f32.mrb[0].mxu0
    %4244 = vdwg.mxu0
    %v4261 = vunpack.c.l.b16 %v4124
    %v4262 = vunpack.c.l.b16 %v4125
    %v4263 = vunpack.c.l.b16 %v4126
    %v4264 = vunpack.c.l.b16 %v4127
    %v4265 = vunpack.c.l.b16 %v4128
    %v4266 = vunpack.c.l.b16 %v4129
    %v4267 = vunpack.c.l.b16 %v4130
    %v4268 = vunpack.c.l.b16 %v4131
    %v4269 = vunpack.c.l.b16 %v4132
    %v4270 = vunpack.c.l.b16 %v4133
    %v4271 = vunpack.c.l.b16 %v4134
    %v4272 = vunpack.c.l.b16 %v4135
    %v4273 = vunpack.c.l.b16 %v4136
    %v4274 = vunpack.c.l.b16 %v4137
    %v4275 = vunpack.c.l.b16 %v4138
    %v4276 = vunpack.c.l.b16 %v4139
    %v4277 = vpack.c.b16 %v4262, %v4261
    %v4278 = vpack.c.b16 %v4264, %v4263
    %v4279 = vpack.c.b16 %v4266, %v4265
    %v4280 = vpack.c.b16 %v4268, %v4267
    %v4281 = vpack.c.b16 %v4270, %v4269
    %v4282 = vpack.c.b16 %v4272, %v4271
    %v4283 = vpack.c.b16 %v4274, %v4273
    %v4284 = vpack.c.b16 %v4276, %v4275
    %4293 = vmatprep.subr.bf16.mxu0 0
    %4294 = vmatpush1.bf16.msra.mxu0 %v4277
    %4295 = vmatprep.subr.bf16.mxu0 0
    %4296 = vmatpush1.bf16.msra.mxu0 %v4278
    %4297 = vmatprep.subr.bf16.mxu0 0
    %4298 = vmatpush1.bf16.msra.mxu0 %v4279
    %4299 = vmatprep.subr.bf16.mxu0 0
    %4300 = vmatpush1.bf16.msra.mxu0 %v4280
    %4301 = vmatprep.subr.bf16.mxu0 0
    %4302 = vmatpush1.bf16.msra.mxu0 %v4281
    %4303 = vmatprep.subr.bf16.mxu0 0
    %4304 = vmatpush1.bf16.msra.mxu0 %v4282
    %4305 = vmatprep.subr.bf16.mxu0 0
    %4306 = vmatpush1.bf16.msra.mxu0 %v4283
    %4307 = vmatprep.subr.bf16.mxu0 0
    %4308 = vmatpush1.bf16.msra.mxu0 %v4284
    %4309 = vmatprep.subr.bf16.mxu0 0
    %4310 = vmatpush1.bf16.msra.mxu0 0
    %4311 = vmatprep.subr.bf16.mxu0 0
    %4312 = vmatpush1.bf16.msra.mxu0 0
    %4313 = vmatprep.subr.bf16.mxu0 0
    %4314 = vmatpush1.bf16.msra.mxu0 0
    %4315 = vmatprep.subr.bf16.mxu0 0
    %4316 = vmatpush1.bf16.msra.mxu0 0
    %4317 = vmatprep.subr.bf16.mxu0 0
    %4318 = vmatpush1.bf16.msra.mxu0 0
    %4319 = vmatprep.subr.bf16.mxu0 0
    %4320 = vmatpush1.bf16.msra.mxu0 0
    %4321 = vmatprep.subr.bf16.mxu0 0
    %4322 = vmatpush1.bf16.msra.mxu0 0
    %4323 = vmatprep.subr.bf16.mxu0 0
    %4324 = vmatpush1.bf16.msra.mxu0 0
    %4325 = vmatprep.mubr.bf16.mxu0 0
    %4326 = vmatmul.mubr.bf16.gmra.mrb[0].mxu0 %v4120
    %v4327 = vpop.f32.mrb[0].mxu0
    %v4328 = vadd.f32 %v4239, %v4327
    %v4329 = vpop.f32.mrb[0].mxu0
    %v4330 = vpop.f32.mrb[0].mxu0
    %v4331 = vadd.f32 %v4242, %v4330
    %v4332 = vpop.f32.mrb[0].mxu0
    %4333 = vdwg.mxu0
    %v4334 = vld [vmem:[%s10] sm:$0x1]
    %v4336 = vlaneseq
    %v4337 = vshrl.u32 %v4336, 7
    %v4338 = vsub.s32 0, %v4337
    %v4339 = vrot.slane %v4334, %v4338
    %v4341 = vadd.f32 %v4328, %v4339
    %v4342 = vadd.f32 %v4331, %v4339
    %4343 = vst [vmem:[%s16] sm:$0xff] %v4341
    %4344 = vst [vmem:[%s16 + $0x8] sm:$0xff] %v4342
    %v4345 = vld [vmem:[%s11] sm:$0xf]
    %v4346 = vld [vmem:[%s11 + $0x4] sm:$0xf]
    %v4347 = vld [vmem:[%s11 + $0x8] sm:$0xf]
    %v4348 = vld [vmem:[%s11 + $0xc] sm:$0xf]
    %v4349 = vld [vmem:[%s11 + $0x10] sm:$0xf]
    %v4350 = vld [vmem:[%s11 + $0x14] sm:$0xf]
    %v4351 = vld [vmem:[%s11 + $0x18] sm:$0xf]
    %v4352 = vld [vmem:[%s11 + $0x1c] sm:$0xf]
    %v4353 = vld [vmem:[%s11 + $0x20] sm:$0xf]
    %v4354 = vld [vmem:[%s11 + $0x24] sm:$0xf]
    %v4355 = vld [vmem:[%s11 + $0x28] sm:$0xf]
    %v4356 = vld [vmem:[%s11 + $0x2c] sm:$0xf]
    %v4357 = vld [vmem:[%s11 + $0x30] sm:$0xf]
    %v4358 = vld [vmem:[%s11 + $0x34] sm:$0xf]
    %v4359 = vld [vmem:[%s11 + $0x38] sm:$0xf]
    %v4360 = vld [vmem:[%s11 + $0x3c] sm:$0xf]
    %v4361 = vld [vmem:[%s12] sm:$0xf]
    %v4362 = vld [vmem:[%s12 + $0x4] sm:$0xf]
    %v4363 = vld [vmem:[%s12 + $0x8] sm:$0xf]
    %v4364 = vld [vmem:[%s12 + $0xc] sm:$0xf]
    %v4365 = vld [vmem:[%s12 + $0x10] sm:$0xf]
    %v4366 = vld [vmem:[%s12 + $0x14] sm:$0xf]
    %v4367 = vld [vmem:[%s12 + $0x18] sm:$0xf]
    %v4368 = vld [vmem:[%s12 + $0x1c] sm:$0xf]
    %v4369 = vld [vmem:[%s12 + $0x20] sm:$0xf]
    %v4370 = vld [vmem:[%s12 + $0x24] sm:$0xf]
    %v4371 = vld [vmem:[%s12 + $0x28] sm:$0xf]
    %v4372 = vld [vmem:[%s12 + $0x2c] sm:$0xf]
    %v4373 = vld [vmem:[%s12 + $0x30] sm:$0xf]
    %v4374 = vld [vmem:[%s12 + $0x34] sm:$0xf]
    %v4375 = vld [vmem:[%s12 + $0x38] sm:$0xf]
    %v4376 = vld [vmem:[%s12 + $0x3c] sm:$0xf]
    %v4393 = vunpack.c.l.b16 %v4361
    %v4394 = vunpack.c.l.b16 %v4362
    %v4395 = vunpack.c.l.b16 %v4363
    %v4396 = vunpack.c.l.b16 %v4364
    %v4397 = vunpack.c.l.b16 %v4365
    %v4398 = vunpack.c.l.b16 %v4366
    %v4399 = vunpack.c.l.b16 %v4367
    %v4400 = vunpack.c.l.b16 %v4368
    %v4401 = vunpack.c.l.b16 %v4369
    %v4402 = vunpack.c.l.b16 %v4370
    %v4403 = vunpack.c.l.b16 %v4371
    %v4404 = vunpack.c.l.b16 %v4372
    %v4405 = vunpack.c.l.b16 %v4373
    %v4406 = vunpack.c.l.b16 %v4374
    %v4407 = vunpack.c.l.b16 %v4375
    %v4408 = vunpack.c.l.b16 %v4376
    %v4409 = vpack.c.b16 %v4394, %v4393
    %v4410 = vpack.c.b16 %v4396, %v4395
    %v4411 = vpack.c.b16 %v4398, %v4397
    %v4412 = vpack.c.b16 %v4400, %v4399
    %v4413 = vpack.c.b16 %v4402, %v4401
    %v4414 = vpack.c.b16 %v4404, %v4403
    %v4415 = vpack.c.b16 %v4406, %v4405
    %v4416 = vpack.c.b16 %v4408, %v4407
    %4425 = vmatprep.subr.bf16.mxu0 0
    %4426 = vmatpush1.bf16.msra.mxu0 %v4409
    %4427 = vmatprep.subr.bf16.mxu0 0
    %4428 = vmatpush1.bf16.msra.mxu0 %v4410
    %4429 = vmatprep.subr.bf16.mxu0 0
    %4430 = vmatpush1.bf16.msra.mxu0 %v4411
    %4431 = vmatprep.subr.bf16.mxu0 0
    %4432 = vmatpush1.bf16.msra.mxu0 %v4412
    %4433 = vmatprep.subr.bf16.mxu0 0
    %4434 = vmatpush1.bf16.msra.mxu0 %v4413
    %4435 = vmatprep.subr.bf16.mxu0 0
    %4436 = vmatpush1.bf16.msra.mxu0 %v4414
    %4437 = vmatprep.subr.bf16.mxu0 0
    %4438 = vmatpush1.bf16.msra.mxu0 %v4415
    %4439 = vmatprep.subr.bf16.mxu0 0
    %4440 = vmatpush1.bf16.msra.mxu0 %v4416
    %4441 = vmatprep.subr.bf16.mxu0 0
    %4442 = vmatpush1.bf16.msra.mxu0 0
    %4443 = vmatprep.subr.bf16.mxu0 0
    %4444 = vmatpush1.bf16.msra.mxu0 0
    %4445 = vmatprep.subr.bf16.mxu0 0
    %4446 = vmatpush1.bf16.msra.mxu0 0
    %4447 = vmatprep.subr.bf16.mxu0 0
    %4448 = vmatpush1.bf16.msra.mxu0 0
    %4449 = vmatprep.subr.bf16.mxu0 0
    %4450 = vmatpush1.bf16.msra.mxu0 0
    %4451 = vmatprep.subr.bf16.mxu0 0
    %4452 = vmatpush1.bf16.msra.mxu0 0
    %4453 = vmatprep.subr.bf16.mxu0 0
    %4454 = vmatpush1.bf16.msra.mxu0 0
    %4455 = vmatprep.subr.bf16.mxu0 0
    %4456 = vmatpush1.bf16.msra.mxu0 0
    %4457 = vmatprep.mubr.bf16.mxu0 0
    %4458 = vmatmul.mubr.bf16.gmra.mrb[0].mxu0 %v4123
    %v4459 = vpop.f32.mrb[0].mxu0
    %v4460 = vadd.f32 0.0, %v4459
    %v4461 = vpop.f32.mrb[0].mxu0
    %v4462 = vpop.f32.mrb[0].mxu0
    %v4463 = vadd.f32 0.0, %v4462
    %v4464 = vpop.f32.mrb[0].mxu0
    %4465 = vdwg.mxu0
    %v4482 = vunpack.c.l.b16 %v4345
    %v4483 = vunpack.c.l.b16 %v4346
    %v4484 = vunpack.c.l.b16 %v4347
    %v4485 = vunpack.c.l.b16 %v4348
    %v4486 = vunpack.c.l.b16 %v4349
    %v4487 = vunpack.c.l.b16 %v4350
    %v4488 = vunpack.c.l.b16 %v4351
    %v4489 = vunpack.c.l.b16 %v4352
    %v4490 = vunpack.c.l.b16 %v4353
    %v4491 = vunpack.c.l.b16 %v4354
    %v4492 = vunpack.c.l.b16 %v4355
    %v4493 = vunpack.c.l.b16 %v4356
    %v4494 = vunpack.c.l.b16 %v4357
    %v4495 = vunpack.c.l.b16 %v4358
    %v4496 = vunpack.c.l.b16 %v4359
    %v4497 = vunpack.c.l.b16 %v4360
    %v4498 = vpack.c.b16 %v4483, %v4482
    %v4499 = vpack.c.b16 %v4485, %v4484
    %v4500 = vpack.c.b16 %v4487, %v4486
    %v4501 = vpack.c.b16 %v4489, %v4488
    %v4502 = vpack.c.b16 %v4491, %v4490
    %v4503 = vpack.c.b16 %v4493, %v4492
    %v4504 = vpack.c.b16 %v4495, %v4494
    %v4505 = vpack.c.b16 %v4497, %v4496
    %4514 = vmatprep.subr.bf16.mxu0 0
    %4515 = vmatpush1.bf16.msra.mxu0 %v4498
    %4516 = vmatprep.subr.bf16.mxu0 0
    %4517 = vmatpush1.bf16.msra.mxu0 %v4499
    %4518 = vmatprep.subr.bf16.mxu0 0
    %4519 = vmatpush1.bf16.msra.mxu0 %v4500
    %4520 = vmatprep.subr.bf16.mxu0 0
    %4521 = vmatpush1.bf16.msra.mxu0 %v4501
    %4522 = vmatprep.subr.bf16.mxu0 0
    %4523 = vmatpush1.bf16.msra.mxu0 %v4502
    %4524 = vmatprep.subr.bf16.mxu0 0
    %4525 = vmatpush1.bf16.msra.mxu0 %v4503
    %4526 = vmatprep.subr.bf16.mxu0 0
    %4527 = vmatpush1.bf16.msra.mxu0 %v4504
    %4528 = vmatprep.subr.bf16.mxu0 0
    %4529 = vmatpush1.bf16.msra.mxu0 %v4505
    %4530 = vmatprep.subr.bf16.mxu0 0
    %4531 = vmatpush1.bf16.msra.mxu0 0
    %4532 = vmatprep.subr.bf16.mxu0 0
    %4533 = vmatpush1.bf16.msra.mxu0 0
    %4534 = vmatprep.subr.bf16.mxu0 0
    %4535 = vmatpush1.bf16.msra.mxu0 0
    %4536 = vmatprep.subr.bf16.mxu0 0
    %4537 = vmatpush1.bf16.msra.mxu0 0
    %4538 = vmatprep.subr.bf16.mxu0 0
    %4539 = vmatpush1.bf16.msra.mxu0 0
    %4540 = vmatprep.subr.bf16.mxu0 0
    %4541 = vmatpush1.bf16.msra.mxu0 0
    %4542 = vmatprep.subr.bf16.mxu0 0
    %4543 = vmatpush1.bf16.msra.mxu0 0
    %4544 = vmatprep.subr.bf16.mxu0 0
    %4545 = vmatpush1.bf16.msra.mxu0 0
    %4546 = vmatprep.mubr.bf16.mxu0 0
    %4547 = vmatmul.mubr.bf16.gmra.mrb[0].mxu0 %v4122
    %v4548 = vpop.f32.mrb[0].mxu0
    %v4549 = vadd.f32 %v4460, %v4548
    %v4550 = vpop.f32.mrb[0].mxu0
    %v4551 = vpop.f32.mrb[0].mxu0
    %v4552 = vadd.f32 %v4463, %v4551
    %v4553 = vpop.f32.mrb[0].mxu0
    %4554 = vdwg.mxu0
    %v4555 = vld [vmem:[%s13] sm:$0x1]
    %v4557 = vlaneseq
    %v4558 = vshrl.u32 %v4557, 7
    %v4559 = vsub.s32 0, %v4558
    %v4560 = vrot.slane %v4555, %v4559
    %v4562 = vadd.f32 %v4549, %v4560
    %v4563 = vadd.f32 %v4552, %v4560
    %4564 = vst [vmem:[%s17] sm:$0xff] %v4562
    %4565 = vst [vmem:[%s17 + $0x8] sm:$0xff] %v4563
  $region65: #{lstm_encoder_forward.1} parent=0 // pred_fallthru
    _
  %s4566 = ssub.s32 0, 0
  %s4567 = smul.u32 8, %s4566
  %p4568 = scmp.lt.s32.totalorder %s4567, 7
  %s4569 = scalar_select %p4568, %s4567, 7
  %s4570 = smul.addr %s4569, 2
  %s4571 = smul.addr %s4570, 8
  %s4572 = scalar_lea.vmem %s15, %s4571
  // Predicated region
  $region66: #{lstm_encoder_forward.1} parent=0 // pred_check
    _
  $region67: #{lstm_encoder_forward.1} parent=0 // pred_check_branch
    %4574 = sbr.rel (0) target = $region69
  $region68: #{lstm_encoder_forward.1} parent=0 // pred_region
    _
  $region69: #{lstm_encoder_forward.1} parent=0 // pred_fallthru
    _
  // Predicated region
  $region70: #{lstm_encoder_forward.1} parent=0 // pred_check
    _
  $region71: #{lstm_encoder_forward.1} parent=0 // pred_check_branch
    %4576 = sbr.rel (0) target = $region73
  $region72: #{lstm_encoder_forward.1} parent=0 // pred_region
    %s4577 = ssub.s32 0, 0
    %s4578 = smul.u32 8, %s4577
  $region73: #{lstm_encoder_forward.1} parent=0 // pred_fallthru
    _
  // Predicated region
  $region74: #{lstm_encoder_forward.1} parent=0 // pred_check
    _
  $region75: #{lstm_encoder_forward.1} parent=0 // pred_check_branch
    %4580 = sbr.rel (0) target = $region77
  $region76: #{lstm_encoder_forward.1} parent=0 // pred_region
    _
  $region77: #{lstm_encoder_forward.1} parent=0 // pred_fallthru
    _
  // Predicated region
  $region78: #{lstm_encoder_forward.1} parent=0 // pred_check
    _
  $region79: #{lstm_encoder_forward.1} parent=0 // pred_check_branch
    %4582 = sbr.rel (0) target = $region81
  $region80: #{lstm_encoder_forward.1} parent=0 // pred_region
    _
  $region81: #{lstm_encoder_forward.1} parent=0 // pred_fallthru
    _
  // Predicated region
  $region82: #{lstm_encoder_forward.1} parent=0 // pred_check
    _
  $region83: #{lstm_encoder_forward.1} parent=0 // pred_check_branch
    %4584 = sbr.rel (0) target = $region85
  $region84: #{lstm_encoder_forward.1} parent=0 // pred_region
    _
  $region85: #{lstm_encoder_forward.1} parent=0 // pred_fallthru
    _
  // Predicated region
  $region86: #{lstm_encoder_forward.1} parent=0 // pred_check
    _
  $region87: #{lstm_encoder_forward.1} parent=0 // pred_check_branch
    %4586 = sbr.rel (0) target = $region89
  $region88: #{lstm_encoder_forward.1} parent=0 // pred_region
    %s4587 = ssub.s32 0, 0
    %s4588 = smul.u32 8, %s4587
    %p4589 = scmp.lt.s32.totalorder %s4588, 7
    %s4590 = scalar_select %p4589, %s4588, 7
    %s4591 = smul.addr %s4590, 2
    %s4592 = smul.addr %s4591, 8
    %s4593 = scalar_lea.vmem %s15, %s4592
  $region89: #{lstm_encoder_forward.1} parent=0 // pred_fallthru
    _
  // Predicated region
  $region90: #{lstm_encoder_forward.1} parent=0 // pred_check
    _
  $region91: #{lstm_encoder_forward.1} parent=0 // pred_check_branch
    %4595 = sbr.rel (0) target = $region93
  $region92: #{lstm_encoder_forward.1} parent=0 // pred_region
    _
  $region93: #{lstm_encoder_forward.1} parent=0 // pred_fallthru
    _
  // Predicated region
  $region94: #{lstm_encoder_forward.1} parent=0 // pred_check
    _
  $region95: #{lstm_encoder_forward.1} parent=0 // pred_check_branch
    %4597 = sbr.rel (0) target = $region97
  $region96: #{lstm_encoder_forward.1} parent=0 // pred_region
    _
  $region97: #{lstm_encoder_forward.1} parent=0 // pred_fallthru
    _

</llo_original>
